<compile_context>
chip_gen: v7x
topology: tpu7x:2x2x1
jax: 0.10.0
libtpu: 0.0.40
codegen_flags: <defaults>
</compile_context>

<pallas_src>
import functools

import jax
import jax.numpy as jnp
from jax import lax
from jax.experimental import pallas as pl
from jax.experimental.pallas import tpu as pltpu

EPS = 1e-5
VMEM_LIMIT = 32 * 1024 * 1024


def _bn_scale_shift(gamma, beta, mean, var):
    scale = gamma / jnp.sqrt(var + EPS)
    shift = beta - mean * scale
    return (scale.reshape(1, -1).astype(jnp.float32),
            shift.reshape(1, -1).astype(jnp.float32))


def _pick_tile(n, target):
    """Largest multiple-of-8 divisor of n that is <= target (else n)."""
    best = None
    for d in range(8, min(n, target) + 1, 8):
        if n % d == 0:
            best = d
    return best if best is not None else n


# ----------------------------- Pallas kernels -----------------------------

def conv1_pool_kernel(x_ref, w_ref, s_ref, t_ref, y_ref, pool_ref):
    """fm_conv1 + bn1 + relu on one row tile, fused with the fsm global-sum
    accumulation so x is read from HBM exactly once."""
    r = pl.program_id(1)
    x = x_ref[0]                                                # (TR, Cin) f32
    y = jnp.dot(x.astype(jnp.bfloat16), w_ref[...],
                preferred_element_type=jnp.float32)             # bf16 MXU
    y = jnp.maximum(y * s_ref[...] + t_ref[...], 0.0)
    y_ref[0] = y.astype(y_ref.dtype)

    @pl.when(r == 0)
    def _():
        pool_ref[...] = jnp.zeros_like(pool_ref)
    pool_ref[0] += jnp.sum(x, axis=0, keepdims=True)


def fsm_kernel(pool_ref, w1, b1, s1, t1, w2, b2, s2, t2, w3, b3, s3, t3,
               out_ref, *, inv_hw):
    """fsm MLP on the pooled (B, Cin) vector (tiny; f32 throughout)."""
    pooled = jnp.sum(pool_ref[...], axis=1) * inv_hw            # (B, Cin)
    h = jnp.dot(pooled, w1[...], preferred_element_type=jnp.float32) + b1[...]
    h = jnp.maximum(h * s1[...] + t1[...], 0.0)
    h = jnp.dot(h, w2[...], preferred_element_type=jnp.float32) + b2[...]
    h = jnp.maximum(h * s2[...] + t2[...], 0.0)
    h = jnp.dot(h, w3[...], preferred_element_type=jnp.float32) + b3[...]
    h = h * s3[...] + t3[...]
    out_ref[...] = jax.nn.sigmoid(h)


def grouped_conv_kernel(xf_ref, w_ref, s_ref, t_ref, ss_ref, o_ref,
                        *, tr, tap_specs, single_phase):
    """Grouped 3x3 conv (9 bf16 tap matmuls against block-diagonal weights)
    + bn2 + relu + fsm gating on one row tile of the flat padded activation.

    The per-batch padded activation slab is VMEM-resident (constant index_map
    over the row-tile grid axis); the 9 taps are static row offsets into it,
    read via one aligned dynamic slice + 9 static sub-slices."""
    r = pl.program_id(1)
    base = r * tr
    if tr % 8 == 0:
        base = pl.multiple_of(base, 8)
    if single_phase:
        max_off = max(off for _, off in tap_specs)
        win = xf_ref[0, 0, pl.ds(base, tr + max_off), :]        # bf16
        taps = [win[off:off + tr, :] for _, off in tap_specs]
    else:
        taps = [xf_ref[0, ph, pl.ds(base, tr), :] for ph, _ in tap_specs]

    acc = jnp.dot(taps[0], w_ref[0], preferred_element_type=jnp.float32)
    for t in range(1, 9):
        acc = acc + jnp.dot(taps[t], w_ref[t],
                            preferred_element_type=jnp.float32)
    y = jnp.maximum(acc * s_ref[...] + t_ref[...], 0.0)
    o_ref[0] = (y * ss_ref[0]).astype(o_ref.dtype)


def conv3_residual_ds_kernel(y2_ref, xr_ref, w3_ref, s3_ref, t3_ref,
                             wd_ref, sd_ref, td_ref, o_ref):
    """fm_conv3+bn3+relu fused with downsample conv+bn and residual add+relu."""
    y = jnp.dot(y2_ref[...], w3_ref[...], preferred_element_type=jnp.float32)
    y = jnp.maximum(y * s3_ref[...] + t3_ref[...], 0.0)
    res = jnp.dot(xr_ref[...].astype(jnp.bfloat16), wd_ref[...],
                  preferred_element_type=jnp.float32)
    res = res * sd_ref[...] + td_ref[...]
    o_ref[...] = jnp.maximum(res + y, 0.0)


def conv3_residual_id_kernel(y2_ref, xr_ref, w3_ref, s3_ref, t3_ref, o_ref):
    """fm_conv3+bn3+relu fused with identity residual add+relu."""
    y = jnp.dot(y2_ref[...], w3_ref[...], preferred_element_type=jnp.float32)
    y = jnp.maximum(y * s3_ref[...] + t3_ref[...], 0.0)
    o_ref[...] = jnp.maximum(xr_ref[...] + y, 0.0)


# ----------------------------- Pallas wrappers -----------------------------

def pallas_conv1_pool(x3d, w1, s1, t1, row_tile):
    B, HW, Cin = x3d.shape
    Cmid = w1.shape[1]
    tr = _pick_tile(HW, row_tile)
    return pl.pallas_call(
        conv1_pool_kernel,
        out_shape=(jax.ShapeDtypeStruct((B, HW, Cmid), jnp.bfloat16),
                   jax.ShapeDtypeStruct((B, 1, Cin), jnp.float32)),
        grid=(B, HW // tr),
        in_specs=[
            pl.BlockSpec((1, tr, Cin), lambda b, r: (b, r, 0)),
            pl.BlockSpec((Cin, Cmid), lambda b, r: (0, 0)),
            pl.BlockSpec((1, Cmid), lambda b, r: (0, 0)),
            pl.BlockSpec((1, Cmid), lambda b, r: (0, 0)),
        ],
        out_specs=(pl.BlockSpec((1, tr, Cmid), lambda b, r: (b, r, 0)),
                   pl.BlockSpec((1, 1, Cin), lambda b, r: (b, 0, 0))),
        compiler_params=pltpu.CompilerParams(
            dimension_semantics=("parallel", "arbitrary"),
            vmem_limit_bytes=VMEM_LIMIT),
    )(x3d, w1, s1, t1)


def pallas_fsm(pooled, p, hw):
    B = pooled.shape[0]
    G = p["fsm_w3"].shape[1]
    return pl.pallas_call(
        functools.partial(fsm_kernel, inv_hw=1.0 / float(hw)),
        out_shape=jax.ShapeDtypeStruct((B, G), jnp.float32),
    )(pooled, p["fsm_w1"], p["fsm_b1"], p["fsm_s1"], p["fsm_t1"],
      p["fsm_w2"], p["fsm_b2"], p["fsm_s2"], p["fsm_t2"],
      p["fsm_w3"], p["fsm_b3"], p["fsm_s3"], p["fsm_t3"])


def pallas_grouped_conv(xf, w_taps, s2, t2, ss, n_out, row_tile,
                        tap_specs, single_phase):
    B, P, Nin, C = xf.shape
    tr = _pick_tile(n_out, row_tile)
    kern = functools.partial(grouped_conv_kernel, tr=tr, tap_specs=tap_specs,
                             single_phase=single_phase)
    return pl.pallas_call(
        kern,
        out_shape=jax.ShapeDtypeStruct((B, n_out, C), jnp.bfloat16),
        grid=(B, n_out // tr),
        in_specs=[
            pl.BlockSpec((1, P, Nin, C), lambda b, r: (b, 0, 0, 0)),
            pl.BlockSpec((9, C, C), lambda b, r: (0, 0, 0)),
            pl.BlockSpec((1, C), lambda b, r: (0, 0)),
            pl.BlockSpec((1, C), lambda b, r: (0, 0)),
            pl.BlockSpec((1, 1, C), lambda b, r: (b, 0, 0)),
        ],
        out_specs=pl.BlockSpec((1, tr, C), lambda b, r: (b, r, 0)),
        compiler_params=pltpu.CompilerParams(
            dimension_semantics=("parallel", "arbitrary"),
            vmem_limit_bytes=VMEM_LIMIT),
    )(xf, w_taps, s2, t2, ss)


def pallas_conv3_residual(y2, xr, p, row_tile):
    M, Cmid = y2.shape
    Cin = xr.shape[1]
    Cout = p["w3"].shape[1]
    tr = _pick_tile(M, row_tile)
    row = lambda i: (i, 0)
    const = lambda i: (0, 0)
    in_specs = [
        pl.BlockSpec((tr, Cmid), row),
        pl.BlockSpec((tr, Cin), row),
        pl.BlockSpec((Cmid, Cout), const),
        pl.BlockSpec((1, Cout), const),
        pl.BlockSpec((1, Cout), const),
    ]
    args = [y2, xr, p["w3"], p["bn3_scale"], p["bn3_shift"]]
    if p["wd"] is not None:
        kern = conv3_residual_ds_kernel
        in_specs += [pl.BlockSpec((Cin, Cout), const),
                     pl.BlockSpec((1, Cout), const),
                     pl.BlockSpec((1, Cout), const)]
        args += [p["wd"], p["bnd_scale"], p["bnd_shift"]]
    else:
        kern = conv3_residual_id_kernel
    return pl.pallas_call(
        kern,
        out_shape=jax.ShapeDtypeStruct((M, Cout), jnp.float32),
        grid=(M // tr,),
        in_specs=in_specs,
        out_specs=pl.BlockSpec((tr, Cout), row),
        compiler_params=pltpu.CompilerParams(
            dimension_semantics=("parallel",),
            vmem_limit_bytes=VMEM_LIMIT),
    )(*args)


# ----------------------------- forward (glue) -----------------------------

def mlfn_block_forward(x_nchw, p, stride, groups, row_tile=512):
    x = jnp.transpose(x_nchw, (0, 2, 3, 1)).astype(jnp.float32)   # NHWC
    B, H, W, Cin = x.shape
    Cmid = p["w1"].shape[1]
    Cout = p["w3"].shape[1]
    cpg = Cmid // groups
    Ho = (H - 1) // stride + 1
    Wo = (W - 1) // stride + 1

    # fm_conv1 + bn1 + relu, fused with fsm global-average-pool accumulation.
    y1, pooled = pallas_conv1_pool(x.reshape(B, H * W, Cin), p["w1"],
                                   p["bn1_scale"], p["bn1_shift"], row_tile)

    # fsm MLP on the pooled vector; expand gate to per-channel (group-major).
    s = pallas_fsm(pooled, p, H * W)                              # (B, groups)
    ss = jnp.repeat(s, cpg, axis=1).reshape(B, 1, Cmid).astype(jnp.float32)

    # fm_conv2 (grouped 3x3, pad=1) + bn2 + relu + gating.
    y1_nhwc = y1.reshape(B, H, W, Cmid)
    if stride == 1:
        Wv = W + 2
        # pad (1,2) rows / (1,1) cols: the extra bottom row absorbs the flat
        # row-offset overrun of the last tap; then flatten to one slab/batch.
        xp = jnp.pad(y1_nhwc, ((0, 0), (1, 2), (1, 1), (0, 0)))
        xf = xp.reshape(B, 1, (H + 3) * Wv, Cmid)
        tap_specs = [(0, dy * Wv + dx) for dy in range(3) for dx in range(3)]
        n_out = Ho * Wv                                           # incl. 2 junk cols/row
        y2f = pallas_grouped_conv(xf, p["w2_taps"], p["bn2_scale"],
                                  p["bn2_shift"], ss, n_out, row_tile,
                                  tap_specs, single_phase=True)
        y2 = y2f.reshape(B, Ho, Wv, Cmid)[:, :, :Wo, :].reshape(B * Ho * Wo, Cmid)
    else:
        # TODO(synk): stride>1 falls back to materializing the 9 strided tap
        # windows in XLA (same math, extra HBM traffic).
        xp = jnp.pad(y1_nhwc, ((0, 0), (1, 1), (1, 1), (0, 0)))
        taps = []
        for dy in range(3):
            for dx in range(3):
                sl = xp[:, dy:dy + (Ho - 1) * stride + 1:stride,
                           dx:dx + (Wo - 1) * stride + 1:stride, :]
                taps.append(sl.reshape(B, Ho * Wo, Cmid))
        xf = jnp.stack(taps, axis=1)
        tap_specs = [(t, 0) for t in range(9)]
        n_out = Ho * Wo
        y2f = pallas_grouped_conv(xf, p["w2_taps"], p["bn2_scale"],
                                  p["bn2_shift"], ss, n_out, row_tile,
                                  tap_specs, single_phase=False)
        y2 = y2f.reshape(B * Ho * Wo, Cmid)

    # fm_conv3 + bn3 + relu + (downsample conv+bn | identity) + add + relu.
    xr = x[:, ::stride, ::stride, :].reshape(B * Ho * Wo, Cin)
    if p["wd"] is None:
        assert Cin == Cout and stride == 1
    out = pallas_conv3_residual(y2, xr, p, row_tile)
    out = out.reshape(B, Ho, Wo, Cout).transpose(0, 3, 1, 2)      # back to NCHW
    return out, s.reshape(B, groups, 1, 1)


# --------------------------- parameter creation ---------------------------

def init_params(key, in_channels, out_channels, stride, fsm_channels, groups):
    mid = out_channels // 2
    f0, f1 = fsm_channels
    cpg = mid // groups
    keys = iter(jax.random.split(key, 48))

    def w(shape, scale=0.1):
        return scale * jax.random.normal(next(keys), shape, jnp.float32)

    def bn(c):
        return (1.0 + 0.1 * jax.random.normal(next(keys), (c,), jnp.float32),
                0.1 * jax.random.normal(next(keys), (c,), jnp.float32),
                0.1 * jax.random.normal(next(keys), (c,), jnp.float32),
                0.5 + 0.1 * jnp.abs(jax.random.normal(next(keys), (c,), jnp.float32)))

    raw = {
        "fm_w1": w((mid, in_channels)), "fm_bn1": bn(mid),
        "fm_w2": w((mid, cpg, 3, 3)), "fm_bn2": bn(mid),
        "fm_w3": w((out_channels, mid)), "fm_bn3": bn(out_channels),
        "fsm_w1": w((f0, in_channels)), "fsm_b1": w((f0,)), "fsm_bn1": bn(f0),
        "fsm_w2": w((f1, f0)), "fsm_b2": w((f1,)), "fsm_bn2": bn(f1),
        "fsm_w3": w((groups, f1)), "fsm_b3": w((groups,)), "fsm_bn3": bn(groups),
    }
    if in_channels != out_channels or stride > 1:
        raw["ds_w"] = w((out_channels, in_channels))
        raw["ds_bn"] = bn(out_channels)
    else:
        raw["ds_w"] = None
    return raw


def to_kernel_params(raw, groups):
    mid = raw["fm_w1"].shape[0]
    cpg = mid // groups
    bf = jnp.bfloat16
    p = {}
    p["w1"] = raw["fm_w1"].T.astype(bf)
    p["bn1_scale"], p["bn1_shift"] = _bn_scale_shift(*raw["fm_bn1"])

    # Block-diagonal dense equivalent of the grouped 3x3 weights, rearranged
    # into 9 tap matrices (Cin, Cout), stored bf16.
    w2_dense = jnp.zeros((mid, mid, 3, 3), jnp.float32)
    for g in range(groups):
        w2_dense = w2_dense.at[g * cpg:(g + 1) * cpg, g * cpg:(g + 1) * cpg].set(
            raw["fm_w2"][g * cpg:(g + 1) * cpg])
    p["w2_taps"] = jnp.transpose(w2_dense, (2, 3, 1, 0)).reshape(9, mid, mid).astype(bf)
    p["bn2_scale"], p["bn2_shift"] = _bn_scale_shift(*raw["fm_bn2"])

    p["w3"] = raw["fm_w3"].T.astype(bf)
    p["bn3_scale"], p["bn3_shift"] = _bn_scale_shift(*raw["fm_bn3"])

    p["fsm_w1"] = raw["fsm_w1"].T; p["fsm_b1"] = raw["fsm_b1"].reshape(1, -1)
    p["fsm_s1"], p["fsm_t1"] = _bn_scale_shift(*raw["fsm_bn1"])
    p["fsm_w2"] = raw["fsm_w2"].T; p["fsm_b2"] = raw["fsm_b2"].reshape(1, -1)
    p["fsm_s2"], p["fsm_t2"] = _bn_scale_shift(*raw["fsm_bn2"])
    p["fsm_w3"] = raw["fsm_w3"].T; p["fsm_b3"] = raw["fsm_b3"].reshape(1, -1)
    p["fsm_s3"], p["fsm_t3"] = _bn_scale_shift(*raw["fsm_bn3"])

    if raw["ds_w"] is not None:
        p["wd"] = raw["ds_w"].T.astype(bf)
        p["bnd_scale"], p["bnd_shift"] = _bn_scale_shift(*raw["ds_bn"])
    else:
        p["wd"] = None
    return p


# ------------------------- pure-JAX reference (NCHW) ------------------------

def reference_forward(x, raw, stride, groups):
    hp = lax.Precision.HIGHEST

    def conv(v, w, st=1, padding="VALID", fgc=1):
        return lax.conv_general_dilated(
            v, w, (st, st), padding,
            dimension_numbers=("NCHW", "OIHW", "NCHW"),
            feature_group_count=fgc, precision=hp)

    def bn(v, params):
        g, b, m, var = params
        return ((v - m[None, :, None, None]) /
                jnp.sqrt(var[None, :, None, None] + EPS)
                * g[None, :, None, None] + b[None, :, None, None])

    def to4(w):
        return w[:, :, None, None]

    pooled = jnp.mean(x, axis=(2, 3), keepdims=True)
    h = conv(pooled, to4(raw["fsm_w1"])) + raw["fsm_b1"][None, :, None, None]
    h = jax.nn.relu(bn(h, raw["fsm_bn1"]))
    h = conv(h, to4(raw["fsm_w2"])) + raw["fsm_b2"][None, :, None, None]
    h = jax.nn.relu(bn(h, raw["fsm_bn2"]))
    h = conv(h, to4(raw["fsm_w3"])) + raw["fsm_b3"][None, :, None, None]
    s = jax.nn.sigmoid(bn(h, raw["fsm_bn3"]))

    y = jax.nn.relu(bn(conv(x, to4(raw["fm_w1"])), raw["fm_bn1"]))
    y = jax.nn.relu(bn(conv(y, raw["fm_w2"], st=stride,
                            padding=[(1, 1), (1, 1)], fgc=groups), raw["fm_bn2"]))
    b_, c_ = y.shape[0], y.shape[1]
    n = c_ // groups
    ss = jnp.tile(s, (1, n, 1, 1))
    ss = ss.reshape(b_, n, groups, 1, 1).transpose(0, 2, 1, 3, 4).reshape(b_, c_, 1, 1)
    y = ss * y
    y = jax.nn.relu(bn(conv(y, to4(raw["fm_w3"])), raw["fm_bn3"]))

    residual = x
    if raw["ds_w"] is not None:
        residual = bn(conv(x, to4(raw["ds_w"]), st=stride), raw["ds_bn"])
    return jax.nn.relu(residual + y), s


# ----------------------------------- main -----------------------------------

if __name__ == "__main__":
    B, Cin, H, W = 2, 64, 16, 16
    Cout, stride, fsm_channels, groups = 128, 1, (32, 32), 32

    key = jax.random.PRNGKey(0)
    kx, kp = jax.random.split(key)
    x = jax.random.normal(kx, (B, Cin, H, W), jnp.float32)

    raw = init_params(kp, Cin, Cout, stride, fsm_channels, groups)
    params = to_kernel_params(raw, groups)

    # row_tile=128 keeps multi-step grids (and the pooled accumulator path)
    # exercised at these small test shapes; use 512-1024 at production sizes.
    fwd = jax.jit(functools.partial(mlfn_block_forward, stride=stride,
                                    groups=groups, row_tile=128))
    out, s = fwd(x, params)
    out = jax.block_until_ready(out)
    s = jax.block_until_ready(s)

    Ho = (H - 1) // stride + 1
    Wo = (W - 1) // stride + 1
    assert out.shape == (B, Cout, Ho, Wo)
    assert s.shape == (B, groups, 1, 1)

    ref_out, ref_s = reference_forward(x, raw, stride, groups)
    assert jnp.allclose(s, ref_s, atol=2e-2, rtol=2e-2), \
        float(jnp.max(jnp.abs(s - ref_s)))
    assert jnp.allclose(out, ref_out, atol=5e-2, rtol=5e-2), \
        float(jnp.max(jnp.abs(out - ref_out)))

    print("KERNEL_OK")
</pallas_src>

<mosaic_0001>
module attributes {stable_mosaic.version = 11 : i64} {
  func.func @fsm_kernel(%arg0: memref<2x1x64xf32, #tpu.memory_space<vmem>>, %arg1: memref<64x32xf32, #tpu.memory_space<vmem>>, %arg2: memref<1x32xf32, #tpu.memory_space<vmem>>, %arg3: memref<1x32xf32, #tpu.memory_space<vmem>>, %arg4: memref<1x32xf32, #tpu.memory_space<vmem>>, %arg5: memref<32x32xf32, #tpu.memory_space<vmem>>, %arg6: memref<1x32xf32, #tpu.memory_space<vmem>>, %arg7: memref<1x32xf32, #tpu.memory_space<vmem>>, %arg8: memref<1x32xf32, #tpu.memory_space<vmem>>, %arg9: memref<32x32xf32, #tpu.memory_space<vmem>>, %arg10: memref<1x32xf32, #tpu.memory_space<vmem>>, %arg11: memref<1x32xf32, #tpu.memory_space<vmem>>, %arg12: memref<1x32xf32, #tpu.memory_space<vmem>>, %arg13: memref<2x32xf32, #tpu.memory_space<vmem>>) attributes {dimension_semantics = [], scalar_prefetch = 0 : i64, scratch_operands = 0 : i64, tpu.core_type = #tpu.core_type<tc>} {
    %c0 = arith.constant 0 : index
    %c0_0 = arith.constant 0 : index
    %c0_1 = arith.constant 0 : index
    %0 = vector.load %arg0[%c0, %c0_0, %c0_1] : memref<2x1x64xf32, #tpu.memory_space<vmem>>, vector<2x1x64xf32>
    %cst = arith.constant dense<0.000000e+00> : vector<2x64xf32>
    %1 = vector.multi_reduction <add>, %0, %cst [1] : vector<2x1x64xf32> to vector<2x64xf32>
    %cst_2 = arith.constant 3.906250e-03 : f32
    %2 = vector.broadcast %cst_2 : f32 to vector<2x64xf32>
    %3 = arith.mulf %1, %2 : vector<2x64xf32>
    %c0_3 = arith.constant 0 : index
    %c0_4 = arith.constant 0 : index
    %4 = vector.load %arg1[%c0_3, %c0_4] : memref<64x32xf32, #tpu.memory_space<vmem>>, vector<64x32xf32>
    %cst_5 = arith.constant dense<0.000000e+00> : vector<2x32xf32>
    %5 = tpu.matmul %3, %4, %cst_5 {dimension_numbers = #tpu.dot_dimension_numbers<[1], [0], [0], [1], [0, 0, 1, 1], [], []>} : vector<2x64xf32>, vector<64x32xf32>, vector<2x32xf32> -> vector<2x32xf32>
    %c0_6 = arith.constant 0 : index
    %c0_7 = arith.constant 0 : index
    %6 = vector.load %arg2[%c0_6, %c0_7] : memref<1x32xf32, #tpu.memory_space<vmem>>, vector<1x32xf32>
    %7 = vector.broadcast %6 : vector<1x32xf32> to vector<2x32xf32>
    %8 = arith.addf %5, %7 : vector<2x32xf32>
    %c0_8 = arith.constant 0 : index
    %c0_9 = arith.constant 0 : index
    %9 = vector.load %arg3[%c0_8, %c0_9] : memref<1x32xf32, #tpu.memory_space<vmem>>, vector<1x32xf32>
    %10 = vector.broadcast %9 : vector<1x32xf32> to vector<2x32xf32>
    %11 = arith.mulf %8, %10 : vector<2x32xf32>
    %c0_10 = arith.constant 0 : index
    %c0_11 = arith.constant 0 : index
    %12 = vector.load %arg4[%c0_10, %c0_11] : memref<1x32xf32, #tpu.memory_space<vmem>>, vector<1x32xf32>
    %13 = vector.broadcast %12 : vector<1x32xf32> to vector<2x32xf32>
    %14 = arith.addf %11, %13 : vector<2x32xf32>
    %cst_12 = arith.constant 0.000000e+00 : f32
    %15 = vector.broadcast %cst_12 : f32 to vector<2x32xf32>
    %16 = arith.maximumf %14, %15 : vector<2x32xf32>
    %c0_13 = arith.constant 0 : index
    %c0_14 = arith.constant 0 : index
    %17 = vector.load %arg5[%c0_13, %c0_14] : memref<32x32xf32, #tpu.memory_space<vmem>>, vector<32x32xf32>
    %cst_15 = arith.constant dense<0.000000e+00> : vector<2x32xf32>
    %18 = tpu.matmul %16, %17, %cst_15 {dimension_numbers = #tpu.dot_dimension_numbers<[1], [0], [0], [1], [0, 0, 1, 1], [], []>} : vector<2x32xf32>, vector<32x32xf32>, vector<2x32xf32> -> vector<2x32xf32>
    %c0_16 = arith.constant 0 : index
    %c0_17 = arith.constant 0 : index
    %19 = vector.load %arg6[%c0_16, %c0_17] : memref<1x32xf32, #tpu.memory_space<vmem>>, vector<1x32xf32>
    %20 = vector.broadcast %19 : vector<1x32xf32> to vector<2x32xf32>
    %21 = arith.addf %18, %20 : vector<2x32xf32>
    %c0_18 = arith.constant 0 : index
    %c0_19 = arith.constant 0 : index
    %22 = vector.load %arg7[%c0_18, %c0_19] : memref<1x32xf32, #tpu.memory_space<vmem>>, vector<1x32xf32>
    %23 = vector.broadcast %22 : vector<1x32xf32> to vector<2x32xf32>
    %24 = arith.mulf %21, %23 : vector<2x32xf32>
    %c0_20 = arith.constant 0 : index
    %c0_21 = arith.constant 0 : index
    %25 = vector.load %arg8[%c0_20, %c0_21] : memref<1x32xf32, #tpu.memory_space<vmem>>, vector<1x32xf32>
    %26 = vector.broadcast %25 : vector<1x32xf32> to vector<2x32xf32>
    %27 = arith.addf %24, %26 : vector<2x32xf32>
    %cst_22 = arith.constant 0.000000e+00 : f32
    %28 = vector.broadcast %cst_22 : f32 to vector<2x32xf32>
    %29 = arith.maximumf %27, %28 : vector<2x32xf32>
    %c0_23 = arith.constant 0 : index
    %c0_24 = arith.constant 0 : index
    %30 = vector.load %arg9[%c0_23, %c0_24] : memref<32x32xf32, #tpu.memory_space<vmem>>, vector<32x32xf32>
    %cst_25 = arith.constant dense<0.000000e+00> : vector<2x32xf32>
    %31 = tpu.matmul %29, %30, %cst_25 {dimension_numbers = #tpu.dot_dimension_numbers<[1], [0], [0], [1], [0, 0, 1, 1], [], []>} : vector<2x32xf32>, vector<32x32xf32>, vector<2x32xf32> -> vector<2x32xf32>
    %c0_26 = arith.constant 0 : index
    %c0_27 = arith.constant 0 : index
    %32 = vector.load %arg10[%c0_26, %c0_27] : memref<1x32xf32, #tpu.memory_space<vmem>>, vector<1x32xf32>
    %33 = vector.broadcast %32 : vector<1x32xf32> to vector<2x32xf32>
    %34 = arith.addf %31, %33 : vector<2x32xf32>
    %c0_28 = arith.constant 0 : index
    %c0_29 = arith.constant 0 : index
    %35 = vector.load %arg11[%c0_28, %c0_29] : memref<1x32xf32, #tpu.memory_space<vmem>>, vector<1x32xf32>
    %36 = vector.broadcast %35 : vector<1x32xf32> to vector<2x32xf32>
    %37 = arith.mulf %34, %36 : vector<2x32xf32>
    %c0_30 = arith.constant 0 : index
    %c0_31 = arith.constant 0 : index
    %38 = vector.load %arg12[%c0_30, %c0_31] : memref<1x32xf32, #tpu.memory_space<vmem>>, vector<1x32xf32>
    %39 = vector.broadcast %38 : vector<1x32xf32> to vector<2x32xf32>
    %40 = arith.addf %37, %39 : vector<2x32xf32>
    %41 = arith.negf %40 : vector<2x32xf32>
    %42 = math.exp %41 : vector<2x32xf32>
    %cst_32 = arith.constant 1.000000e+00 : f32
    %43 = vector.broadcast %cst_32 : f32 to vector<2x32xf32>
    %44 = arith.addf %43, %42 : vector<2x32xf32>
    %45 = arith.divf %43, %44 : vector<2x32xf32>
    %c0_33 = arith.constant 0 : index
    %c0_34 = arith.constant 0 : index
    %46 = vector.load %arg13[%c0_33, %c0_34] : memref<2x32xf32, #tpu.memory_space<vmem>>, vector<2x32xf32>
    tpu.vector_store %arg13[%c0_33, %c0_34], %45 {strides = array<i32>} : memref<2x32xf32, #tpu.memory_space<vmem>>, vector<2x32xf32>,
    return
  }
}

module attributes {stable_mosaic.version = 11 : i64} {
  func.func @conv1_pool_kernel(%arg0: i32, %arg1: i32, %arg2: memref<1x128x64xf32, #tpu.memory_space<vmem>>, %arg3: memref<64x64xbf16, #tpu.memory_space<vmem>>, %arg4: memref<1x64xf32, #tpu.memory_space<vmem>>, %arg5: memref<1x64xf32, #tpu.memory_space<vmem>>, %arg6: memref<1x128x64xbf16, #tpu.memory_space<vmem>>, %arg7: memref<1x1x64xf32, #tpu.memory_space<vmem>>) attributes {dimension_semantics = [#tpu.dimension_semantics<parallel>, #tpu.dimension_semantics<arbitrary>], iteration_bounds = array<i64: 2, 2>, scalar_prefetch = 0 : i64, scratch_operands = 0 : i64, tpu.core_type = #tpu.core_type<tc>, window_params = [{transform_indices = @transform_0, window_bounds = array<i64: 1, 128, 64>}, {pipeline_mode = #tpu.pipeline_mode<synchronous>, transform_indices = @transform_1, window_bounds = array<i64: 64, 64>}, {pipeline_mode = #tpu.pipeline_mode<synchronous>, transform_indices = @transform_2, window_bounds = array<i64: 1, 64>}, {pipeline_mode = #tpu.pipeline_mode<synchronous>, transform_indices = @transform_3, window_bounds = array<i64: 1, 64>}, {transform_indices = @transform_4, window_bounds = array<i64: 1, 128, 64>}, {transform_indices = @transform_5, window_bounds = array<i64: 1, 1, 64>}]} {
    %c0 = arith.constant 0 : index
    %c0_0 = arith.constant 0 : index
    %c0_1 = arith.constant 0 : index
    %0 = vector.load %arg2[%c0, %c0_0, %c0_1] : memref<1x128x64xf32, #tpu.memory_space<vmem>>, vector<1x128x64xf32>
    %1 = vector.shape_cast %0 : vector<1x128x64xf32> to vector<128x64xf32>
    %2 = arith.truncf %1 : vector<128x64xf32> to vector<128x64xbf16>
    %c0_2 = arith.constant 0 : index
    %c0_3 = arith.constant 0 : index
    %3 = vector.load %arg3[%c0_2, %c0_3] : memref<64x64xbf16, #tpu.memory_space<vmem>>, vector<64x64xbf16>
    %cst = arith.constant dense<0.000000e+00> : vector<128x64xf32>
    %4 = tpu.matmul %2, %3, %cst {dimension_numbers = #tpu.dot_dimension_numbers<[1], [0], [0], [1], [0, 0, 1, 1], [], []>} : vector<128x64xbf16>, vector<64x64xbf16>, vector<128x64xf32> -> vector<128x64xf32>
    %c0_4 = arith.constant 0 : index
    %c0_5 = arith.constant 0 : index
    %5 = vector.load %arg4[%c0_4, %c0_5] : memref<1x64xf32, #tpu.memory_space<vmem>>, vector<1x64xf32>
    %6 = vector.broadcast %5 : vector<1x64xf32> to vector<128x64xf32>
    %7 = arith.mulf %4, %6 : vector<128x64xf32>
    %c0_6 = arith.constant 0 : index
    %c0_7 = arith.constant 0 : index
    %8 = vector.load %arg5[%c0_6, %c0_7] : memref<1x64xf32, #tpu.memory_space<vmem>>, vector<1x64xf32>
    %9 = vector.broadcast %8 : vector<1x64xf32> to vector<128x64xf32>
    %10 = arith.addf %7, %9 : vector<128x64xf32>
    %cst_8 = arith.constant 0.000000e+00 : f32
    %11 = vector.broadcast %cst_8 : f32 to vector<128x64xf32>
    %12 = arith.maximumf %10, %11 : vector<128x64xf32>
    %13 = arith.truncf %12 : vector<128x64xf32> to vector<128x64xbf16>
    %c0_9 = arith.constant 0 : index
    %c0_10 = arith.constant 0 : index
    %c0_11 = arith.constant 0 : index
    %14 = vector.load %arg6[%c0_9, %c0_10, %c0_11] : memref<1x128x64xbf16, #tpu.memory_space<vmem>>, vector<1x128x64xbf16>
    %15 = vector.shape_cast %14 : vector<1x128x64xbf16> to vector<128x64xbf16>
    %16 = vector.shape_cast %13 : vector<128x64xbf16> to vector<1x128x64xbf16>
    tpu.vector_store %arg6[%c0_9, %c0_10, %c0_11], %16 {strides = array<i32>} : memref<1x128x64xbf16, #tpu.memory_space<vmem>>, vector<1x128x64xbf16>,
    %c0_i32 = arith.constant 0 : i32
    %17 = arith.cmpi eq, %arg1, %c0_i32 : i32
    %18 = arith.extui %17 : i1 to i32
    %c0_i32_12 = arith.constant 0 : i32
    %19 = arith.cmpi ne, %18, %c0_i32_12 : i32
    scf.if %19 {
      %cst_20 = arith.constant 0.000000e+00 : f32
      %28 = vector.broadcast %cst_20 : f32 to vector<1x1x64xf32>
      %c0_21 = arith.constant 0 : index
      %c0_22 = arith.constant 0 : index
      %c0_23 = arith.constant 0 : index
      %29 = vector.load %arg7[%c0_21, %c0_22, %c0_23] : memref<1x1x64xf32, #tpu.memory_space<vmem>>, vector<1x1x64xf32>
      tpu.vector_store %arg7[%c0_21, %c0_22, %c0_23], %28 {strides = array<i32>} : memref<1x1x64xf32, #tpu.memory_space<vmem>>, vector<1x1x64xf32>,
    } else {
    }
    %c0_13 = arith.constant 0 : index
    %c0_14 = arith.constant 0 : index
    %c0_15 = arith.constant 0 : index
    %20 = vector.load %arg7[%c0_13, %c0_14, %c0_15] : memref<1x1x64xf32, #tpu.memory_space<vmem>>, vector<1x1x64xf32>
    %21 = vector.shape_cast %20 : vector<1x1x64xf32> to vector<1x64xf32>
    %cst_16 = arith.constant dense<0.000000e+00> : vector<64xf32>
    %22 = vector.multi_reduction <add>, %1, %cst_16 [0] : vector<128x64xf32> to vector<64xf32>
    %23 = vector.shape_cast %22 : vector<64xf32> to vector<1x64xf32>
    %24 = arith.addf %21, %23 : vector<1x64xf32>
    %c0_17 = arith.constant 0 : index
    %c0_18 = arith.constant 0 : index
    %c0_19 = arith.constant 0 : index
    %25 = vector.load %arg7[%c0_17, %c0_18, %c0_19] : memref<1x1x64xf32, #tpu.memory_space<vmem>>, vector<1x1x64xf32>
    %26 = vector.shape_cast %25 : vector<1x1x64xf32> to vector<1x64xf32>
    %27 = vector.shape_cast %24 : vector<1x64xf32> to vector<1x1x64xf32>
    tpu.vector_store %arg7[%c0_17, %c0_18, %c0_19], %27 {strides = array<i32>} : memref<1x1x64xf32, #tpu.memory_space<vmem>>, vector<1x1x64xf32>,
    return
  }
  func.func @transform_0(%arg0: i32, %arg1: i32) -> (i32, i32, i32) {
    %c0_i32 = arith.constant 0 : i32
    %c0_i32_0 = arith.constant 0 : i32
    return %arg0, %arg1, %c0_i32 : i32, i32, i32
  }
  func.func @transform_1(%arg0: i32, %arg1: i32) -> (i32, i32) {
    %c0_i32 = arith.constant 0 : i32
    %c0_i32_0 = arith.constant 0 : i32
    %c0_i32_1 = arith.constant 0 : i32
    return %c0_i32, %c0_i32_0 : i32, i32
  }
  func.func @transform_2(%arg0: i32, %arg1: i32) -> (i32, i32) {
    %c0_i32 = arith.constant 0 : i32
    %c0_i32_0 = arith.constant 0 : i32
    %c0_i32_1 = arith.constant 0 : i32
    return %c0_i32, %c0_i32_0 : i32, i32
  }
  func.func @transform_3(%arg0: i32, %arg1: i32) -> (i32, i32) {
    %c0_i32 = arith.constant 0 : i32
    %c0_i32_0 = arith.constant 0 : i32
    %c0_i32_1 = arith.constant 0 : i32
    return %c0_i32, %c0_i32_0 : i32, i32
  }
  func.func @transform_4(%arg0: i32, %arg1: i32) -> (i32, i32, i32) {
    %c0_i32 = arith.constant 0 : i32
    %c0_i32_0 = arith.constant 0 : i32
    return %arg0, %arg1, %c0_i32 : i32, i32, i32
  }
  func.func @transform_5(%arg0: i32, %arg1: i32) -> (i32, i32, i32) {
    %c0_i32 = arith.constant 0 : i32
    %c0_i32_0 = arith.constant 0 : i32
    %c0_i32_1 = arith.constant 0 : i32
    return %arg0, %c0_i32, %c0_i32_0 : i32, i32, i32
  }
}

module attributes {stable_mosaic.version = 11 : i64} {
  func.func @grouped_conv_kernel(%arg0: i32, %arg1: i32, %arg2: memref<1x1x342x64xbf16, #tpu.memory_space<vmem>>, %arg3: memref<9x64x64xbf16, #tpu.memory_space<vmem>>, %arg4: memref<1x64xf32, #tpu.memory_space<vmem>>, %arg5: memref<1x64xf32, #tpu.memory_space<vmem>>, %arg6: memref<1x1x64xf32, #tpu.memory_space<vmem>>, %arg7: memref<1x96x64xbf16, #tpu.memory_space<vmem>>) attributes {dimension_semantics = [#tpu.dimension_semantics<parallel>, #tpu.dimension_semantics<arbitrary>], iteration_bounds = array<i64: 2, 3>, scalar_prefetch = 0 : i64, scratch_operands = 0 : i64, tpu.core_type = #tpu.core_type<tc>, window_params = [{transform_indices = @transform_0, window_bounds = array<i64: 1, 1, 342, 64>}, {pipeline_mode = #tpu.pipeline_mode<synchronous>, transform_indices = @transform_1, window_bounds = array<i64: 9, 64, 64>}, {pipeline_mode = #tpu.pipeline_mode<synchronous>, transform_indices = @transform_2, window_bounds = array<i64: 1, 64>}, {pipeline_mode = #tpu.pipeline_mode<synchronous>, transform_indices = @transform_3, window_bounds = array<i64: 1, 64>}, {transform_indices = @transform_4, window_bounds = array<i64: 1, 1, 64>}, {transform_indices = @transform_5, window_bounds = array<i64: 1, 96, 64>}]} {
    %c96_i32 = arith.constant 96 : i32
    %0 = arith.muli %arg1, %c96_i32 : i32
    %1 = tpu.assume_multiple %0, 8 : i32
    %c0 = arith.constant 0 : index
    %c0_0 = arith.constant 0 : index
    %2 = arith.index_cast %1 : i32 to index
    %c0_1 = arith.constant 0 : index
    %3 = vector.load %arg2[%c0, %c0_0, %2, %c0_1] : memref<1x1x342x64xbf16, #tpu.memory_space<vmem>>, vector<1x1x134x64xbf16>
    %4 = vector.shape_cast %3 : vector<1x1x134x64xbf16> to vector<134x64xbf16>
    %5 = vector.extract_strided_slice %4 {offsets = [0, 0], sizes = [96, 64], strides = [1, 1]} : vector<134x64xbf16> to vector<96x64xbf16>
    %6 = vector.extract_strided_slice %4 {offsets = [1, 0], sizes = [96, 64], strides = [1, 1]} : vector<134x64xbf16> to vector<96x64xbf16>
    %7 = vector.extract_strided_slice %4 {offsets = [2, 0], sizes = [96, 64], strides = [1, 1]} : vector<134x64xbf16> to vector<96x64xbf16>
    %8 = vector.extract_strided_slice %4 {offsets = [18, 0], sizes = [96, 64], strides = [1, 1]} : vector<134x64xbf16> to vector<96x64xbf16>
    %9 = vector.extract_strided_slice %4 {offsets = [19, 0], sizes = [96, 64], strides = [1, 1]} : vector<134x64xbf16> to vector<96x64xbf16>
    %10 = vector.extract_strided_slice %4 {offsets = [20, 0], sizes = [96, 64], strides = [1, 1]} : vector<134x64xbf16> to vector<96x64xbf16>
    %11 = vector.extract_strided_slice %4 {offsets = [36, 0], sizes = [96, 64], strides = [1, 1]} : vector<134x64xbf16> to vector<96x64xbf16>
    %12 = vector.extract_strided_slice %4 {offsets = [37, 0], sizes = [96, 64], strides = [1, 1]} : vector<134x64xbf16> to vector<96x64xbf16>
    %13 = vector.extract_strided_slice %4 {offsets = [38, 0], sizes = [96, 64], strides = [1, 1]} : vector<134x64xbf16> to vector<96x64xbf16>
    %c0_2 = arith.constant 0 : index
    %c0_3 = arith.constant 0 : index
    %c0_4 = arith.constant 0 : index
    %14 = vector.load %arg3[%c0_2, %c0_3, %c0_4] : memref<9x64x64xbf16, #tpu.memory_space<vmem>>, vector<1x64x64xbf16>
    %15 = vector.shape_cast %14 : vector<1x64x64xbf16> to vector<64x64xbf16>
    %cst = arith.constant dense<0.000000e+00> : vector<96x64xf32>
    %16 = tpu.matmul %5, %15, %cst {dimension_numbers = #tpu.dot_dimension_numbers<[1], [0], [0], [1], [0, 0, 1, 1], [], []>} : vector<96x64xbf16>, vector<64x64xbf16>, vector<96x64xf32> -> vector<96x64xf32>
    %c1 = arith.constant 1 : index
    %c0_5 = arith.constant 0 : index
    %c0_6 = arith.constant 0 : index
    %17 = vector.load %arg3[%c1, %c0_5, %c0_6] : memref<9x64x64xbf16, #tpu.memory_space<vmem>>, vector<1x64x64xbf16>
    %18 = vector.shape_cast %17 : vector<1x64x64xbf16> to vector<64x64xbf16>
    %cst_7 = arith.constant dense<0.000000e+00> : vector<96x64xf32>
    %19 = tpu.matmul %6, %18, %cst_7 {dimension_numbers = #tpu.dot_dimension_numbers<[1], [0], [0], [1], [0, 0, 1, 1], [], []>} : vector<96x64xbf16>, vector<64x64xbf16>, vector<96x64xf32> -> vector<96x64xf32>
    %20 = arith.addf %16, %19 : vector<96x64xf32>
    %c2 = arith.constant 2 : index
    %c0_8 = arith.constant 0 : index
    %c0_9 = arith.constant 0 : index
    %21 = vector.load %arg3[%c2, %c0_8, %c0_9] : memref<9x64x64xbf16, #tpu.memory_space<vmem>>, vector<1x64x64xbf16>
    %22 = vector.shape_cast %21 : vector<1x64x64xbf16> to vector<64x64xbf16>
    %cst_10 = arith.constant dense<0.000000e+00> : vector<96x64xf32>
    %23 = tpu.matmul %7, %22, %cst_10 {dimension_numbers = #tpu.dot_dimension_numbers<[1], [0], [0], [1], [0, 0, 1, 1], [], []>} : vector<96x64xbf16>, vector<64x64xbf16>, vector<96x64xf32> -> vector<96x64xf32>
    %24 = arith.addf %20, %23 : vector<96x64xf32>
    %c3 = arith.constant 3 : index
    %c0_11 = arith.constant 0 : index
    %c0_12 = arith.constant 0 : index
    %25 = vector.load %arg3[%c3, %c0_11, %c0_12] : memref<9x64x64xbf16, #tpu.memory_space<vmem>>, vector<1x64x64xbf16>
    %26 = vector.shape_cast %25 : vector<1x64x64xbf16> to vector<64x64xbf16>
    %cst_13 = arith.constant dense<0.000000e+00> : vector<96x64xf32>
    %27 = tpu.matmul %8, %26, %cst_13 {dimension_numbers = #tpu.dot_dimension_numbers<[1], [0], [0], [1], [0, 0, 1, 1], [], []>} : vector<96x64xbf16>, vector<64x64xbf16>, vector<96x64xf32> -> vector<96x64xf32>
    %28 = arith.addf %24, %27 : vector<96x64xf32>
    %c4 = arith.constant 4 : index
    %c0_14 = arith.constant 0 : index
    %c0_15 = arith.constant 0 : index
    %29 = vector.load %arg3[%c4, %c0_14, %c0_15] : memref<9x64x64xbf16, #tpu.memory_space<vmem>>, vector<1x64x64xbf16>
    %30 = vector.shape_cast %29 : vector<1x64x64xbf16> to vector<64x64xbf16>
    %cst_16 = arith.constant dense<0.000000e+00> : vector<96x64xf32>
    %31 = tpu.matmul %9, %30, %cst_16 {dimension_numbers = #tpu.dot_dimension_numbers<[1], [0], [0], [1], [0, 0, 1, 1], [], []>} : vector<96x64xbf16>, vector<64x64xbf16>, vector<96x64xf32> -> vector<96x64xf32>
    %32 = arith.addf %28, %31 : vector<96x64xf32>
    %c5 = arith.constant 5 : index
    %c0_17 = arith.constant 0 : index
    %c0_18 = arith.constant 0 : index
    %33 = vector.load %arg3[%c5, %c0_17, %c0_18] : memref<9x64x64xbf16, #tpu.memory_space<vmem>>, vector<1x64x64xbf16>
    %34 = vector.shape_cast %33 : vector<1x64x64xbf16> to vector<64x64xbf16>
    %cst_19 = arith.constant dense<0.000000e+00> : vector<96x64xf32>
    %35 = tpu.matmul %10, %34, %cst_19 {dimension_numbers = #tpu.dot_dimension_numbers<[1], [0], [0], [1], [0, 0, 1, 1], [], []>} : vector<96x64xbf16>, vector<64x64xbf16>, vector<96x64xf32> -> vector<96x64xf32>
    %36 = arith.addf %32, %35 : vector<96x64xf32>
    %c6 = arith.constant 6 : index
    %c0_20 = arith.constant 0 : index
    %c0_21 = arith.constant 0 : index
    %37 = vector.load %arg3[%c6, %c0_20, %c0_21] : memref<9x64x64xbf16, #tpu.memory_space<vmem>>, vector<1x64x64xbf16>
    %38 = vector.shape_cast %37 : vector<1x64x64xbf16> to vector<64x64xbf16>
    %cst_22 = arith.constant dense<0.000000e+00> : vector<96x64xf32>
    %39 = tpu.matmul %11, %38, %cst_22 {dimension_numbers = #tpu.dot_dimension_numbers<[1], [0], [0], [1], [0, 0, 1, 1], [], []>} : vector<96x64xbf16>, vector<64x64xbf16>, vector<96x64xf32> -> vector<96x64xf32>
    %40 = arith.addf %36, %39 : vector<96x64xf32>
    %c7 = arith.constant 7 : index
    %c0_23 = arith.constant 0 : index
    %c0_24 = arith.constant 0 : index
    %41 = vector.load %arg3[%c7, %c0_23, %c0_24] : memref<9x64x64xbf16, #tpu.memory_space<vmem>>, vector<1x64x64xbf16>
    %42 = vector.shape_cast %41 : vector<1x64x64xbf16> to vector<64x64xbf16>
    %cst_25 = arith.constant dense<0.000000e+00> : vector<96x64xf32>
    %43 = tpu.matmul %12, %42, %cst_25 {dimension_numbers = #tpu.dot_dimension_numbers<[1], [0], [0], [1], [0, 0, 1, 1], [], []>} : vector<96x64xbf16>, vector<64x64xbf16>, vector<96x64xf32> -> vector<96x64xf32>
    %44 = arith.addf %40, %43 : vector<96x64xf32>
    %c8 = arith.constant 8 : index
    %c0_26 = arith.constant 0 : index
    %c0_27 = arith.constant 0 : index
    %45 = vector.load %arg3[%c8, %c0_26, %c0_27] : memref<9x64x64xbf16, #tpu.memory_space<vmem>>, vector<1x64x64xbf16>
    %46 = vector.shape_cast %45 : vector<1x64x64xbf16> to vector<64x64xbf16>
    %cst_28 = arith.constant dense<0.000000e+00> : vector<96x64xf32>
    %47 = tpu.matmul %13, %46, %cst_28 {dimension_numbers = #tpu.dot_dimension_numbers<[1], [0], [0], [1], [0, 0, 1, 1], [], []>} : vector<96x64xbf16>, vector<64x64xbf16>, vector<96x64xf32> -> vector<96x64xf32>
    %48 = arith.addf %44, %47 : vector<96x64xf32>
    %c0_29 = arith.constant 0 : index
    %c0_30 = arith.constant 0 : index
    %49 = vector.load %arg4[%c0_29, %c0_30] : memref<1x64xf32, #tpu.memory_space<vmem>>, vector<1x64xf32>
    %50 = vector.broadcast %49 : vector<1x64xf32> to vector<96x64xf32>
    %51 = arith.mulf %48, %50 : vector<96x64xf32>
    %c0_31 = arith.constant 0 : index
    %c0_32 = arith.constant 0 : index
    %52 = vector.load %arg5[%c0_31, %c0_32] : memref<1x64xf32, #tpu.memory_space<vmem>>, vector<1x64xf32>
    %53 = vector.broadcast %52 : vector<1x64xf32> to vector<96x64xf32>
    %54 = arith.addf %51, %53 : vector<96x64xf32>
    %cst_33 = arith.constant 0.000000e+00 : f32
    %55 = vector.broadcast %cst_33 : f32 to vector<96x64xf32>
    %56 = arith.maximumf %54, %55 : vector<96x64xf32>
    %c0_34 = arith.constant 0 : index
    %c0_35 = arith.constant 0 : index
    %c0_36 = arith.constant 0 : index
    %57 = vector.load %arg6[%c0_34, %c0_35, %c0_36] : memref<1x1x64xf32, #tpu.memory_space<vmem>>, vector<1x1x64xf32>
    %58 = vector.shape_cast %57 : vector<1x1x64xf32> to vector<1x64xf32>
    %59 = vector.broadcast %58 : vector<1x64xf32> to vector<96x64xf32>
    %60 = arith.mulf %56, %59 : vector<96x64xf32>
    %61 = arith.truncf %60 : vector<96x64xf32> to vector<96x64xbf16>
    %c0_37 = arith.constant 0 : index
    %c0_38 = arith.constant 0 : index
    %c0_39 = arith.constant 0 : index
    %62 = vector.load %arg7[%c0_37, %c0_38, %c0_39] : memref<1x96x64xbf16, #tpu.memory_space<vmem>>, vector<1x96x64xbf16>
    %63 = vector.shape_cast %62 : vector<1x96x64xbf16> to vector<96x64xbf16>
    %64 = vector.shape_cast %61 : vector<96x64xbf16> to vector<1x96x64xbf16>
    tpu.vector_store %arg7[%c0_37, %c0_38, %c0_39], %64 {strides = array<i32>} : memref<1x96x64xbf16, #tpu.memory_space<vmem>>, vector<1x96x64xbf16>,
    return
  }
  func.func @transform_0(%arg0: i32, %arg1: i32) -> (i32, i32, i32, i32) {
    %c0_i32 = arith.constant 0 : i32
    %c0_i32_0 = arith.constant 0 : i32
    %c0_i32_1 = arith.constant 0 : i32
    %c0_i32_2 = arith.constant 0 : i32
    return %arg0, %c0_i32, %c0_i32_0, %c0_i32_1 : i32, i32, i32, i32
  }
  func.func @transform_1(%arg0: i32, %arg1: i32) -> (i32, i32, i32) {
    %c0_i32 = arith.constant 0 : i32
    %c0_i32_0 = arith.constant 0 : i32
    %c0_i32_1 = arith.constant 0 : i32
    %c0_i32_2 = arith.constant 0 : i32
    return %c0_i32, %c0_i32_0, %c0_i32_1 : i32, i32, i32
  }
  func.func @transform_2(%arg0: i32, %arg1: i32) -> (i32, i32) {
    %c0_i32 = arith.constant 0 : i32
    %c0_i32_0 = arith.constant 0 : i32
    %c0_i32_1 = arith.constant 0 : i32
    return %c0_i32, %c0_i32_0 : i32, i32
  }
  func.func @transform_3(%arg0: i32, %arg1: i32) -> (i32, i32) {
    %c0_i32 = arith.constant 0 : i32
    %c0_i32_0 = arith.constant 0 : i32
    %c0_i32_1 = arith.constant 0 : i32
    return %c0_i32, %c0_i32_0 : i32, i32
  }
  func.func @transform_4(%arg0: i32, %arg1: i32) -> (i32, i32, i32) {
    %c0_i32 = arith.constant 0 : i32
    %c0_i32_0 = arith.constant 0 : i32
    %c0_i32_1 = arith.constant 0 : i32
    return %arg0, %c0_i32, %c0_i32_0 : i32, i32, i32
  }
  func.func @transform_5(%arg0: i32, %arg1: i32) -> (i32, i32, i32) {
    %c0_i32 = arith.constant 0 : i32
    %c0_i32_0 = arith.constant 0 : i32
    return %arg0, %arg1, %c0_i32 : i32, i32, i32
  }
}

module attributes {stable_mosaic.version = 11 : i64} {
  func.func @conv3_residual_ds_kernel(%arg0: i32, %arg1: memref<128x64xbf16, #tpu.memory_space<vmem>>, %arg2: memref<128x64xf32, #tpu.memory_space<vmem>>, %arg3: memref<64x128xbf16, #tpu.memory_space<vmem>>, %arg4: memref<1x128xf32, #tpu.memory_space<vmem>>, %arg5: memref<1x128xf32, #tpu.memory_space<vmem>>, %arg6: memref<64x128xbf16, #tpu.memory_space<vmem>>, %arg7: memref<1x128xf32, #tpu.memory_space<vmem>>, %arg8: memref<1x128xf32, #tpu.memory_space<vmem>>, %arg9: memref<128x128xf32, #tpu.memory_space<vmem>>) attributes {dimension_semantics = [#tpu.dimension_semantics<parallel>], iteration_bounds = array<i64: 4>, scalar_prefetch = 0 : i64, scratch_operands = 0 : i64, tpu.core_type = #tpu.core_type<tc>, window_params = [{transform_indices = @transform_0, window_bounds = array<i64: 128, 64>}, {transform_indices = @transform_1, window_bounds = array<i64: 128, 64>}, {pipeline_mode = #tpu.pipeline_mode<synchronous>, transform_indices = @transform_2, window_bounds = array<i64: 64, 128>}, {pipeline_mode = #tpu.pipeline_mode<synchronous>, transform_indices = @transform_3, window_bounds = array<i64: 1, 128>}, {pipeline_mode = #tpu.pipeline_mode<synchronous>, transform_indices = @transform_4, window_bounds = array<i64: 1, 128>}, {pipeline_mode = #tpu.pipeline_mode<synchronous>, transform_indices = @transform_5, window_bounds = array<i64: 64, 128>}, {pipeline_mode = #tpu.pipeline_mode<synchronous>, transform_indices = @transform_6, window_bounds = array<i64: 1, 128>}, {pipeline_mode = #tpu.pipeline_mode<synchronous>, transform_indices = @transform_7, window_bounds = array<i64: 1, 128>}, {transform_indices = @transform_8, window_bounds = array<i64: 128, 128>}]} {
    %c0 = arith.constant 0 : index
    %c0_0 = arith.constant 0 : index
    %0 = vector.load %arg1[%c0, %c0_0] : memref<128x64xbf16, #tpu.memory_space<vmem>>, vector<128x64xbf16>
    %c0_1 = arith.constant 0 : index
    %c0_2 = arith.constant 0 : index
    %1 = vector.load %arg3[%c0_1, %c0_2] : memref<64x128xbf16, #tpu.memory_space<vmem>>, vector<64x128xbf16>
    %cst = arith.constant dense<0.000000e+00> : vector<128x128xf32>
    %2 = tpu.matmul %0, %1, %cst {dimension_numbers = #tpu.dot_dimension_numbers<[1], [0], [0], [1], [0, 0, 1, 1], [], []>} : vector<128x64xbf16>, vector<64x128xbf16>, vector<128x128xf32> -> vector<128x128xf32>
    %c0_3 = arith.constant 0 : index
    %c0_4 = arith.constant 0 : index
    %3 = vector.load %arg4[%c0_3, %c0_4] : memref<1x128xf32, #tpu.memory_space<vmem>>, vector<1x128xf32>
    %4 = vector.broadcast %3 : vector<1x128xf32> to vector<128x128xf32>
    %5 = arith.mulf %2, %4 : vector<128x128xf32>
    %c0_5 = arith.constant 0 : index
    %c0_6 = arith.constant 0 : index
    %6 = vector.load %arg5[%c0_5, %c0_6] : memref<1x128xf32, #tpu.memory_space<vmem>>, vector<1x128xf32>
    %7 = vector.broadcast %6 : vector<1x128xf32> to vector<128x128xf32>
    %8 = arith.addf %5, %7 : vector<128x128xf32>
    %cst_7 = arith.constant 0.000000e+00 : f32
    %9 = vector.broadcast %cst_7 : f32 to vector<128x128xf32>
    %10 = arith.maximumf %8, %9 : vector<128x128xf32>
    %c0_8 = arith.constant 0 : index
    %c0_9 = arith.constant 0 : index
    %11 = vector.load %arg2[%c0_8, %c0_9] : memref<128x64xf32, #tpu.memory_space<vmem>>, vector<128x64xf32>
    %12 = arith.truncf %11 : vector<128x64xf32> to vector<128x64xbf16>
    %c0_10 = arith.constant 0 : index
    %c0_11 = arith.constant 0 : index
    %13 = vector.load %arg6[%c0_10, %c0_11] : memref<64x128xbf16, #tpu.memory_space<vmem>>, vector<64x128xbf16>
    %cst_12 = arith.constant dense<0.000000e+00> : vector<128x128xf32>
    %14 = tpu.matmul %12, %13, %cst_12 {dimension_numbers = #tpu.dot_dimension_numbers<[1], [0], [0], [1], [0, 0, 1, 1], [], []>} : vector<128x64xbf16>, vector<64x128xbf16>, vector<128x128xf32> -> vector<128x128xf32>
    %c0_13 = arith.constant 0 : index
    %c0_14 = arith.constant 0 : index
    %15 = vector.load %arg7[%c0_13, %c0_14] : memref<1x128xf32, #tpu.memory_space<vmem>>, vector<1x128xf32>
    %16 = vector.broadcast %15 : vector<1x128xf32> to vector<128x128xf32>
    %17 = arith.mulf %14, %16 : vector<128x128xf32>
    %c0_15 = arith.constant 0 : index
    %c0_16 = arith.constant 0 : index
    %18 = vector.load %arg8[%c0_15, %c0_16] : memref<1x128xf32, #tpu.memory_space<vmem>>, vector<1x128xf32>
    %19 = vector.broadcast %18 : vector<1x128xf32> to vector<128x128xf32>
    %20 = arith.addf %17, %19 : vector<128x128xf32>
    %21 = arith.addf %20, %10 : vector<128x128xf32>
    %cst_17 = arith.constant 0.000000e+00 : f32
    %22 = vector.broadcast %cst_17 : f32 to vector<128x128xf32>
    %23 = arith.maximumf %21, %22 : vector<128x128xf32>
    %c0_18 = arith.constant 0 : index
    %c0_19 = arith.constant 0 : index
    %24 = vector.load %arg9[%c0_18, %c0_19] : memref<128x128xf32, #tpu.memory_space<vmem>>, vector<128x128xf32>
    tpu.vector_store %arg9[%c0_18, %c0_19], %23 {strides = array<i32>} : memref<128x128xf32, #tpu.memory_space<vmem>>, vector<128x128xf32>,
    return
  }
  func.func @transform_0(%arg0: i32) -> (i32, i32) {
    %c0_i32 = arith.constant 0 : i32
    %c0_i32_0 = arith.constant 0 : i32
    return %arg0, %c0_i32 : i32, i32
  }
  func.func @transform_1(%arg0: i32) -> (i32, i32) {
    %c0_i32 = arith.constant 0 : i32
    %c0_i32_0 = arith.constant 0 : i32
    return %arg0, %c0_i32 : i32, i32
  }
  func.func @transform_2(%arg0: i32) -> (i32, i32) {
    %c0_i32 = arith.constant 0 : i32
    %c0_i32_0 = arith.constant 0 : i32
    %c0_i32_1 = arith.constant 0 : i32
    return %c0_i32, %c0_i32_0 : i32, i32
  }
  func.func @transform_3(%arg0: i32) -> (i32, i32) {
    %c0_i32 = arith.constant 0 : i32
    %c0_i32_0 = arith.constant 0 : i32
    %c0_i32_1 = arith.constant 0 : i32
    return %c0_i32, %c0_i32_0 : i32, i32
  }
  func.func @transform_4(%arg0: i32) -> (i32, i32) {
    %c0_i32 = arith.constant 0 : i32
    %c0_i32_0 = arith.constant 0 : i32
    %c0_i32_1 = arith.constant 0 : i32
    return %c0_i32, %c0_i32_0 : i32, i32
  }
  func.func @transform_5(%arg0: i32) -> (i32, i32) {
    %c0_i32 = arith.constant 0 : i32
    %c0_i32_0 = arith.constant 0 : i32
    %c0_i32_1 = arith.constant 0 : i32
    return %c0_i32, %c0_i32_0 : i32, i32
  }
  func.func @transform_6(%arg0: i32) -> (i32, i32) {
    %c0_i32 = arith.constant 0 : i32
    %c0_i32_0 = arith.constant 0 : i32
    %c0_i32_1 = arith.constant 0 : i32
    return %c0_i32, %c0_i32_0 : i32, i32
  }
  func.func @transform_7(%arg0: i32) -> (i32, i32) {
    %c0_i32 = arith.constant 0 : i32
    %c0_i32_0 = arith.constant 0 : i32
    %c0_i32_1 = arith.constant 0 : i32
    return %c0_i32, %c0_i32_0 : i32, i32
  }
  func.func @transform_8(%arg0: i32) -> (i32, i32) {
    %c0_i32 = arith.constant 0 : i32
    %c0_i32_0 = arith.constant 0 : i32
    return %arg0, %c0_i32 : i32, i32
  }
}

</mosaic_0001>

<llo_original>
// kernel: mlfn_block_forward.5
$region0: #{mlfn_block_forward.5}
  #allocation0 [shape = 'u32[]', space=smem, size = 0x4, offset = 0x4, fixed_abs, tag = 'smem constant byte address 0x4 - core index']
  #allocation1 [shape = 'u32[144,128]{1,0:T(1,128)}', space=vmem, size = 0x12000, scoped, tag = 'internal scratch']
  %s0 = inlined_call_operand.vmem [shape: f32[2,1,64], index: 0, kind: input, shape index: {}]
  %s1 = inlined_call_operand.vmem [shape: f32[64,32], index: 1, kind: input, shape index: {}]
  %s2 = inlined_call_operand.vmem [shape: f32[1,32], index: 2, kind: input, shape index: {}]
  %s3 = inlined_call_operand.vmem [shape: f32[1,32], index: 3, kind: input, shape index: {}]
  %s4 = inlined_call_operand.vmem [shape: f32[1,32], index: 4, kind: input, shape index: {}]
  %s5 = inlined_call_operand.vmem [shape: f32[32,32], index: 5, kind: input, shape index: {}]
  %s6 = inlined_call_operand.vmem [shape: f32[1,32], index: 6, kind: input, shape index: {}]
  %s7 = inlined_call_operand.vmem [shape: f32[1,32], index: 7, kind: input, shape index: {}]
  %s8 = inlined_call_operand.vmem [shape: f32[1,32], index: 8, kind: input, shape index: {}]
  %s9 = inlined_call_operand.vmem [shape: f32[32,32], index: 9, kind: input, shape index: {}]
  %s10 = inlined_call_operand.vmem [shape: f32[1,32], index: 10, kind: input, shape index: {}]
  %s11 = inlined_call_operand.vmem [shape: f32[1,32], index: 11, kind: input, shape index: {}]
  %s12 = inlined_call_operand.vmem [shape: f32[1,32], index: 12, kind: input, shape index: {}]
  %s13 = inlined_call_operand.vmem [shape: f32[2,32], index: 13, kind: output, shape index: {}]
  %s14 = sld [smem:[#allocation0]]
  $region62: #{mlfn_block_forward.5} parent=0
    _
  %s16 = ssub.s32 1, %s14
  %s17 = scalar_select 0, %s16, %s14
  // Predicated region
  $region2: #{mlfn_block_forward.5} parent=0 // pred_check
    _
  $region3: #{mlfn_block_forward.5} parent=0 // pred_check_branch
    %19 = sbr.rel (0) target = $region5
  $region4: #{mlfn_block_forward.5} parent=0 // pred_region
    _
  $region5: #{mlfn_block_forward.5} parent=0 // pred_fallthru
    _
  // Predicated region
  $region6: #{mlfn_block_forward.5} parent=0 // pred_check
    _
  $region7: #{mlfn_block_forward.5} parent=0 // pred_check_branch
    %21 = sbr.rel (0) target = $region9
  $region8: #{mlfn_block_forward.5} parent=0 // pred_region
    _
  $region9: #{mlfn_block_forward.5} parent=0 // pred_fallthru
    _
  // Predicated region
  $region10: #{mlfn_block_forward.5} parent=0 // pred_check
    _
  $region11: #{mlfn_block_forward.5} parent=0 // pred_check_branch
    %23 = sbr.rel (0) target = $region13
  $region12: #{mlfn_block_forward.5} parent=0 // pred_region
    _
  $region13: #{mlfn_block_forward.5} parent=0 // pred_fallthru
    _
  // Predicated region
  $region14: #{mlfn_block_forward.5} parent=0 // pred_check
    _
  $region15: #{mlfn_block_forward.5} parent=0 // pred_check_branch
    %25 = sbr.rel (0) target = $region17
  $region16: #{mlfn_block_forward.5} parent=0 // pred_region
    _
  $region17: #{mlfn_block_forward.5} parent=0 // pred_fallthru
    _
  // Predicated region
  $region18: #{mlfn_block_forward.5} parent=0 // pred_check
    _
  $region19: #{mlfn_block_forward.5} parent=0 // pred_check_branch
    %27 = sbr.rel (0) target = $region21
  $region20: #{mlfn_block_forward.5} parent=0 // pred_region
    _
  $region21: #{mlfn_block_forward.5} parent=0 // pred_fallthru
    _
  // Predicated region
  $region22: #{mlfn_block_forward.5} parent=0 // pred_check
    _
  $region23: #{mlfn_block_forward.5} parent=0 // pred_check_branch
    %29 = sbr.rel (0) target = $region25
  $region24: #{mlfn_block_forward.5} parent=0 // pred_region
    _
  $region25: #{mlfn_block_forward.5} parent=0 // pred_fallthru
    _
  // Predicated region
  $region26: #{mlfn_block_forward.5} parent=0 // pred_check
    _
  $region27: #{mlfn_block_forward.5} parent=0 // pred_check_branch
    %31 = sbr.rel (0) target = $region29
  $region28: #{mlfn_block_forward.5} parent=0 // pred_region
    _
  $region29: #{mlfn_block_forward.5} parent=0 // pred_fallthru
    _
  // Predicated region
  $region30: #{mlfn_block_forward.5} parent=0 // pred_check
    _
  $region31: #{mlfn_block_forward.5} parent=0 // pred_check_branch
    %33 = sbr.rel (0) target = $region33
  $region32: #{mlfn_block_forward.5} parent=0 // pred_region
    _
  $region33: #{mlfn_block_forward.5} parent=0 // pred_fallthru
    _
  // Predicated region
  $region34: #{mlfn_block_forward.5} parent=0 // pred_check
    _
  $region35: #{mlfn_block_forward.5} parent=0 // pred_check_branch
    %35 = sbr.rel (0) target = $region37
  $region36: #{mlfn_block_forward.5} parent=0 // pred_region
    _
  $region37: #{mlfn_block_forward.5} parent=0 // pred_fallthru
    _
  // Predicated region
  $region38: #{mlfn_block_forward.5} parent=0 // pred_check
    _
  $region39: #{mlfn_block_forward.5} parent=0 // pred_check_branch
    %37 = sbr.rel (0) target = $region41
  $region40: #{mlfn_block_forward.5} parent=0 // pred_region
    _
  $region41: #{mlfn_block_forward.5} parent=0 // pred_fallthru
    _
  // Predicated region
  $region42: #{mlfn_block_forward.5} parent=0 // pred_check
    _
  $region43: #{mlfn_block_forward.5} parent=0 // pred_check_branch
    %39 = sbr.rel (0) target = $region45
  $region44: #{mlfn_block_forward.5} parent=0 // pred_region
    _
  $region45: #{mlfn_block_forward.5} parent=0 // pred_fallthru
    _
  // Predicated region
  $region46: #{mlfn_block_forward.5} parent=0 // pred_check
    _
  $region47: #{mlfn_block_forward.5} parent=0 // pred_check_branch
    %41 = sbr.rel (0) target = $region49
  $region48: #{mlfn_block_forward.5} parent=0 // pred_region
    _
  $region49: #{mlfn_block_forward.5} parent=0 // pred_fallthru
    _
  // Predicated region
  $region50: #{mlfn_block_forward.5} parent=0 // pred_check
    _
  $region51: #{mlfn_block_forward.5} parent=0 // pred_check_branch
    %43 = sbr.rel (0) target = $region53
  $region52: #{mlfn_block_forward.5} parent=0 // pred_region
    _
  $region53: #{mlfn_block_forward.5} parent=0 // pred_fallthru
    _
  %v44 = vld [vmem:[%s0] sm:$0x1]
  %v45 = vld [vmem:[%s0 + $0x1] sm:$0x1]
  %v46 = vadd.f32 %v44, 0.0
  %v47 = vadd.f32 %v45, 0.0
  %v48 = vmul.f32 %v46, 0.00390625
  %v49 = vmul.f32 %v47, 0.00390625
  %v50 = vld [vmem:[%s1] sm:$0xff]
  %v51 = vld [vmem:[%s1 + $0x8] sm:$0xff]
  %v52 = vld [vmem:[%s1 + $0x10] sm:$0xff]
  %v53 = vld [vmem:[%s1 + $0x18] sm:$0xff]
  %v54 = vld [vmem:[%s1 + $0x20] sm:$0xff]
  %v55 = vld [vmem:[%s1 + $0x28] sm:$0xff]
  %v56 = vld [vmem:[%s1 + $0x30] sm:$0xff]
  %v57 = vld [vmem:[%s1 + $0x38] sm:$0xff]
  %v58 = vld [vmem:[%s2] sm:$0x1]
  %v60 = vlaneseq
  %v61 = vshrl.u32 %v60, 7
  %v62 = vsub.s32 0, %v61
  %v63 = vrot.slane %v58, %v62
  %v67 = vcombine.low %v48, %v49
  %v69 = vunpack.c.l.s4 1966171168
  %v70 = vunpack.c.0.s8 %v69
  %v71 = vlaneseq
  %v72 = vshrl.u32 %v71, 7
  %v73 = vsub.s32 %v70, %v72
  %v74 = vrot.slane %v67, %v73
  %v76 = vunpack.c.l.s4 1966171168
  %v77 = vunpack.c.0.s8 %v76
  %v78 = vlaneseq
  %v79 = vshrl.u32 %v78, 7
  %v80 = vsub.s32 %v77, %v79
  %v81 = vrot.slane %v74, %v80
  %vm82 = vcmask 523264
  %v83 = vsel %vm82, %v81, 0
  %85 = vmatprep.subr.mxu0 0.0
  %86 = vmatpush1.msra.mxu0 %v50
  %87 = vmatprep.subr.mxu0 0.0
  %88 = vmatpush1.msra.mxu0 %v51
  %89 = vmatprep.subr.mxu0 0.0
  %90 = vmatpush1.msra.mxu0 %v52
  %91 = vmatprep.subr.mxu0 0.0
  %92 = vmatpush1.msra.mxu0 %v53
  %93 = vmatprep.subr.mxu0 0.0
  %94 = vmatpush1.msra.mxu0 %v54
  %95 = vmatprep.subr.mxu0 0.0
  %96 = vmatpush1.msra.mxu0 %v55
  %97 = vmatprep.subr.mxu0 0.0
  %98 = vmatpush1.msra.mxu0 %v56
  %99 = vmatprep.subr.mxu0 0.0
  %100 = vmatpush1.msra.mxu0 %v57
  %101 = vmatprep.subr.mxu0 0.0
  %102 = vmatpush1.msra.mxu0 0.0
  %103 = vmatprep.subr.mxu0 0.0
  %104 = vmatpush1.msra.mxu0 0.0
  %105 = vmatprep.subr.mxu0 0.0
  %106 = vmatpush1.msra.mxu0 0.0
  %107 = vmatprep.subr.mxu0 0.0
  %108 = vmatpush1.msra.mxu0 0.0
  %109 = vmatprep.subr.mxu0 0.0
  %110 = vmatpush1.msra.mxu0 0.0
  %111 = vmatprep.subr.mxu0 0.0
  %112 = vmatpush1.msra.mxu0 0.0
  %113 = vmatprep.subr.mxu0 0.0
  %114 = vmatpush1.msra.mxu0 0.0
  %115 = vmatprep.subr.mxu0 0.0
  %116 = vmatpush1.msra.mxu0 0.0
  %117 = vmatprep.subr.mxu0 0.0
  %118 = vmatpush1.msra.mxu0 0.0
  %119 = vmatprep.subr.mxu0 0.0
  %120 = vmatpush1.msra.mxu0 0.0
  %121 = vmatprep.subr.mxu0 0.0
  %122 = vmatpush1.msra.mxu0 0.0
  %123 = vmatprep.subr.mxu0 0.0
  %124 = vmatpush1.msra.mxu0 0.0
  %125 = vmatprep.subr.mxu0 0.0
  %126 = vmatpush1.msra.mxu0 0.0
  %127 = vmatprep.subr.mxu0 0.0
  %128 = vmatpush1.msra.mxu0 0.0
  %129 = vmatprep.subr.mxu0 0.0
  %130 = vmatpush1.msra.mxu0 0.0
  %131 = vmatprep.subr.mxu0 0.0
  %132 = vmatpush1.msra.mxu0 0.0
  %133 = vmatprep.subr.mxu0 0.0
  %134 = vmatpush1.msra.mxu0 0.0
  %135 = vmatprep.subr.mxu0 0.0
  %136 = vmatpush1.msra.mxu0 0.0
  %137 = vmatprep.subr.mxu0 0.0
  %138 = vmatpush1.msra.mxu0 0.0
  %139 = vmatprep.subr.mxu0 0.0
  %140 = vmatpush1.msra.mxu0 0.0
  %141 = vmatprep.subr.mxu0 0.0
  %142 = vmatpush1.msra.mxu0 0.0
  %143 = vmatprep.subr.mxu0 0.0
  %144 = vmatpush1.msra.mxu0 0.0
  %145 = vmatprep.subr.mxu0 0.0
  %146 = vmatpush1.msra.mxu0 0.0
  %147 = vmatprep.subr.mxu0 0.0
  %148 = vmatpush1.msra.mxu0 0.0
  %149 = vmatprep.mubr.f32.mxu0 0.0
  %150 = vmatmul.mubr.f32.gmra.mrb[0].mxu0 %v83
  %v151 = vpop.f32.mrb[0].mxu0
  %v152 = vadd.f32 %v63, %v151
  %v153 = vpop.f32.mrb[0].mxu0
  %154 = vdwg.mxu0
  %v155 = vld [vmem:[%s3] sm:$0x1]
  %v157 = vlaneseq
  %v158 = vshrl.u32 %v157, 7
  %v159 = vsub.s32 0, %v158
  %v160 = vrot.slane %v155, %v159
  %v162 = vmul.f32 %v152, %v160
  %v163 = vld [vmem:[%s4] sm:$0x1]
  %v165 = vlaneseq
  %v166 = vshrl.u32 %v165, 7
  %v167 = vsub.s32 0, %v166
  %v168 = vrot.slane %v163, %v167
  %v170 = vadd.f32 %v162, %v168
  %v171 = vmax.f32 %v170, 0.0
  %v172 = vld [vmem:[%s5] sm:$0xff]
  %v173 = vld [vmem:[%s5 + $0x8] sm:$0xff]
  %v174 = vld [vmem:[%s5 + $0x10] sm:$0xff]
  %v175 = vld [vmem:[%s5 + $0x18] sm:$0xff]
  %v176 = vld [vmem:[%s6] sm:$0x1]
  %v178 = vlaneseq
  %v179 = vshrl.u32 %v178, 7
  %v180 = vsub.s32 0, %v179
  %v181 = vrot.slane %v176, %v180
  %vm183 = vcmask 261120
  %v185 = vsel %vm183, %v171, 0
  %187 = vmatprep.subr.mxu0 0.0
  %188 = vmatpush1.msra.mxu0 %v172
  %189 = vmatprep.subr.mxu0 0.0
  %190 = vmatpush1.msra.mxu0 %v173
  %191 = vmatprep.subr.mxu0 0.0
  %192 = vmatpush1.msra.mxu0 %v174
  %193 = vmatprep.subr.mxu0 0.0
  %194 = vmatpush1.msra.mxu0 %v175
  %195 = vmatprep.subr.mxu0 0.0
  %196 = vmatpush1.msra.mxu0 0.0
  %197 = vmatprep.subr.mxu0 0.0
  %198 = vmatpush1.msra.mxu0 0.0
  %199 = vmatprep.subr.mxu0 0.0
  %200 = vmatpush1.msra.mxu0 0.0
  %201 = vmatprep.subr.mxu0 0.0
  %202 = vmatpush1.msra.mxu0 0.0
  %203 = vmatprep.subr.mxu0 0.0
  %204 = vmatpush1.msra.mxu0 0.0
  %205 = vmatprep.subr.mxu0 0.0
  %206 = vmatpush1.msra.mxu0 0.0
  %207 = vmatprep.subr.mxu0 0.0
  %208 = vmatpush1.msra.mxu0 0.0
  %209 = vmatprep.subr.mxu0 0.0
  %210 = vmatpush1.msra.mxu0 0.0
  %211 = vmatprep.subr.mxu0 0.0
  %212 = vmatpush1.msra.mxu0 0.0
  %213 = vmatprep.subr.mxu0 0.0
  %214 = vmatpush1.msra.mxu0 0.0
  %215 = vmatprep.subr.mxu0 0.0
  %216 = vmatpush1.msra.mxu0 0.0
  %217 = vmatprep.subr.mxu0 0.0
  %218 = vmatpush1.msra.mxu0 0.0
  %219 = vmatprep.subr.mxu0 0.0
  %220 = vmatpush1.msra.mxu0 0.0
  %221 = vmatprep.subr.mxu0 0.0
  %222 = vmatpush1.msra.mxu0 0.0
  %223 = vmatprep.subr.mxu0 0.0
  %224 = vmatpush1.msra.mxu0 0.0
  %225 = vmatprep.subr.mxu0 0.0
  %226 = vmatpush1.msra.mxu0 0.0
  %227 = vmatprep.subr.mxu0 0.0
  %228 = vmatpush1.msra.mxu0 0.0
  %229 = vmatprep.subr.mxu0 0.0
  %230 = vmatpush1.msra.mxu0 0.0
  %231 = vmatprep.subr.mxu0 0.0
  %232 = vmatpush1.msra.mxu0 0.0
  %233 = vmatprep.subr.mxu0 0.0
  %234 = vmatpush1.msra.mxu0 0.0
  %235 = vmatprep.subr.mxu0 0.0
  %236 = vmatpush1.msra.mxu0 0.0
  %237 = vmatprep.subr.mxu0 0.0
  %238 = vmatpush1.msra.mxu0 0.0
  %239 = vmatprep.subr.mxu0 0.0
  %240 = vmatpush1.msra.mxu0 0.0
  %241 = vmatprep.subr.mxu0 0.0
  %242 = vmatpush1.msra.mxu0 0.0
  %243 = vmatprep.subr.mxu0 0.0
  %244 = vmatpush1.msra.mxu0 0.0
  %245 = vmatprep.subr.mxu0 0.0
  %246 = vmatpush1.msra.mxu0 0.0
  %247 = vmatprep.subr.mxu0 0.0
  %248 = vmatpush1.msra.mxu0 0.0
  %249 = vmatprep.subr.mxu0 0.0
  %250 = vmatpush1.msra.mxu0 0.0
  %251 = vmatprep.mubr.f32.mxu0 0.0
  %252 = vmatmul.mubr.f32.gmra.mrb[0].mxu0 %v185
  %v253 = vpop.f32.mrb[0].mxu0
  %v254 = vadd.f32 %v181, %v253
  %v255 = vpop.f32.mrb[0].mxu0
  %256 = vdwg.mxu0
  %v257 = vld [vmem:[%s7] sm:$0x1]
  %v259 = vlaneseq
  %v260 = vshrl.u32 %v259, 7
  %v261 = vsub.s32 0, %v260
  %v262 = vrot.slane %v257, %v261
  %v264 = vmul.f32 %v254, %v262
  %v265 = vld [vmem:[%s8] sm:$0x1]
  %v267 = vlaneseq
  %v268 = vshrl.u32 %v267, 7
  %v269 = vsub.s32 0, %v268
  %v270 = vrot.slane %v265, %v269
  %v272 = vadd.f32 %v264, %v270
  %v273 = vmax.f32 %v272, 0.0
  %v274 = vld [vmem:[%s9] sm:$0xff]
  %v275 = vld [vmem:[%s9 + $0x8] sm:$0xff]
  %v276 = vld [vmem:[%s9 + $0x10] sm:$0xff]
  %v277 = vld [vmem:[%s9 + $0x18] sm:$0xff]
  %v278 = vld [vmem:[%s10] sm:$0x1]
  %v280 = vlaneseq
  %v281 = vshrl.u32 %v280, 7
  %v282 = vsub.s32 0, %v281
  %v283 = vrot.slane %v278, %v282
  %v286 = vsel %vm183, %v273, 0
  %288 = vmatprep.subr.mxu0 0.0
  %289 = vmatpush1.msra.mxu0 %v274
  %290 = vmatprep.subr.mxu0 0.0
  %291 = vmatpush1.msra.mxu0 %v275
  %292 = vmatprep.subr.mxu0 0.0
  %293 = vmatpush1.msra.mxu0 %v276
  %294 = vmatprep.subr.mxu0 0.0
  %295 = vmatpush1.msra.mxu0 %v277
  %296 = vmatprep.subr.mxu0 0.0
  %297 = vmatpush1.msra.mxu0 0.0
  %298 = vmatprep.subr.mxu0 0.0
  %299 = vmatpush1.msra.mxu0 0.0
  %300 = vmatprep.subr.mxu0 0.0
  %301 = vmatpush1.msra.mxu0 0.0
  %302 = vmatprep.subr.mxu0 0.0
  %303 = vmatpush1.msra.mxu0 0.0
  %304 = vmatprep.subr.mxu0 0.0
  %305 = vmatpush1.msra.mxu0 0.0
  %306 = vmatprep.subr.mxu0 0.0
  %307 = vmatpush1.msra.mxu0 0.0
  %308 = vmatprep.subr.mxu0 0.0
  %309 = vmatpush1.msra.mxu0 0.0
  %310 = vmatprep.subr.mxu0 0.0
  %311 = vmatpush1.msra.mxu0 0.0
  %312 = vmatprep.subr.mxu0 0.0
  %313 = vmatpush1.msra.mxu0 0.0
  %314 = vmatprep.subr.mxu0 0.0
  %315 = vmatpush1.msra.mxu0 0.0
  %316 = vmatprep.subr.mxu0 0.0
  %317 = vmatpush1.msra.mxu0 0.0
  %318 = vmatprep.subr.mxu0 0.0
  %319 = vmatpush1.msra.mxu0 0.0
  %320 = vmatprep.subr.mxu0 0.0
  %321 = vmatpush1.msra.mxu0 0.0
  %322 = vmatprep.subr.mxu0 0.0
  %323 = vmatpush1.msra.mxu0 0.0
  %324 = vmatprep.subr.mxu0 0.0
  %325 = vmatpush1.msra.mxu0 0.0
  %326 = vmatprep.subr.mxu0 0.0
  %327 = vmatpush1.msra.mxu0 0.0
  %328 = vmatprep.subr.mxu0 0.0
  %329 = vmatpush1.msra.mxu0 0.0
  %330 = vmatprep.subr.mxu0 0.0
  %331 = vmatpush1.msra.mxu0 0.0
  %332 = vmatprep.subr.mxu0 0.0
  %333 = vmatpush1.msra.mxu0 0.0
  %334 = vmatprep.subr.mxu0 0.0
  %335 = vmatpush1.msra.mxu0 0.0
  %336 = vmatprep.subr.mxu0 0.0
  %337 = vmatpush1.msra.mxu0 0.0
  %338 = vmatprep.subr.mxu0 0.0
  %339 = vmatpush1.msra.mxu0 0.0
  %340 = vmatprep.subr.mxu0 0.0
  %341 = vmatpush1.msra.mxu0 0.0
  %342 = vmatprep.subr.mxu0 0.0
  %343 = vmatpush1.msra.mxu0 0.0
  %344 = vmatprep.subr.mxu0 0.0
  %345 = vmatpush1.msra.mxu0 0.0
  %346 = vmatprep.subr.mxu0 0.0
  %347 = vmatpush1.msra.mxu0 0.0
  %348 = vmatprep.subr.mxu0 0.0
  %349 = vmatpush1.msra.mxu0 0.0
  %350 = vmatprep.subr.mxu0 0.0
  %351 = vmatpush1.msra.mxu0 0.0
  %352 = vmatprep.mubr.f32.mxu0 0.0
  %353 = vmatmul.mubr.f32.gmra.mrb[0].mxu0 %v286
  %v354 = vpop.f32.mrb[0].mxu0
  %v355 = vadd.f32 %v283, %v354
  %v356 = vpop.f32.mrb[0].mxu0
  %357 = vdwg.mxu0
  %v358 = vld [vmem:[%s11] sm:$0x1]
  %v360 = vlaneseq
  %v361 = vshrl.u32 %v360, 7
  %v362 = vsub.s32 0, %v361
  %v363 = vrot.slane %v358, %v362
  %v365 = vmul.f32 %v355, %v363
  %v366 = vld [vmem:[%s12] sm:$0x1]
  %v368 = vlaneseq
  %v369 = vshrl.u32 %v368, 7
  %v370 = vsub.s32 0, %v369
  %v371 = vrot.slane %v366, %v370
  %v373 = vadd.f32 %v365, %v371
  %v374 = vxor.u32 %v373, 2147483648
  %v375 = vmul.f32 %v374, 1.442695
  %v376 = vpow.pop %v375
  %v377 = vadd.f32 %v376, 1.0
  %v378 = vrcp.pop %v377
  %v379 = vmul.f32 1.0, %v378
  %vm380 = vcmask 254976
  %381 = vst.msk [vmem:[%s13] sm:$0x3] %vm380, %v379
  // Predicated region
  $region54: #{mlfn_block_forward.5} parent=0 // pred_check
    _
  $region55: #{mlfn_block_forward.5} parent=0 // pred_check_branch
    %383 = sbr.rel (0) target = $region57
  $region56: #{mlfn_block_forward.5} parent=0 // pred_region
    _
  $region57: #{mlfn_block_forward.5} parent=0 // pred_fallthru
    _
  // Predicated region
  $region58: #{mlfn_block_forward.5} parent=0 // pred_check
    _
  $region59: #{mlfn_block_forward.5} parent=0 // pred_check_branch
    %385 = sbr.rel (0) target = $region61
  $region60: #{mlfn_block_forward.5} parent=0 // pred_region
    _
  $region61: #{mlfn_block_forward.5} parent=0 // pred_fallthru
    _

// kernel: mlfn_block_forward.4
$region0: #{mlfn_block_forward.4}
  #allocation0 [shape = 'u32[]', space=smem, size = 0x4, offset = 0x4, fixed_abs, tag = 'smem constant byte address 0x4 - core index']
  #allocation1 [shape = 'u32[144,128]{1,0:T(1,128)}', space=vmem, size = 0x12000, scoped, tag = 'internal scratch']
  %s0 = inlined_call_operand.hbm [shape: f32[2,256,64], index: 0, kind: input, shape index: {}]
  %s1 = inlined_call_operand.vmem [shape: bf16[64,64], index: 1, kind: input, shape index: {}]
  %s2 = inlined_call_operand.vmem [shape: f32[1,64], index: 2, kind: input, shape index: {}]
  %s3 = inlined_call_operand.vmem [shape: f32[1,64], index: 3, kind: input, shape index: {}]
  %s4 = inlined_call_operand.vmem [shape: bf16[2,256,64], index: 4, kind: output, shape index: {0}]
  %s5 = inlined_call_operand.vmem [shape: f32[2,1,64], index: 5, kind: output, shape index: {1}]
  %6 = xla_tuple %s4, %s5
  %s7 = sld [smem:[#allocation0]]
  $region65: #{mlfn_block_forward.4} parent=0
    _
  %s9 = ssub.s32 1, %s7
  %s10 = scalar_select 0, %s9, %s7
  $region1: #{mlfn_block_forward.4} parent=0
    #allocation2 [shape = 'u8[131072]{0}', space=vmem, size = 0x20000, scoped, tag = 'input window, operand 0']
    #allocation3 [shape = 's32[2]{0}', space=sflag, size = 0x8, scoped, tag = 'scoped memory for mlfn_block_forward.4']
    %11 = vsyncpa [#allocation3], 0
    %s12 = scalar_lea.sflag [#allocation3], 1
    %13 = vsyncpa %s12, 0
    loop: start=0, step=1, limit=6
    $region2: #{mlfn_block_forward.4} parent=1 // loop_pre_header
      _
    $region3: #{mlfn_block_forward.4} parent=1 // loop_header
      %s15 = sphi 0, %s19
      %p16 = scmp.ge.s32.totalorder %s15, 6
      %s22 = sphi 0, %s34
      %s23 = sphi 0, %s30
      %s24 = sphi 0, %s22
      %s25 = sphi 0, %s23
      %s26 = sphi 0, %s24
      %s27 = sphi 0, %s25
      %s39 = sphi 0, %s41
      %s42 = sphi 0, %s39
      %s43 = sphi 0, %s42
      %s59 = sphi 0, %s43
      %s63 = sphi 0, %s63
      %s65 = sphi 0, %s63
      %s66 = sphi 0, %s65
      %s80 = sphi 0, %s66
      %s84 = sphi 0, %s84
      %s86 = sphi 0, %s84
      %s87 = sphi 0, %s86
      %s101 = sphi 0, %s87
      %s105 = sphi 0, %s105
      %s107 = sphi 0, %s105
      %s108 = sphi 0, %s107
      %s122 = sphi 0, %s108
      %s130 = sphi 0, %s132
      %s133 = sphi 0, %s130
      %s134 = sphi 0, %s133
      %s150 = sphi 0, %s134
      %s156 = sphi 0, %s158
      %s159 = sphi 0, %s156
      %s160 = sphi 0, %s159
      %s176 = sphi 0, %s160
    $region4: #{mlfn_block_forward.4} parent=1 // loop_header_branch
      %18 = sbr.rel (%p16) target = $region8
    $region5: #{mlfn_block_forward.4} parent=1 // loop_body
      %s20 = ssub.s32 %s15, 1
      %s21 = ssub.s32 %s15, 2
      %s28 = sadd.s32 1, %s23
      %p29 = scmp.ge.s32.totalorder %s28, 2
      %s30 = scalar_select %p29, 0, %s28
      %s31 = sadd.s32 1, %s22
      %s32 = scalar_select %p29, %s31, %s22
      %p33 = scmp.ge.s32.totalorder %s32, 2
      %s34 = scalar_select %p33, 0, %s32
      %s35 = ssub.s32 %s22, %s34
      %s36 = ssub.s32 %s23, %s30
      %s37 = sor.u32 %s35, %s36
      %p38 = scmp.eq.s32.totalorder %s37, 0
      %s40 = sadd.s32 %s39, 1
      %s41 = scalar_select %p38, %s39, %s40
      %p44 = pneg %p38
      %p45 = scmp.eq.s32.totalorder %s15, 3
      %p46 = por %p44, %p45
      %p47 = scmp.ne.s32.totalorder %s39, %s42
      %p48 = scmp.eq.s32.totalorder %s15, 0
      %p49 = por %p47, %p48
      %p50 = scmp.ne.s32.totalorder %s39, %s42
      %p51 = scmp.eq.s32.totalorder %s20, 3
      %p52 = por %p50, %p51
      %p53 = scmp.ne.s32.totalorder %s42, %s43
      %p54 = scmp.eq.s32.totalorder %s20, 0
      %p55 = por %p53, %p54
      %p56 = scmp.ne.s32.totalorder %s42, %s43
      %p57 = scmp.eq.s32.totalorder %s21, 3
      %p58 = por %p56, %p57
      %p60 = scmp.ne.s32.totalorder %s43, %s59
      %p61 = scmp.eq.s32.totalorder %s21, 0
      %p62 = por %p60, %p61
      %s64 = sadd.s32 %s63, 1
      %p67 = scmp.eq.s32.totalorder %s15, 3
      %p68 = scmp.ne.s32.totalorder %s63, %s65
      %p69 = scmp.eq.s32.totalorder %s15, 0
      %p70 = por %p68, %p69
      %p71 = scmp.ne.s32.totalorder %s63, %s65
      %p72 = scmp.eq.s32.totalorder %s20, 3
      %p73 = por %p71, %p72
      %p74 = scmp.ne.s32.totalorder %s65, %s66
      %p75 = scmp.eq.s32.totalorder %s20, 0
      %p76 = por %p74, %p75
      %p77 = scmp.ne.s32.totalorder %s65, %s66
      %p78 = scmp.eq.s32.totalorder %s21, 3
      %p79 = por %p77, %p78
      %p81 = scmp.ne.s32.totalorder %s66, %s80
      %p82 = scmp.eq.s32.totalorder %s21, 0
      %p83 = por %p81, %p82
      %s85 = sadd.s32 %s84, 1
      %p88 = scmp.eq.s32.totalorder %s15, 3
      %p89 = scmp.ne.s32.totalorder %s84, %s86
      %p90 = scmp.eq.s32.totalorder %s15, 0
      %p91 = por %p89, %p90
      %p92 = scmp.ne.s32.totalorder %s84, %s86
      %p93 = scmp.eq.s32.totalorder %s20, 3
      %p94 = por %p92, %p93
      %p95 = scmp.ne.s32.totalorder %s86, %s87
      %p96 = scmp.eq.s32.totalorder %s20, 0
      %p97 = por %p95, %p96
      %p98 = scmp.ne.s32.totalorder %s86, %s87
      %p99 = scmp.eq.s32.totalorder %s21, 3
      %p100 = por %p98, %p99
      %p102 = scmp.ne.s32.totalorder %s87, %s101
      %p103 = scmp.eq.s32.totalorder %s21, 0
      %p104 = por %p102, %p103
      %s106 = sadd.s32 %s105, 1
      %p109 = scmp.eq.s32.totalorder %s15, 3
      %p110 = scmp.ne.s32.totalorder %s105, %s107
      %p111 = scmp.eq.s32.totalorder %s15, 0
      %p112 = por %p110, %p111
      %p113 = scmp.ne.s32.totalorder %s105, %s107
      %p114 = scmp.eq.s32.totalorder %s20, 3
      %p115 = por %p113, %p114
      %p116 = scmp.ne.s32.totalorder %s107, %s108
      %p117 = scmp.eq.s32.totalorder %s20, 0
      %p118 = por %p116, %p117
      %p119 = scmp.ne.s32.totalorder %s107, %s108
      %p120 = scmp.eq.s32.totalorder %s21, 3
      %p121 = por %p119, %p120
      %p123 = scmp.ne.s32.totalorder %s108, %s122
      %p124 = scmp.eq.s32.totalorder %s21, 0
      %p125 = por %p123, %p124
      %s126 = ssub.s32 %s22, %s34
      %s127 = ssub.s32 %s23, %s30
      %s128 = sor.u32 %s126, %s127
      %p129 = scmp.eq.s32.totalorder %s128, 0
      %s131 = sadd.s32 %s130, 1
      %s132 = scalar_select %p129, %s130, %s131
      %p135 = pneg %p129
      %p136 = scmp.eq.s32.totalorder %s15, 3
      %p137 = por %p135, %p136
      %p138 = scmp.ne.s32.totalorder %s130, %s133
      %p139 = scmp.eq.s32.totalorder %s15, 0
      %p140 = por %p138, %p139
      %p141 = scmp.ne.s32.totalorder %s130, %s133
      %p142 = scmp.eq.s32.totalorder %s20, 3
      %p143 = por %p141, %p142
      %p144 = scmp.ne.s32.totalorder %s133, %s134
      %p145 = scmp.eq.s32.totalorder %s20, 0
      %p146 = por %p144, %p145
      %p147 = scmp.ne.s32.totalorder %s133, %s134
      %p148 = scmp.eq.s32.totalorder %s21, 3
      %p149 = por %p147, %p148
      %p151 = scmp.ne.s32.totalorder %s134, %s150
      %p152 = scmp.eq.s32.totalorder %s21, 0
      %p153 = por %p151, %p152
      %s154 = ssub.s32 %s22, %s34
      %p155 = scmp.eq.s32.totalorder %s154, 0
      %s157 = sadd.s32 %s156, 1
      %s158 = scalar_select %p155, %s156, %s157
      %p161 = pneg %p155
      %p162 = scmp.eq.s32.totalorder %s15, 3
      %p163 = por %p161, %p162
      %p164 = scmp.ne.s32.totalorder %s156, %s159
      %p165 = scmp.eq.s32.totalorder %s15, 0
      %p166 = por %p164, %p165
      %p167 = scmp.ne.s32.totalorder %s156, %s159
      %p168 = scmp.eq.s32.totalorder %s20, 3
      %p169 = por %p167, %p168
      %p170 = scmp.ne.s32.totalorder %s159, %s160
      %p171 = scmp.eq.s32.totalorder %s20, 0
      %p172 = por %p170, %p171
      %p173 = scmp.ne.s32.totalorder %s159, %s160
      %p174 = scmp.eq.s32.totalorder %s21, 3
      %p175 = por %p173, %p174
      %p177 = scmp.ne.s32.totalorder %s160, %s176
      %p178 = scmp.eq.s32.totalorder %s21, 0
      %p179 = por %p177, %p178
      %p180 = scmp.le.s32.totalorder 1, %s15
      %p181 = scmp.lt.s32.totalorder %s15, 5
      %p182 = pnand %p180, %p181
      %p183 = pneg %p182
      // Predicated region
      $region9: #{mlfn_block_forward.4} parent=5 // pred_check
        _
      $region10: #{mlfn_block_forward.4} parent=5 // pred_check_branch
        %185 = sbr.rel (%p182) target = $region12
      $region11: #{mlfn_block_forward.4} parent=5 // pred_region
        %s186 = ssub.s32 %s15, 1
        // Predicated region
        $region13: #{mlfn_block_forward.4} parent=11 // pred_check
          %p187 = pneg %p76
        $region14: #{mlfn_block_forward.4} parent=11 // pred_check_branch
          %189 = sbr.rel (%p187) target = $region16
        $region15: #{mlfn_block_forward.4} parent=11 // pred_region
          _
        $region16: #{mlfn_block_forward.4} parent=11 // pred_fallthru
          _
        // Predicated region
        $region17: #{mlfn_block_forward.4} parent=11 // pred_check
          %p190 = pneg %p97
        $region18: #{mlfn_block_forward.4} parent=11 // pred_check_branch
          %192 = sbr.rel (%p190) target = $region20
        $region19: #{mlfn_block_forward.4} parent=11 // pred_region
          _
        $region20: #{mlfn_block_forward.4} parent=11 // pred_fallthru
          _
        // Predicated region
        $region21: #{mlfn_block_forward.4} parent=11 // pred_check
          %p193 = pneg %p118
        $region22: #{mlfn_block_forward.4} parent=11 // pred_check_branch
          %195 = sbr.rel (%p193) target = $region24
        $region23: #{mlfn_block_forward.4} parent=11 // pred_region
          _
        $region24: #{mlfn_block_forward.4} parent=11 // pred_fallthru
          _
      $region12: #{mlfn_block_forward.4} parent=5 // pred_fallthru
        _
      %p196 = scmp.lt.s32.totalorder %s15, 4
      // Predicated region
      $region25: #{mlfn_block_forward.4} parent=5 // pred_check
        %p197 = pneg %p196
      $region26: #{mlfn_block_forward.4} parent=5 // pred_check_branch
        %199 = sbr.rel (%p197) target = $region28
      $region27: #{mlfn_block_forward.4} parent=5 // pred_region
        // Predicated region
        $region29: #{mlfn_block_forward.4} parent=27 // pred_check
          %p200 = pneg %p49
        $region30: #{mlfn_block_forward.4} parent=27 // pred_check_branch
          %202 = sbr.rel (%p200) target = $region32
        $region31: #{mlfn_block_forward.4} parent=27 // pred_region
          %s203 = sand.u32 %s39, 1
          %s204 = scalar_lea.sflag [#allocation3], %s203
          %s205 = sand.u32 %s39, 1
          %s206 = smul.addr %s205, 128
          %s207 = scalar_lea.vmem [#allocation2], %s206
          %s208 = smul.u32 16, %s23
          %s210 = ssub.s32 2048, 2048
          %211 = vsyncadd %s204, %s210
          %s212 = smul.addr %s22, 32
          %s213 = sadd.s32 %s208, %s212
          %s214 = smul.addr %s213, 128
          %s215 = scalar_lea.hbm %s0, %s214
          %s216 = sshll.u32 %s207, 4
          %s217 = int_to_ptr.vmem [resolvable:$true] %s216
          %222 = dma.hbm_to_vmem [thread:$0]  %s215, 2048, %s217, %s204, 128, 128, 8
        $region32: #{mlfn_block_forward.4} parent=27 // pred_fallthru
          _
      $region28: #{mlfn_block_forward.4} parent=5 // pred_fallthru
        _
      %p223 = scmp.le.s32.totalorder 1, %s15
      %p224 = scmp.lt.s32.totalorder %s15, 5
      %p225 = pnand %p223, %p224
      %p226 = pneg %p225
      // Predicated region
      $region33: #{mlfn_block_forward.4} parent=5 // pred_check
        _
      $region34: #{mlfn_block_forward.4} parent=5 // pred_check_branch
        %228 = sbr.rel (%p225) target = $region36
      $region35: #{mlfn_block_forward.4} parent=5 // pred_region
        %s229 = ssub.s32 %s15, 1
        %s230 = sand.u32 %s42, 1
        %s231 = scalar_lea.sflag [#allocation3], %s230
        %s232 = sand.u32 %s42, 1
        %s233 = smul.addr %s232, 128
        %s234 = scalar_lea.vmem [#allocation2], %s233
        // Predicated region
        $region37: #{mlfn_block_forward.4} parent=35 // pred_check
          %p235 = pneg %p55
        $region38: #{mlfn_block_forward.4} parent=35 // pred_check_branch
          %237 = sbr.rel (%p235) target = $region40
        $region39: #{mlfn_block_forward.4} parent=35 // pred_region
          %238 = dma.done %s231, 2048
        $region40: #{mlfn_block_forward.4} parent=35 // pred_fallthru
          _
        %s239 = sand.u32 %s42, 1
        %s240 = scalar_lea.sflag [#allocation3], %s239
        %s241 = sand.u32 %s42, 1
        %s242 = smul.addr %s241, 128
        %s243 = scalar_lea.vmem [#allocation2], %s242
        %p244 = pneg %p55
        %p245 = pneg %p52
        %p246 = pneg %p76
        %p247 = pneg %p73
        %p248 = pneg %p97
        %p249 = pneg %p94
        %p250 = pneg %p118
        %p251 = pneg %p115
        %p252 = pneg %p146
        %p253 = pneg %p143
        %s254 = smul.u32 16, %s25
        %p255 = scmp.lt.s32.totalorder %s24, 1
        %s256 = scalar_select %p255, %s24, 1
        %p257 = scmp.lt.s32.totalorder %s254, 31
        %s258 = scalar_select %p257, %s254, 31
        %s259 = smul.addr %s256, 32
        %s260 = sadd.s32 %s258, %s259
        %s261 = smul.addr %s260, 4
        %s262 = scalar_lea.vmem %s4, %s261
        %p263 = pneg %p172
        %p264 = pneg %p169
        %p265 = scmp.lt.s32.totalorder %s24, 1
        %s266 = scalar_select %p265, %s24, 1
        %s267 = scalar_lea.vmem %s5, %s266
        %s268 = smul.u32 16, %s25
        %s269 = smul.u32 16, %s25
        %p270 = scmp.lt.s32.totalorder %s24, 1
        %s271 = scalar_select %p270, %s24, 1
        %p272 = scmp.lt.s32.totalorder %s269, 31
        %s273 = scalar_select %p272, %s269, 31
        %s274 = smul.addr %s271, 32
        %s275 = sadd.s32 %s273, %s274
        %s276 = smul.addr %s275, 4
        %s277 = scalar_lea.vmem %s4, %s276
        %s278 = smul.u32 16, %s25
        %p279 = scmp.lt.s32.totalorder %s24, 1
        %s280 = scalar_select %p279, %s24, 1
        %s281 = scalar_lea.vmem %s5, %s280
        %v283 = vld [vmem:[%s234] sm:$0xff]
        %v284 = vld [vmem:[%s234 + $0x8] sm:$0xff]
        %v285 = vld [vmem:[%s234 + $0x10] sm:$0xff]
        %v286 = vld [vmem:[%s234 + $0x18] sm:$0xff]
        %v287 = vld [vmem:[%s234 + $0x20] sm:$0xff]
        %v288 = vld [vmem:[%s234 + $0x28] sm:$0xff]
        %v289 = vld [vmem:[%s234 + $0x30] sm:$0xff]
        %v290 = vld [vmem:[%s234 + $0x38] sm:$0xff]
        %v291 = vld [vmem:[%s234 + $0x40] sm:$0xff]
        %v292 = vld [vmem:[%s234 + $0x48] sm:$0xff]
        %v293 = vld [vmem:[%s234 + $0x50] sm:$0xff]
        %v294 = vld [vmem:[%s234 + $0x58] sm:$0xff]
        %v295 = vld [vmem:[%s234 + $0x60] sm:$0xff]
        %v296 = vld [vmem:[%s234 + $0x68] sm:$0xff]
        %v297 = vld [vmem:[%s234 + $0x70] sm:$0xff]
        %v298 = vld [vmem:[%s234 + $0x78] sm:$0xff]
        %v299 = vpack.c.bf16 %v284, %v283
        %v300 = vpack.c.bf16 %v286, %v285
        %v301 = vpack.c.bf16 %v288, %v287
        %v302 = vpack.c.bf16 %v290, %v289
        %v303 = vpack.c.bf16 %v292, %v291
        %v304 = vpack.c.bf16 %v294, %v293
        %v305 = vpack.c.bf16 %v296, %v295
        %v306 = vpack.c.bf16 %v298, %v297
        %v307 = vld [vmem:[%s1] sm:$0xf]
        %v308 = vld [vmem:[%s1 + $0x4] sm:$0xf]
        %v309 = vld [vmem:[%s1 + $0x8] sm:$0xf]
        %v310 = vld [vmem:[%s1 + $0xc] sm:$0xf]
        %v311 = vld [vmem:[%s1 + $0x10] sm:$0xf]
        %v312 = vld [vmem:[%s1 + $0x14] sm:$0xf]
        %v313 = vld [vmem:[%s1 + $0x18] sm:$0xf]
        %v314 = vld [vmem:[%s1 + $0x1c] sm:$0xf]
        %v323 = vunpack.c.l.b16 %v307
        %v324 = vunpack.c.l.b16 %v308
        %v325 = vunpack.c.l.b16 %v309
        %v326 = vunpack.c.l.b16 %v310
        %v327 = vunpack.c.l.b16 %v311
        %v328 = vunpack.c.l.b16 %v312
        %v329 = vunpack.c.l.b16 %v313
        %v330 = vunpack.c.l.b16 %v314
        %v331 = vpack.c.b16 %v324, %v323
        %v332 = vpack.c.b16 %v326, %v325
        %v333 = vpack.c.b16 %v328, %v327
        %v334 = vpack.c.b16 %v330, %v329
        %vm339 = vcmask 523264
        %v341 = vsel %vm339, %v299, 0
        %v344 = vsel %vm339, %v300, 0
        %v347 = vsel %vm339, %v301, 0
        %v350 = vsel %vm339, %v302, 0
        %v353 = vsel %vm339, %v303, 0
        %v356 = vsel %vm339, %v304, 0
        %v359 = vsel %vm339, %v305, 0
        %v362 = vsel %vm339, %v306, 0
        %364 = vmatprep.subr.bf16.mxu0 0
        %365 = vmatpush1.bf16.msra.mxu0 %v331
        %366 = vmatprep.subr.bf16.mxu0 0
        %367 = vmatpush1.bf16.msra.mxu0 %v332
        %368 = vmatprep.subr.bf16.mxu0 0
        %369 = vmatpush1.bf16.msra.mxu0 %v333
        %370 = vmatprep.subr.bf16.mxu0 0
        %371 = vmatpush1.bf16.msra.mxu0 %v334
        %372 = vmatprep.subr.bf16.mxu0 0
        %373 = vmatpush1.bf16.msra.mxu0 0
        %374 = vmatprep.subr.bf16.mxu0 0
        %375 = vmatpush1.bf16.msra.mxu0 0
        %376 = vmatprep.subr.bf16.mxu0 0
        %377 = vmatpush1.bf16.msra.mxu0 0
        %378 = vmatprep.subr.bf16.mxu0 0
        %379 = vmatpush1.bf16.msra.mxu0 0
        %380 = vmatprep.subr.bf16.mxu0 0
        %381 = vmatpush1.bf16.msra.mxu0 0
        %382 = vmatprep.subr.bf16.mxu0 0
        %383 = vmatpush1.bf16.msra.mxu0 0
        %384 = vmatprep.subr.bf16.mxu0 0
        %385 = vmatpush1.bf16.msra.mxu0 0
        %386 = vmatprep.subr.bf16.mxu0 0
        %387 = vmatpush1.bf16.msra.mxu0 0
        %388 = vmatprep.subr.bf16.mxu0 0
        %389 = vmatpush1.bf16.msra.mxu0 0
        %390 = vmatprep.subr.bf16.mxu0 0
        %391 = vmatpush1.bf16.msra.mxu0 0
        %392 = vmatprep.subr.bf16.mxu0 0
        %393 = vmatpush1.bf16.msra.mxu0 0
        %394 = vmatprep.subr.bf16.mxu0 0
        %395 = vmatpush1.bf16.msra.mxu0 0
        %396 = vmatprep.mubr.bf16.mxu0 0
        %397 = vmatmul.mubr.bf16.gmra.mrb[0].mxu0 %v341
        %v398 = vpop.f32.mrb[0].mxu0
        %v399 = vadd.f32 0.0, %v398
        %v400 = vpop.f32.mrb[0].mxu0
        %v401 = vpop.f32.mrb[0].mxu0
        %v402 = vadd.f32 0.0, %v401
        %v403 = vpop.f32.mrb[0].mxu0
        %404 = vmatprep.mubr.bf16.mxu0 0
        %405 = vmatmul.mubr.bf16.gmra.mrb[0].mxu0 %v344
        %v406 = vpop.f32.mrb[0].mxu0
        %v407 = vadd.f32 0.0, %v406
        %v408 = vpop.f32.mrb[0].mxu0
        %v409 = vpop.f32.mrb[0].mxu0
        %v410 = vadd.f32 0.0, %v409
        %v411 = vpop.f32.mrb[0].mxu0
        %412 = vmatprep.mubr.bf16.mxu0 0
        %413 = vmatmul.mubr.bf16.gmra.mrb[0].mxu0 %v347
        %v414 = vpop.f32.mrb[0].mxu0
        %v415 = vadd.f32 0.0, %v414
        %v416 = vpop.f32.mrb[0].mxu0
        %v417 = vpop.f32.mrb[0].mxu0
        %v418 = vadd.f32 0.0, %v417
        %v419 = vpop.f32.mrb[0].mxu0
        %420 = vmatprep.mubr.bf16.mxu0 0
        %421 = vmatmul.mubr.bf16.gmra.mrb[0].mxu0 %v350
        %v422 = vpop.f32.mrb[0].mxu0
        %v423 = vadd.f32 0.0, %v422
        %v424 = vpop.f32.mrb[0].mxu0
        %v425 = vpop.f32.mrb[0].mxu0
        %v426 = vadd.f32 0.0, %v425
        %v427 = vpop.f32.mrb[0].mxu0
        %428 = vmatprep.mubr.bf16.mxu0 0
        %429 = vmatmul.mubr.bf16.gmra.mrb[0].mxu0 %v353
        %v430 = vpop.f32.mrb[0].mxu0
        %v431 = vadd.f32 0.0, %v430
        %v432 = vpop.f32.mrb[0].mxu0
        %v433 = vpop.f32.mrb[0].mxu0
        %v434 = vadd.f32 0.0, %v433
        %v435 = vpop.f32.mrb[0].mxu0
        %436 = vmatprep.mubr.bf16.mxu0 0
        %437 = vmatmul.mubr.bf16.gmra.mrb[0].mxu0 %v356
        %v438 = vpop.f32.mrb[0].mxu0
        %v439 = vadd.f32 0.0, %v438
        %v440 = vpop.f32.mrb[0].mxu0
        %v441 = vpop.f32.mrb[0].mxu0
        %v442 = vadd.f32 0.0, %v441
        %v443 = vpop.f32.mrb[0].mxu0
        %444 = vmatprep.mubr.bf16.mxu0 0
        %445 = vmatmul.mubr.bf16.gmra.mrb[0].mxu0 %v359
        %v446 = vpop.f32.mrb[0].mxu0
        %v447 = vadd.f32 0.0, %v446
        %v448 = vpop.f32.mrb[0].mxu0
        %v449 = vpop.f32.mrb[0].mxu0
        %v450 = vadd.f32 0.0, %v449
        %v451 = vpop.f32.mrb[0].mxu0
        %452 = vmatprep.mubr.bf16.mxu0 0
        %453 = vmatmul.mubr.bf16.gmra.mrb[0].mxu0 %v362
        %v454 = vpop.f32.mrb[0].mxu0
        %v455 = vadd.f32 0.0, %v454
        %v456 = vpop.f32.mrb[0].mxu0
        %v457 = vpop.f32.mrb[0].mxu0
        %v458 = vadd.f32 0.0, %v457
        %v459 = vpop.f32.mrb[0].mxu0
        %460 = vdwg.mxu0
        %v461 = vld [vmem:[%s2] sm:$0x1]
        %v463 = vlaneseq
        %v464 = vshrl.u32 %v463, 7
        %v465 = vsub.s32 0, %v464
        %v466 = vrot.slane %v461, %v465
        %v468 = vmul.f32 %v399, %v466
        %v469 = vmul.f32 %v402, %v466
        %v470 = vmul.f32 %v407, %v466
        %v471 = vmul.f32 %v410, %v466
        %v472 = vmul.f32 %v415, %v466
        %v473 = vmul.f32 %v418, %v466
        %v474 = vmul.f32 %v423, %v466
        %v475 = vmul.f32 %v426, %v466
        %v476 = vmul.f32 %v431, %v466
        %v477 = vmul.f32 %v434, %v466
        %v478 = vmul.f32 %v439, %v466
        %v479 = vmul.f32 %v442, %v466
        %v480 = vmul.f32 %v447, %v466
        %v481 = vmul.f32 %v450, %v466
        %v482 = vmul.f32 %v455, %v466
        %v483 = vmul.f32 %v458, %v466
        %v484 = vld [vmem:[%s3] sm:$0x1]
        %v486 = vlaneseq
        %v487 = vshrl.u32 %v486, 7
        %v488 = vsub.s32 0, %v487
        %v489 = vrot.slane %v484, %v488
        %v491 = vadd.f32 %v468, %v489
        %v492 = vadd.f32 %v469, %v489
        %v493 = vadd.f32 %v470, %v489
        %v494 = vadd.f32 %v471, %v489
        %v495 = vadd.f32 %v472, %v489
        %v496 = vadd.f32 %v473, %v489
        %v497 = vadd.f32 %v474, %v489
        %v498 = vadd.f32 %v475, %v489
        %v499 = vadd.f32 %v476, %v489
        %v500 = vadd.f32 %v477, %v489
        %v501 = vadd.f32 %v478, %v489
        %v502 = vadd.f32 %v479, %v489
        %v503 = vadd.f32 %v480, %v489
        %v504 = vadd.f32 %v481, %v489
        %v505 = vadd.f32 %v482, %v489
        %v506 = vadd.f32 %v483, %v489
        %v507 = vmax.f32 %v491, 0.0
        %v508 = vmax.f32 %v492, 0.0
        %v509 = vmax.f32 %v493, 0.0
        %v510 = vmax.f32 %v494, 0.0
        %v511 = vmax.f32 %v495, 0.0
        %v512 = vmax.f32 %v496, 0.0
        %v513 = vmax.f32 %v497, 0.0
        %v514 = vmax.f32 %v498, 0.0
        %v515 = vmax.f32 %v499, 0.0
        %v516 = vmax.f32 %v500, 0.0
        %v517 = vmax.f32 %v501, 0.0
        %v518 = vmax.f32 %v502, 0.0
        %v519 = vmax.f32 %v503, 0.0
        %v520 = vmax.f32 %v504, 0.0
        %v521 = vmax.f32 %v505, 0.0
        %v522 = vmax.f32 %v506, 0.0
        %v523 = vpack.c.bf16 %v508, %v507
        %v524 = vpack.c.bf16 %v510, %v509
        %v525 = vpack.c.bf16 %v512, %v511
        %v526 = vpack.c.bf16 %v514, %v513
        %v527 = vpack.c.bf16 %v516, %v515
        %v528 = vpack.c.bf16 %v518, %v517
        %v529 = vpack.c.bf16 %v520, %v519
        %v530 = vpack.c.bf16 %v522, %v521
        %v539 = vunpack.c.l.b16 %v523
        %v540 = vunpack.c.h.b16 %v523
        %v541 = vunpack.c.l.b16 %v524
        %v542 = vunpack.c.h.b16 %v524
        %v543 = vunpack.c.l.b16 %v525
        %v544 = vunpack.c.h.b16 %v525
        %v545 = vunpack.c.l.b16 %v526
        %v546 = vunpack.c.h.b16 %v526
        %v547 = vunpack.c.l.b16 %v527
        %v548 = vunpack.c.h.b16 %v527
        %v549 = vunpack.c.l.b16 %v528
        %v550 = vunpack.c.h.b16 %v528
        %v551 = vunpack.c.l.b16 %v529
        %v552 = vunpack.c.h.b16 %v529
        %v553 = vunpack.c.l.b16 %v530
        %v554 = vunpack.c.h.b16 %v530
        %v555 = vpack.c.b16 %v539, %v539
        %v556 = vpack.c.b16 %v540, %v540
        %v557 = vpack.c.b16 %v541, %v541
        %v558 = vpack.c.b16 %v542, %v542
        %v559 = vpack.c.b16 %v543, %v543
        %v560 = vpack.c.b16 %v544, %v544
        %v561 = vpack.c.b16 %v545, %v545
        %v562 = vpack.c.b16 %v546, %v546
        %v563 = vpack.c.b16 %v547, %v547
        %v564 = vpack.c.b16 %v548, %v548
        %v565 = vpack.c.b16 %v549, %v549
        %v566 = vpack.c.b16 %v550, %v550
        %v567 = vpack.c.b16 %v551, %v551
        %v568 = vpack.c.b16 %v552, %v552
        %v569 = vpack.c.b16 %v553, %v553
        %v570 = vpack.c.b16 %v554, %v554
        %vm587 = vcmask 519168
        %588 = vst.msk [vmem:[%s277] sm:$0xf] %vm587, %v555
        %589 = vst.msk [vmem:[%s277 + $0x4] sm:$0xf] %vm587, %v556
        %590 = vst.msk [vmem:[%s277 + $0x8] sm:$0xf] %vm587, %v557
        %591 = vst.msk [vmem:[%s277 + $0xc] sm:$0xf] %vm587, %v558
        %592 = vst.msk [vmem:[%s277 + $0x10] sm:$0xf] %vm587, %v559
        %593 = vst.msk [vmem:[%s277 + $0x14] sm:$0xf] %vm587, %v560
        %594 = vst.msk [vmem:[%s277 + $0x18] sm:$0xf] %vm587, %v561
        %595 = vst.msk [vmem:[%s277 + $0x1c] sm:$0xf] %vm587, %v562
        %596 = vst.msk [vmem:[%s277 + $0x20] sm:$0xf] %vm587, %v563
        %597 = vst.msk [vmem:[%s277 + $0x24] sm:$0xf] %vm587, %v564
        %598 = vst.msk [vmem:[%s277 + $0x28] sm:$0xf] %vm587, %v565
        %599 = vst.msk [vmem:[%s277 + $0x2c] sm:$0xf] %vm587, %v566
        %600 = vst.msk [vmem:[%s277 + $0x30] sm:$0xf] %vm587, %v567
        %601 = vst.msk [vmem:[%s277 + $0x34] sm:$0xf] %vm587, %v568
        %602 = vst.msk [vmem:[%s277 + $0x38] sm:$0xf] %vm587, %v569
        %603 = vst.msk [vmem:[%s277 + $0x3c] sm:$0xf] %vm587, %v570
        %p604 = scmp.eq.s32.totalorder %s25, 0
        // Predicated region
        $region41: #{mlfn_block_forward.4} parent=35 // pred_check
          %p605 = pneg %p604
        $region42: #{mlfn_block_forward.4} parent=35 // pred_check_branch
          %607 = sbr.rel (%p605) target = $region44
        $region43: #{mlfn_block_forward.4} parent=35 // pred_region
          %vm608 = vcmask 516096
          %609 = vst.msk [vmem:[%s281] sm:$0x1] %vm608, 0.0
        $region44: #{mlfn_block_forward.4} parent=35 // pred_fallthru
          _
        %v610 = vld [vmem:[%s281] sm:$0x1]
        %v611 = vsel %vm339, %v283, 0.0
        %v612 = vsel %vm339, %v284, 0.0
        %v613 = vadd.f32 %v611, %v612
        %v614 = vsel %vm339, %v285, 0.0
        %v615 = vadd.f32 %v613, %v614
        %v616 = vsel %vm339, %v286, 0.0
        %v617 = vadd.f32 %v615, %v616
        %v618 = vsel %vm339, %v287, 0.0
        %v619 = vadd.f32 %v617, %v618
        %v620 = vsel %vm339, %v288, 0.0
        %v621 = vadd.f32 %v619, %v620
        %v622 = vsel %vm339, %v289, 0.0
        %v623 = vadd.f32 %v621, %v622
        %v624 = vsel %vm339, %v290, 0.0
        %v625 = vadd.f32 %v623, %v624
        %v626 = vsel %vm339, %v291, 0.0
        %v627 = vadd.f32 %v625, %v626
        %v628 = vsel %vm339, %v292, 0.0
        %v629 = vadd.f32 %v627, %v628
        %v630 = vsel %vm339, %v293, 0.0
        %v631 = vadd.f32 %v629, %v630
        %v632 = vsel %vm339, %v294, 0.0
        %v633 = vadd.f32 %v631, %v632
        %v634 = vsel %vm339, %v295, 0.0
        %v635 = vadd.f32 %v633, %v634
        %v636 = vsel %vm339, %v296, 0.0
        %v637 = vadd.f32 %v635, %v636
        %v638 = vsel %vm339, %v297, 0.0
        %v639 = vadd.f32 %v637, %v638
        %v640 = vsel %vm339, %v298, 0.0
        %v641 = vadd.f32 %v639, %v640
        %v642 = vrot.slane %v641, 4
        %v643 = vadd.f32 %v641, %v642
        %v644 = vrot.slane %v643, 2
        %v645 = vadd.f32 %v643, %v644
        %v646 = vrot.slane %v645, 1
        %v647 = vadd.f32 %v645, %v646
        %v648 = vadd.f32 %v610, %v647
        %vm649 = vcmask 516096
        %650 = vst.msk [vmem:[%s281] sm:$0x1] %vm649, %v648
        %s651 = smul.u32 16, %s25
        %p652 = scmp.lt.s32.totalorder %s24, 1
        %s653 = scalar_select %p652, %s24, 1
        %p654 = scmp.lt.s32.totalorder %s651, 31
        %s655 = scalar_select %p654, %s651, 31
        %s656 = smul.addr %s653, 32
        %s657 = sadd.s32 %s655, %s656
        %s658 = smul.addr %s657, 4
        %s659 = scalar_lea.vmem %s4, %s658
        %p660 = scmp.lt.s32.totalorder %s24, 1
        %s661 = scalar_select %p660, %s24, 1
        %s662 = scalar_lea.vmem %s5, %s661
        // Predicated region
        $region45: #{mlfn_block_forward.4} parent=35 // pred_check
          %p663 = pneg %p143
        $region46: #{mlfn_block_forward.4} parent=35 // pred_check_branch
          %665 = sbr.rel (%p663) target = $region48
        $region47: #{mlfn_block_forward.4} parent=35 // pred_region
          %s666 = smul.u32 16, %s25
        $region48: #{mlfn_block_forward.4} parent=35 // pred_fallthru
          _
        // Predicated region
        $region49: #{mlfn_block_forward.4} parent=35 // pred_check
          %p667 = pneg %p169
        $region50: #{mlfn_block_forward.4} parent=35 // pred_check_branch
          %669 = sbr.rel (%p667) target = $region52
        $region51: #{mlfn_block_forward.4} parent=35 // pred_region
          _
        $region52: #{mlfn_block_forward.4} parent=35 // pred_fallthru
          _
      $region36: #{mlfn_block_forward.4} parent=5 // pred_fallthru
        _
      %p670 = scmp.le.s32.totalorder 2, %s15
      // Predicated region
      $region53: #{mlfn_block_forward.4} parent=5 // pred_check
        %p671 = pneg %p670
      $region54: #{mlfn_block_forward.4} parent=5 // pred_check_branch
        %673 = sbr.rel (%p671) target = $region56
      $region55: #{mlfn_block_forward.4} parent=5 // pred_region
        %s674 = ssub.s32 %s15, 2
        // Predicated region
        $region57: #{mlfn_block_forward.4} parent=55 // pred_check
          %p675 = pneg %p149
        $region58: #{mlfn_block_forward.4} parent=55 // pred_check_branch
          %677 = sbr.rel (%p675) target = $region60
        $region59: #{mlfn_block_forward.4} parent=55 // pred_region
          %s678 = smul.u32 16, %s27
          %p679 = scmp.lt.s32.totalorder %s26, 1
          %s680 = scalar_select %p679, %s26, 1
          %p681 = scmp.lt.s32.totalorder %s678, 31
          %s682 = scalar_select %p681, %s678, 31
          %s683 = smul.addr %s680, 32
          %s684 = sadd.s32 %s682, %s683
          %s685 = smul.addr %s684, 4
          %s686 = scalar_lea.vmem %s4, %s685
        $region60: #{mlfn_block_forward.4} parent=55 // pred_fallthru
          _
        // Predicated region
        $region61: #{mlfn_block_forward.4} parent=55 // pred_check
          %p687 = pneg %p175
        $region62: #{mlfn_block_forward.4} parent=55 // pred_check_branch
          %689 = sbr.rel (%p687) target = $region64
        $region63: #{mlfn_block_forward.4} parent=55 // pred_region
          %p690 = scmp.lt.s32.totalorder %s26, 1
          %s691 = scalar_select %p690, %s26, 1
          %s692 = scalar_lea.vmem %s5, %s691
        $region64: #{mlfn_block_forward.4} parent=55 // pred_fallthru
          _
      $region56: #{mlfn_block_forward.4} parent=5 // pred_fallthru
        _
    $region6: #{mlfn_block_forward.4} parent=1 // loop_footer
      %s19 = sadd.s32 1, %s15
    $region7: #{mlfn_block_forward.4} parent=1 // loop_footer_branch
      %14 = sbr.rel target = $region3
    $region8: #{mlfn_block_forward.4} parent=1 // loop_exit
      _
    %693 = vsyncpa [#allocation3], 1
    %s694 = scalar_lea.sflag [#allocation3], 1
    %695 = vsyncpa %s694, 1

// kernel: mlfn_block_forward.6
$region0: #{mlfn_block_forward.6}
  #allocation0 [shape = 'u32[]', space=smem, size = 0x4, offset = 0x4, fixed_abs, tag = 'smem constant byte address 0x4 - core index']
  #allocation1 [shape = 'u32[144,128]{1,0:T(1,128)}', space=vmem, size = 0x12000, scoped, tag = 'internal scratch']
  %s0 = inlined_call_operand.vmem [shape: bf16[2,1,342,64], index: 0, kind: input, shape index: {}]
  %s1 = inlined_call_operand.vmem [shape: bf16[9,64,64], index: 1, kind: input, shape index: {}]
  %s2 = inlined_call_operand.vmem [shape: f32[1,64], index: 2, kind: input, shape index: {}]
  %s3 = inlined_call_operand.vmem [shape: f32[1,64], index: 3, kind: input, shape index: {}]
  %s4 = inlined_call_operand.vmem [shape: f32[2,1,64], index: 4, kind: input, shape index: {}]
  %s5 = inlined_call_operand.vmem [shape: bf16[2,288,64], index: 5, kind: output, shape index: {}]
  %s6 = sld [smem:[#allocation0]]
  $region53: #{mlfn_block_forward.6} parent=0
    _
  %s8 = ssub.s32 1, %s6
  %s9 = scalar_select 0, %s8, %s6
  loop: start=0, step=1, limit=8
  $region2: #{mlfn_block_forward.6} parent=0 // loop_pre_header
    _
  $region3: #{mlfn_block_forward.6} parent=0 // loop_header
    %s11 = sphi 0, %s15
    %p12 = scmp.ge.s32.totalorder %s11, 8
    %s18 = sphi 0, %s30
    %s19 = sphi 0, %s26
    %s20 = sphi 0, %s18
    %s21 = sphi 0, %s19
    %s22 = sphi 0, %s20
    %s23 = sphi 0, %s21
    %s33 = sphi 0, %s35
    %s36 = sphi 0, %s33
    %s37 = sphi 0, %s36
    %s53 = sphi 0, %s37
    %s57 = sphi 0, %s57
    %s59 = sphi 0, %s57
    %s60 = sphi 0, %s59
    %s74 = sphi 0, %s60
    %s78 = sphi 0, %s78
    %s80 = sphi 0, %s78
    %s81 = sphi 0, %s80
    %s95 = sphi 0, %s81
    %s99 = sphi 0, %s99
    %s101 = sphi 0, %s99
    %s102 = sphi 0, %s101
    %s116 = sphi 0, %s102
    %s122 = sphi 0, %s124
    %s125 = sphi 0, %s122
    %s126 = sphi 0, %s125
    %s142 = sphi 0, %s126
    %s150 = sphi 0, %s152
    %s153 = sphi 0, %s150
    %s154 = sphi 0, %s153
    %s170 = sphi 0, %s154
  $region4: #{mlfn_block_forward.6} parent=0 // loop_header_branch
    %14 = sbr.rel (%p12) target = $region8
  $region5: #{mlfn_block_forward.6} parent=0 // loop_body
    %s16 = ssub.s32 %s11, 1
    %s17 = ssub.s32 %s11, 2
    %s24 = sadd.s32 1, %s19
    %p25 = scmp.ge.s32.totalorder %s24, 3
    %s26 = scalar_select %p25, 0, %s24
    %s27 = sadd.s32 1, %s18
    %s28 = scalar_select %p25, %s27, %s18
    %p29 = scmp.ge.s32.totalorder %s28, 2
    %s30 = scalar_select %p29, 0, %s28
    %s31 = ssub.s32 %s18, %s30
    %p32 = scmp.eq.s32.totalorder %s31, 0
    %s34 = sadd.s32 %s33, 1
    %s35 = scalar_select %p32, %s33, %s34
    %p38 = pneg %p32
    %p39 = scmp.eq.s32.totalorder %s11, 5
    %p40 = por %p38, %p39
    %p41 = scmp.ne.s32.totalorder %s33, %s36
    %p42 = scmp.eq.s32.totalorder %s11, 0
    %p43 = por %p41, %p42
    %p44 = scmp.ne.s32.totalorder %s33, %s36
    %p45 = scmp.eq.s32.totalorder %s16, 5
    %p46 = por %p44, %p45
    %p47 = scmp.ne.s32.totalorder %s36, %s37
    %p48 = scmp.eq.s32.totalorder %s16, 0
    %p49 = por %p47, %p48
    %p50 = scmp.ne.s32.totalorder %s36, %s37
    %p51 = scmp.eq.s32.totalorder %s17, 5
    %p52 = por %p50, %p51
    %p54 = scmp.ne.s32.totalorder %s37, %s53
    %p55 = scmp.eq.s32.totalorder %s17, 0
    %p56 = por %p54, %p55
    %s58 = sadd.s32 %s57, 1
    %p61 = scmp.eq.s32.totalorder %s11, 5
    %p62 = scmp.ne.s32.totalorder %s57, %s59
    %p63 = scmp.eq.s32.totalorder %s11, 0
    %p64 = por %p62, %p63
    %p65 = scmp.ne.s32.totalorder %s57, %s59
    %p66 = scmp.eq.s32.totalorder %s16, 5
    %p67 = por %p65, %p66
    %p68 = scmp.ne.s32.totalorder %s59, %s60
    %p69 = scmp.eq.s32.totalorder %s16, 0
    %p70 = por %p68, %p69
    %p71 = scmp.ne.s32.totalorder %s59, %s60
    %p72 = scmp.eq.s32.totalorder %s17, 5
    %p73 = por %p71, %p72
    %p75 = scmp.ne.s32.totalorder %s60, %s74
    %p76 = scmp.eq.s32.totalorder %s17, 0
    %p77 = por %p75, %p76
    %s79 = sadd.s32 %s78, 1
    %p82 = scmp.eq.s32.totalorder %s11, 5
    %p83 = scmp.ne.s32.totalorder %s78, %s80
    %p84 = scmp.eq.s32.totalorder %s11, 0
    %p85 = por %p83, %p84
    %p86 = scmp.ne.s32.totalorder %s78, %s80
    %p87 = scmp.eq.s32.totalorder %s16, 5
    %p88 = por %p86, %p87
    %p89 = scmp.ne.s32.totalorder %s80, %s81
    %p90 = scmp.eq.s32.totalorder %s16, 0
    %p91 = por %p89, %p90
    %p92 = scmp.ne.s32.totalorder %s80, %s81
    %p93 = scmp.eq.s32.totalorder %s17, 5
    %p94 = por %p92, %p93
    %p96 = scmp.ne.s32.totalorder %s81, %s95
    %p97 = scmp.eq.s32.totalorder %s17, 0
    %p98 = por %p96, %p97
    %s100 = sadd.s32 %s99, 1
    %p103 = scmp.eq.s32.totalorder %s11, 5
    %p104 = scmp.ne.s32.totalorder %s99, %s101
    %p105 = scmp.eq.s32.totalorder %s11, 0
    %p106 = por %p104, %p105
    %p107 = scmp.ne.s32.totalorder %s99, %s101
    %p108 = scmp.eq.s32.totalorder %s16, 5
    %p109 = por %p107, %p108
    %p110 = scmp.ne.s32.totalorder %s101, %s102
    %p111 = scmp.eq.s32.totalorder %s16, 0
    %p112 = por %p110, %p111
    %p113 = scmp.ne.s32.totalorder %s101, %s102
    %p114 = scmp.eq.s32.totalorder %s17, 5
    %p115 = por %p113, %p114
    %p117 = scmp.ne.s32.totalorder %s102, %s116
    %p118 = scmp.eq.s32.totalorder %s17, 0
    %p119 = por %p117, %p118
    %s120 = ssub.s32 %s18, %s30
    %p121 = scmp.eq.s32.totalorder %s120, 0
    %s123 = sadd.s32 %s122, 1
    %s124 = scalar_select %p121, %s122, %s123
    %p127 = pneg %p121
    %p128 = scmp.eq.s32.totalorder %s11, 5
    %p129 = por %p127, %p128
    %p130 = scmp.ne.s32.totalorder %s122, %s125
    %p131 = scmp.eq.s32.totalorder %s11, 0
    %p132 = por %p130, %p131
    %p133 = scmp.ne.s32.totalorder %s122, %s125
    %p134 = scmp.eq.s32.totalorder %s16, 5
    %p135 = por %p133, %p134
    %p136 = scmp.ne.s32.totalorder %s125, %s126
    %p137 = scmp.eq.s32.totalorder %s16, 0
    %p138 = por %p136, %p137
    %p139 = scmp.ne.s32.totalorder %s125, %s126
    %p140 = scmp.eq.s32.totalorder %s17, 5
    %p141 = por %p139, %p140
    %p143 = scmp.ne.s32.totalorder %s126, %s142
    %p144 = scmp.eq.s32.totalorder %s17, 0
    %p145 = por %p143, %p144
    %s146 = ssub.s32 %s18, %s30
    %s147 = ssub.s32 %s19, %s26
    %s148 = sor.u32 %s146, %s147
    %p149 = scmp.eq.s32.totalorder %s148, 0
    %s151 = sadd.s32 %s150, 1
    %s152 = scalar_select %p149, %s150, %s151
    %p155 = pneg %p149
    %p156 = scmp.eq.s32.totalorder %s11, 5
    %p157 = por %p155, %p156
    %p158 = scmp.ne.s32.totalorder %s150, %s153
    %p159 = scmp.eq.s32.totalorder %s11, 0
    %p160 = por %p158, %p159
    %p161 = scmp.ne.s32.totalorder %s150, %s153
    %p162 = scmp.eq.s32.totalorder %s16, 5
    %p163 = por %p161, %p162
    %p164 = scmp.ne.s32.totalorder %s153, %s154
    %p165 = scmp.eq.s32.totalorder %s16, 0
    %p166 = por %p164, %p165
    %p167 = scmp.ne.s32.totalorder %s153, %s154
    %p168 = scmp.eq.s32.totalorder %s17, 5
    %p169 = por %p167, %p168
    %p171 = scmp.ne.s32.totalorder %s154, %s170
    %p172 = scmp.eq.s32.totalorder %s17, 0
    %p173 = por %p171, %p172
    %p174 = scmp.le.s32.totalorder 1, %s11
    %p175 = scmp.lt.s32.totalorder %s11, 7
    %p176 = pnand %p174, %p175
    %p177 = pneg %p176
    // Predicated region
    $region9: #{mlfn_block_forward.6} parent=5 // pred_check
      _
    $region10: #{mlfn_block_forward.6} parent=5 // pred_check_branch
      %179 = sbr.rel (%p176) target = $region12
    $region11: #{mlfn_block_forward.6} parent=5 // pred_region
      %s180 = ssub.s32 %s11, 1
      // Predicated region
      $region13: #{mlfn_block_forward.6} parent=11 // pred_check
        %p181 = pneg %p70
      $region14: #{mlfn_block_forward.6} parent=11 // pred_check_branch
        %183 = sbr.rel (%p181) target = $region16
      $region15: #{mlfn_block_forward.6} parent=11 // pred_region
        _
      $region16: #{mlfn_block_forward.6} parent=11 // pred_fallthru
        _
      // Predicated region
      $region17: #{mlfn_block_forward.6} parent=11 // pred_check
        %p184 = pneg %p91
      $region18: #{mlfn_block_forward.6} parent=11 // pred_check_branch
        %186 = sbr.rel (%p184) target = $region20
      $region19: #{mlfn_block_forward.6} parent=11 // pred_region
        _
      $region20: #{mlfn_block_forward.6} parent=11 // pred_fallthru
        _
      // Predicated region
      $region21: #{mlfn_block_forward.6} parent=11 // pred_check
        %p187 = pneg %p112
      $region22: #{mlfn_block_forward.6} parent=11 // pred_check_branch
        %189 = sbr.rel (%p187) target = $region24
      $region23: #{mlfn_block_forward.6} parent=11 // pred_region
        _
      $region24: #{mlfn_block_forward.6} parent=11 // pred_fallthru
        _
    $region12: #{mlfn_block_forward.6} parent=5 // pred_fallthru
      _
    %p190 = scmp.lt.s32.totalorder %s11, 6
    // Predicated region
    $region25: #{mlfn_block_forward.6} parent=5 // pred_check
      %p191 = pneg %p190
    $region26: #{mlfn_block_forward.6} parent=5 // pred_check_branch
      %193 = sbr.rel (%p191) target = $region28
    $region27: #{mlfn_block_forward.6} parent=5 // pred_region
      // Predicated region
      $region29: #{mlfn_block_forward.6} parent=27 // pred_check
        %p194 = pneg %p43
      $region30: #{mlfn_block_forward.6} parent=27 // pred_check_branch
        %196 = sbr.rel (%p194) target = $region32
      $region31: #{mlfn_block_forward.6} parent=27 // pred_region
        %p197 = scmp.lt.s32.totalorder %s18, 1
        %s198 = scalar_select %p197, %s18, 1
        %s199 = smul.addr %s198, 43
        %s200 = smul.addr %s199, 4
        %s201 = scalar_lea.vmem %s0, %s200
      $region32: #{mlfn_block_forward.6} parent=27 // pred_fallthru
        _
      // Predicated region
      $region33: #{mlfn_block_forward.6} parent=27 // pred_check
        %p202 = pneg %p132
      $region34: #{mlfn_block_forward.6} parent=27 // pred_check_branch
        %204 = sbr.rel (%p202) target = $region36
      $region35: #{mlfn_block_forward.6} parent=27 // pred_region
        %p205 = scmp.lt.s32.totalorder %s18, 1
        %s206 = scalar_select %p205, %s18, 1
        %s207 = scalar_lea.vmem %s4, %s206
      $region36: #{mlfn_block_forward.6} parent=27 // pred_fallthru
        _
    $region28: #{mlfn_block_forward.6} parent=5 // pred_fallthru
      _
    %p208 = scmp.le.s32.totalorder 1, %s11
    %p209 = scmp.lt.s32.totalorder %s11, 7
    %p210 = pnand %p208, %p209
    %p211 = pneg %p210
    // Predicated region
    $region37: #{mlfn_block_forward.6} parent=5 // pred_check
      _
    $region38: #{mlfn_block_forward.6} parent=5 // pred_check_branch
      %213 = sbr.rel (%p210) target = $region40
    $region39: #{mlfn_block_forward.6} parent=5 // pred_region
      %s214 = ssub.s32 %s11, 1
      %p215 = scmp.lt.s32.totalorder %s20, 1
      %s216 = scalar_select %p215, %s20, 1
      %s217 = smul.addr %s216, 43
      %s218 = smul.addr %s217, 4
      %s219 = scalar_lea.vmem %s0, %s218
      %p220 = pneg %p49
      %p221 = pneg %p46
      %p222 = pneg %p70
      %p223 = pneg %p67
      %p224 = pneg %p91
      %p225 = pneg %p88
      %p226 = pneg %p112
      %p227 = pneg %p109
      %p228 = scmp.lt.s32.totalorder %s20, 1
      %s229 = scalar_select %p228, %s20, 1
      %s230 = scalar_lea.vmem %s4, %s229
      %p231 = pneg %p138
      %p232 = pneg %p135
      %p233 = pneg %p166
      %p234 = pneg %p163
      %s235 = smul.u32 12, %s21
      %p236 = scmp.lt.s32.totalorder %s20, 1
      %s237 = scalar_select %p236, %s20, 1
      %p238 = scmp.lt.s32.totalorder %s235, 35
      %s239 = scalar_select %p238, %s235, 35
      %s240 = smul.addr %s237, 36
      %s241 = sadd.s32 %s239, %s240
      %s242 = smul.addr %s241, 4
      %s243 = scalar_lea.vmem %s5, %s242
      %p244 = scmp.lt.s32.totalorder %s20, 1
      %s245 = scalar_select %p244, %s20, 1
      %s246 = smul.addr %s245, 43
      %s247 = smul.addr %s246, 4
      %s248 = scalar_lea.vmem %s0, %s247
      %p249 = scmp.lt.s32.totalorder %s20, 1
      %s250 = scalar_select %p249, %s20, 1
      %s251 = scalar_lea.vmem %s4, %s250
      %s252 = smul.u32 12, %s21
      %p253 = scmp.lt.s32.totalorder %s20, 1
      %s254 = scalar_select %p253, %s20, 1
      %p255 = scmp.lt.s32.totalorder %s252, 35
      %s256 = scalar_select %p255, %s252, 35
      %s257 = smul.addr %s254, 36
      %s258 = sadd.s32 %s256, %s257
      %s259 = smul.addr %s258, 4
      %s260 = scalar_lea.vmem %s5, %s259
      %s261 = smul.u32 12, %s21
      %s263 = smul.u32 %s21, 96
      %s264 = sshra.s32 %s263, 3
      %s265 = sand.u32 %s263, 7
      %s266 = smul.addr %s264, 4
      %s267 = scalar_lea.vmem %s248, %s266
      %v268 = vld [vmem:[%s267] sm:$0xf]
      %v269 = vld [vmem:[%s267 + $0x4] sm:$0xf]
      %v270 = vld [vmem:[%s267 + $0x8] sm:$0xf]
      %v271 = vld [vmem:[%s267 + $0xc] sm:$0xf]
      %v272 = vld [vmem:[%s267 + $0x10] sm:$0xf]
      %v273 = vld [vmem:[%s267 + $0x14] sm:$0xf]
      %v274 = vld [vmem:[%s267 + $0x18] sm:$0xf]
      %v275 = vld [vmem:[%s267 + $0x1c] sm:$0xf]
      %v276 = vld [vmem:[%s267 + $0x20] sm:$0xf]
      %v277 = vld [vmem:[%s267 + $0x24] sm:$0xf]
      %v278 = vld [vmem:[%s267 + $0x28] sm:$0xf]
      %v279 = vld [vmem:[%s267 + $0x2c] sm:$0xf]
      %v280 = vld [vmem:[%s267 + $0x30] sm:$0xf]
      %v281 = vld [vmem:[%s267 + $0x34] sm:$0xf]
      %v282 = vld [vmem:[%s267 + $0x38] sm:$0xf]
      %v283 = vld [vmem:[%s267 + $0x3c] sm:$0xf]
      %v284 = vld [vmem:[%s267 + $0x40] sm:$0x7]
      %v285 = vld [vmem:[%s1] sm:$0xf]
      %v286 = vld [vmem:[%s1 + $0x4] sm:$0xf]
      %v287 = vld [vmem:[%s1 + $0x8] sm:$0xf]
      %v288 = vld [vmem:[%s1 + $0xc] sm:$0xf]
      %v289 = vld [vmem:[%s1 + $0x10] sm:$0xf]
      %v290 = vld [vmem:[%s1 + $0x14] sm:$0xf]
      %v291 = vld [vmem:[%s1 + $0x18] sm:$0xf]
      %v292 = vld [vmem:[%s1 + $0x1c] sm:$0xf]
      %s293 = scalar_lea.vmem %s1, 32
      %v294 = vld [vmem:[%s293] sm:$0xf]
      %v295 = vld [vmem:[%s293 + $0x4] sm:$0xf]
      %v296 = vld [vmem:[%s293 + $0x8] sm:$0xf]
      %v297 = vld [vmem:[%s293 + $0xc] sm:$0xf]
      %v298 = vld [vmem:[%s293 + $0x10] sm:$0xf]
      %v299 = vld [vmem:[%s293 + $0x14] sm:$0xf]
      %v300 = vld [vmem:[%s293 + $0x18] sm:$0xf]
      %v301 = vld [vmem:[%s293 + $0x1c] sm:$0xf]
      %v315 = vunpack.c.l.b16 %v268
      %v316 = vunpack.c.l.b16 %v269
      %v317 = vunpack.c.l.b16 %v270
      %v318 = vunpack.c.l.b16 %v271
      %v319 = vunpack.c.l.b16 %v272
      %v320 = vunpack.c.l.b16 %v273
      %v321 = vunpack.c.l.b16 %v274
      %v322 = vunpack.c.l.b16 %v275
      %v323 = vunpack.c.l.b16 %v276
      %v324 = vunpack.c.l.b16 %v277
      %v325 = vunpack.c.l.b16 %v278
      %v326 = vunpack.c.l.b16 %v279
      %v327 = vunpack.c.l.b16 %v280
      %v328 = vpack.c.b16 %v316, %v315
      %v329 = vpack.c.b16 %v318, %v317
      %v330 = vpack.c.b16 %v320, %v319
      %v331 = vpack.c.b16 %v322, %v321
      %v332 = vpack.c.b16 %v324, %v323
      %v333 = vpack.c.b16 %v326, %v325
      %v334 = vpack.c.b16 %v327, %v327
      %vm335 = vsmask.f32 7424
      %v337 = vshrl.u32 %v328, 16
      %v339 = vshll.u32 %v328, 16
      %v341 = vrot.slane %v339, 1
      %v342 = vor.u32 %v337, %v341
      %v344 = vshll.u32 %v329, 16
      %v346 = vrot.slane %v344, 1
      %v347 = vsel %vm335, %v342, %v346
      %v348 = vshrl.u32 %v329, 16
      %v350 = vor.u32 %v348, %v346
      %v352 = vshll.u32 %v330, 16
      %v354 = vrot.slane %v352, 1
      %v355 = vsel %vm335, %v350, %v354
      %v356 = vshrl.u32 %v330, 16
      %v358 = vor.u32 %v356, %v354
      %v360 = vshll.u32 %v331, 16
      %v362 = vrot.slane %v360, 1
      %v363 = vsel %vm335, %v358, %v362
      %v364 = vshrl.u32 %v331, 16
      %v366 = vor.u32 %v364, %v362
      %v368 = vshll.u32 %v332, 16
      %v370 = vrot.slane %v368, 1
      %v371 = vsel %vm335, %v366, %v370
      %v372 = vshrl.u32 %v332, 16
      %v374 = vor.u32 %v372, %v370
      %v376 = vshll.u32 %v333, 16
      %v378 = vrot.slane %v376, 1
      %v379 = vsel %vm335, %v374, %v378
      %v380 = vshrl.u32 %v333, 16
      %v382 = vor.u32 %v380, %v378
      %v384 = vshll.u32 %v334, 16
      %v386 = vrot.slane %v384, 1
      %v387 = vsel %vm335, %v382, %v386
      %v396 = vunpack.c.l.b16 %v294
      %v397 = vunpack.c.l.b16 %v295
      %v398 = vunpack.c.l.b16 %v296
      %v399 = vunpack.c.l.b16 %v297
      %v400 = vunpack.c.l.b16 %v298
      %v401 = vunpack.c.l.b16 %v299
      %v402 = vunpack.c.l.b16 %v300
      %v403 = vunpack.c.l.b16 %v301
      %v404 = vpack.c.b16 %v397, %v396
      %v405 = vpack.c.b16 %v399, %v398
      %v406 = vpack.c.b16 %v401, %v400
      %v407 = vpack.c.b16 %v403, %v402
      %vm412 = vcmask 523264
      %v414 = vsel %vm412, %v347, 0
      %v417 = vsel %vm412, %v355, 0
      %v420 = vsel %vm412, %v363, 0
      %v423 = vsel %vm412, %v371, 0
      %v426 = vsel %vm412, %v379, 0
      %v429 = vsel %vm412, %v387, 0
      %431 = vmatprep.subr.bf16.mxu0 0
      %432 = vmatpush1.bf16.msra.mxu0 %v404
      %433 = vmatprep.subr.bf16.mxu0 0
      %434 = vmatpush1.bf16.msra.mxu0 %v405
      %435 = vmatprep.subr.bf16.mxu0 0
      %436 = vmatpush1.bf16.msra.mxu0 %v406
      %437 = vmatprep.subr.bf16.mxu0 0
      %438 = vmatpush1.bf16.msra.mxu0 %v407
      %439 = vmatprep.subr.bf16.mxu0 0
      %440 = vmatpush1.bf16.msra.mxu0 0
      %441 = vmatprep.subr.bf16.mxu0 0
      %442 = vmatpush1.bf16.msra.mxu0 0
      %443 = vmatprep.subr.bf16.mxu0 0
      %444 = vmatpush1.bf16.msra.mxu0 0
      %445 = vmatprep.subr.bf16.mxu0 0
      %446 = vmatpush1.bf16.msra.mxu0 0
      %447 = vmatprep.subr.bf16.mxu0 0
      %448 = vmatpush1.bf16.msra.mxu0 0
      %449 = vmatprep.subr.bf16.mxu0 0
      %450 = vmatpush1.bf16.msra.mxu0 0
      %451 = vmatprep.subr.bf16.mxu0 0
      %452 = vmatpush1.bf16.msra.mxu0 0
      %453 = vmatprep.subr.bf16.mxu0 0
      %454 = vmatpush1.bf16.msra.mxu0 0
      %455 = vmatprep.subr.bf16.mxu0 0
      %456 = vmatpush1.bf16.msra.mxu0 0
      %457 = vmatprep.subr.bf16.mxu0 0
      %458 = vmatpush1.bf16.msra.mxu0 0
      %459 = vmatprep.subr.bf16.mxu0 0
      %460 = vmatpush1.bf16.msra.mxu0 0
      %461 = vmatprep.subr.bf16.mxu0 0
      %462 = vmatpush1.bf16.msra.mxu0 0
      %463 = vmatprep.mubr.bf16.mxu0 0
      %464 = vmatmul.mubr.bf16.gmra.mrb[0].mxu0 %v414
      %v465 = vpop.f32.mrb[0].mxu0
      %v466 = vadd.f32 0.0, %v465
      %v467 = vpop.f32.mrb[0].mxu0
      %v468 = vpop.f32.mrb[0].mxu0
      %v469 = vadd.f32 0.0, %v468
      %v470 = vpop.f32.mrb[0].mxu0
      %471 = vmatprep.mubr.bf16.mxu0 0
      %472 = vmatmul.mubr.bf16.gmra.mrb[0].mxu0 %v417
      %v473 = vpop.f32.mrb[0].mxu0
      %v474 = vadd.f32 0.0, %v473
      %v475 = vpop.f32.mrb[0].mxu0
      %v476 = vpop.f32.mrb[0].mxu0
      %v477 = vadd.f32 0.0, %v476
      %v478 = vpop.f32.mrb[0].mxu0
      %479 = vmatprep.mubr.bf16.mxu0 0
      %480 = vmatmul.mubr.bf16.gmra.mrb[0].mxu0 %v420
      %v481 = vpop.f32.mrb[0].mxu0
      %v482 = vadd.f32 0.0, %v481
      %v483 = vpop.f32.mrb[0].mxu0
      %v484 = vpop.f32.mrb[0].mxu0
      %v485 = vadd.f32 0.0, %v484
      %v486 = vpop.f32.mrb[0].mxu0
      %487 = vmatprep.mubr.bf16.mxu0 0
      %488 = vmatmul.mubr.bf16.gmra.mrb[0].mxu0 %v423
      %v489 = vpop.f32.mrb[0].mxu0
      %v490 = vadd.f32 0.0, %v489
      %v491 = vpop.f32.mrb[0].mxu0
      %v492 = vpop.f32.mrb[0].mxu0
      %v493 = vadd.f32 0.0, %v492
      %v494 = vpop.f32.mrb[0].mxu0
      %495 = vmatprep.mubr.bf16.mxu0 0
      %496 = vmatmul.mubr.bf16.gmra.mrb[0].mxu0 %v426
      %v497 = vpop.f32.mrb[0].mxu0
      %v498 = vadd.f32 0.0, %v497
      %v499 = vpop.f32.mrb[0].mxu0
      %v500 = vpop.f32.mrb[0].mxu0
      %v501 = vadd.f32 0.0, %v500
      %v502 = vpop.f32.mrb[0].mxu0
      %503 = vmatprep.mubr.bf16.mxu0 0
      %504 = vmatmul.mubr.bf16.gmra.mrb[0].mxu0 %v429
      %v505 = vpop.f32.mrb[0].mxu0
      %v506 = vadd.f32 0.0, %v505
      %v507 = vpop.f32.mrb[0].mxu0
      %v508 = vpop.f32.mrb[0].mxu0
      %v509 = vadd.f32 0.0, %v508
      %v510 = vpop.f32.mrb[0].mxu0
      %511 = vdwg.mxu0
      %v520 = vunpack.c.l.b16 %v285
      %v521 = vunpack.c.l.b16 %v286
      %v522 = vunpack.c.l.b16 %v287
      %v523 = vunpack.c.l.b16 %v288
      %v524 = vunpack.c.l.b16 %v289
      %v525 = vunpack.c.l.b16 %v290
      %v526 = vunpack.c.l.b16 %v291
      %v527 = vunpack.c.l.b16 %v292
      %v528 = vpack.c.b16 %v521, %v520
      %v529 = vpack.c.b16 %v523, %v522
      %v530 = vpack.c.b16 %v525, %v524
      %v531 = vpack.c.b16 %v527, %v526
      %v536 = vsel %vm412, %v328, 0
      %v538 = vsel %vm412, %v329, 0
      %v540 = vsel %vm412, %v330, 0
      %v542 = vsel %vm412, %v331, 0
      %v544 = vsel %vm412, %v332, 0
      %v546 = vsel %vm412, %v333, 0
      %548 = vmatprep.subr.bf16.mxu0 0
      %549 = vmatpush1.bf16.msra.mxu0 %v528
      %550 = vmatprep.subr.bf16.mxu0 0
      %551 = vmatpush1.bf16.msra.mxu0 %v529
      %552 = vmatprep.subr.bf16.mxu0 0
      %553 = vmatpush1.bf16.msra.mxu0 %v530
      %554 = vmatprep.subr.bf16.mxu0 0
      %555 = vmatpush1.bf16.msra.mxu0 %v531
      %556 = vmatprep.subr.bf16.mxu0 0
      %557 = vmatpush1.bf16.msra.mxu0 0
      %558 = vmatprep.subr.bf16.mxu0 0
      %559 = vmatpush1.bf16.msra.mxu0 0
      %560 = vmatprep.subr.bf16.mxu0 0
      %561 = vmatpush1.bf16.msra.mxu0 0
      %562 = vmatprep.subr.bf16.mxu0 0
      %563 = vmatpush1.bf16.msra.mxu0 0
      %564 = vmatprep.subr.bf16.mxu0 0
      %565 = vmatpush1.bf16.msra.mxu0 0
      %566 = vmatprep.subr.bf16.mxu0 0
      %567 = vmatpush1.bf16.msra.mxu0 0
      %568 = vmatprep.subr.bf16.mxu0 0
      %569 = vmatpush1.bf16.msra.mxu0 0
      %570 = vmatprep.subr.bf16.mxu0 0
      %571 = vmatpush1.bf16.msra.mxu0 0
      %572 = vmatprep.subr.bf16.mxu0 0
      %573 = vmatpush1.bf16.msra.mxu0 0
      %574 = vmatprep.subr.bf16.mxu0 0
      %575 = vmatpush1.bf16.msra.mxu0 0
      %576 = vmatprep.subr.bf16.mxu0 0
      %577 = vmatpush1.bf16.msra.mxu0 0
      %578 = vmatprep.subr.bf16.mxu0 0
      %579 = vmatpush1.bf16.msra.mxu0 0
      %580 = vmatprep.mubr.bf16.mxu0 0
      %581 = vmatmul.mubr.bf16.gmra.mrb[0].mxu0 %v536
      %v582 = vpop.f32.mrb[0].mxu0
      %v583 = vadd.f32 %v466, %v582
      %v584 = vpop.f32.mrb[0].mxu0
      %v585 = vpop.f32.mrb[0].mxu0
      %v586 = vadd.f32 %v469, %v585
      %v587 = vpop.f32.mrb[0].mxu0
      %588 = vmatprep.mubr.bf16.mxu0 0
      %589 = vmatmul.mubr.bf16.gmra.mrb[0].mxu0 %v538
      %v590 = vpop.f32.mrb[0].mxu0
      %v591 = vadd.f32 %v474, %v590
      %v592 = vpop.f32.mrb[0].mxu0
      %v593 = vpop.f32.mrb[0].mxu0
      %v594 = vadd.f32 %v477, %v593
      %v595 = vpop.f32.mrb[0].mxu0
      %596 = vmatprep.mubr.bf16.mxu0 0
      %597 = vmatmul.mubr.bf16.gmra.mrb[0].mxu0 %v540
      %v598 = vpop.f32.mrb[0].mxu0
      %v599 = vadd.f32 %v482, %v598
      %v600 = vpop.f32.mrb[0].mxu0
      %v601 = vpop.f32.mrb[0].mxu0
      %v602 = vadd.f32 %v485, %v601
      %v603 = vpop.f32.mrb[0].mxu0
      %604 = vmatprep.mubr.bf16.mxu0 0
      %605 = vmatmul.mubr.bf16.gmra.mrb[0].mxu0 %v542
      %v606 = vpop.f32.mrb[0].mxu0
      %v607 = vadd.f32 %v490, %v606
      %v608 = vpop.f32.mrb[0].mxu0
      %v609 = vpop.f32.mrb[0].mxu0
      %v610 = vadd.f32 %v493, %v609
      %v611 = vpop.f32.mrb[0].mxu0
      %612 = vmatprep.mubr.bf16.mxu0 0
      %613 = vmatmul.mubr.bf16.gmra.mrb[0].mxu0 %v544
      %v614 = vpop.f32.mrb[0].mxu0
      %v615 = vadd.f32 %v498, %v614
      %v616 = vpop.f32.mrb[0].mxu0
      %v617 = vpop.f32.mrb[0].mxu0
      %v618 = vadd.f32 %v501, %v617
      %v619 = vpop.f32.mrb[0].mxu0
      %620 = vmatprep.mubr.bf16.mxu0 0
      %621 = vmatmul.mubr.bf16.gmra.mrb[0].mxu0 %v546
      %v622 = vpop.f32.mrb[0].mxu0
      %v623 = vadd.f32 %v506, %v622
      %v624 = vpop.f32.mrb[0].mxu0
      %v625 = vpop.f32.mrb[0].mxu0
      %v626 = vadd.f32 %v509, %v625
      %v627 = vpop.f32.mrb[0].mxu0
      %628 = vdwg.mxu0
      %s629 = scalar_lea.vmem %s1, 64
      %v630 = vld [vmem:[%s629] sm:$0xf]
      %v631 = vld [vmem:[%s629 + $0x4] sm:$0xf]
      %v632 = vld [vmem:[%s629 + $0x8] sm:$0xf]
      %v633 = vld [vmem:[%s629 + $0xc] sm:$0xf]
      %v634 = vld [vmem:[%s629 + $0x10] sm:$0xf]
      %v635 = vld [vmem:[%s629 + $0x14] sm:$0xf]
      %v636 = vld [vmem:[%s629 + $0x18] sm:$0xf]
      %v637 = vld [vmem:[%s629 + $0x1c] sm:$0xf]
      %vm638 = vcmask 1046528
      %v639 = vrot.slane %v328, 1
      %v640 = vrot.slane %v329, 1
      %v641 = vsel %vm638, %v639, %v640
      %v642 = vrot.slane %v330, 1
      %v643 = vsel %vm638, %v640, %v642
      %v644 = vrot.slane %v331, 1
      %v645 = vsel %vm638, %v642, %v644
      %v646 = vrot.slane %v332, 1
      %v647 = vsel %vm638, %v644, %v646
      %v648 = vrot.slane %v333, 1
      %v649 = vsel %vm638, %v646, %v648
      %v650 = vrot.slane %v334, 1
      %v651 = vsel %vm638, %v648, %v650
      %v660 = vunpack.c.l.b16 %v630
      %v661 = vunpack.c.l.b16 %v631
      %v662 = vunpack.c.l.b16 %v632
      %v663 = vunpack.c.l.b16 %v633
      %v664 = vunpack.c.l.b16 %v634
      %v665 = vunpack.c.l.b16 %v635
      %v666 = vunpack.c.l.b16 %v636
      %v667 = vunpack.c.l.b16 %v637
      %v668 = vpack.c.b16 %v661, %v660
      %v669 = vpack.c.b16 %v663, %v662
      %v670 = vpack.c.b16 %v665, %v664
      %v671 = vpack.c.b16 %v667, %v666
      %v677 = vsel %vm412, %v641, 0
      %v680 = vsel %vm412, %v643, 0
      %v683 = vsel %vm412, %v645, 0
      %v686 = vsel %vm412, %v647, 0
      %v689 = vsel %vm412, %v649, 0
      %v692 = vsel %vm412, %v651, 0
      %694 = vmatprep.subr.bf16.mxu0 0
      %695 = vmatpush1.bf16.msra.mxu0 %v668
      %696 = vmatprep.subr.bf16.mxu0 0
      %697 = vmatpush1.bf16.msra.mxu0 %v669
      %698 = vmatprep.subr.bf16.mxu0 0
      %699 = vmatpush1.bf16.msra.mxu0 %v670
      %700 = vmatprep.subr.bf16.mxu0 0
      %701 = vmatpush1.bf16.msra.mxu0 %v671
      %702 = vmatprep.subr.bf16.mxu0 0
      %703 = vmatpush1.bf16.msra.mxu0 0
      %704 = vmatprep.subr.bf16.mxu0 0
      %705 = vmatpush1.bf16.msra.mxu0 0
      %706 = vmatprep.subr.bf16.mxu0 0
      %707 = vmatpush1.bf16.msra.mxu0 0
      %708 = vmatprep.subr.bf16.mxu0 0
      %709 = vmatpush1.bf16.msra.mxu0 0
      %710 = vmatprep.subr.bf16.mxu0 0
      %711 = vmatpush1.bf16.msra.mxu0 0
      %712 = vmatprep.subr.bf16.mxu0 0
      %713 = vmatpush1.bf16.msra.mxu0 0
      %714 = vmatprep.subr.bf16.mxu0 0
      %715 = vmatpush1.bf16.msra.mxu0 0
      %716 = vmatprep.subr.bf16.mxu0 0
      %717 = vmatpush1.bf16.msra.mxu0 0
      %718 = vmatprep.subr.bf16.mxu0 0
      %719 = vmatpush1.bf16.msra.mxu0 0
      %720 = vmatprep.subr.bf16.mxu0 0
      %721 = vmatpush1.bf16.msra.mxu0 0
      %722 = vmatprep.subr.bf16.mxu0 0
      %723 = vmatpush1.bf16.msra.mxu0 0
      %724 = vmatprep.subr.bf16.mxu0 0
      %725 = vmatpush1.bf16.msra.mxu0 0
      %726 = vmatprep.mubr.bf16.mxu0 0
      %727 = vmatmul.mubr.bf16.gmra.mrb[0].mxu0 %v677
      %v728 = vpop.f32.mrb[0].mxu0
      %v729 = vadd.f32 0.0, %v728
      %v730 = vpop.f32.mrb[0].mxu0
      %v731 = vpop.f32.mrb[0].mxu0
      %v732 = vadd.f32 0.0, %v731
      %v733 = vpop.f32.mrb[0].mxu0
      %734 = vmatprep.mubr.bf16.mxu0 0
      %735 = vmatmul.mubr.bf16.gmra.mrb[0].mxu0 %v680
      %v736 = vpop.f32.mrb[0].mxu0
      %v737 = vadd.f32 0.0, %v736
      %v738 = vpop.f32.mrb[0].mxu0
      %v739 = vpop.f32.mrb[0].mxu0
      %v740 = vadd.f32 0.0, %v739
      %v741 = vpop.f32.mrb[0].mxu0
      %742 = vmatprep.mubr.bf16.mxu0 0
      %743 = vmatmul.mubr.bf16.gmra.mrb[0].mxu0 %v683
      %v744 = vpop.f32.mrb[0].mxu0
      %v745 = vadd.f32 0.0, %v744
      %v746 = vpop.f32.mrb[0].mxu0
      %v747 = vpop.f32.mrb[0].mxu0
      %v748 = vadd.f32 0.0, %v747
      %v749 = vpop.f32.mrb[0].mxu0
      %750 = vmatprep.mubr.bf16.mxu0 0
      %751 = vmatmul.mubr.bf16.gmra.mrb[0].mxu0 %v686
      %v752 = vpop.f32.mrb[0].mxu0
      %v753 = vadd.f32 0.0, %v752
      %v754 = vpop.f32.mrb[0].mxu0
      %v755 = vpop.f32.mrb[0].mxu0
      %v756 = vadd.f32 0.0, %v755
      %v757 = vpop.f32.mrb[0].mxu0
      %758 = vmatprep.mubr.bf16.mxu0 0
      %759 = vmatmul.mubr.bf16.gmra.mrb[0].mxu0 %v689
      %v760 = vpop.f32.mrb[0].mxu0
      %v761 = vadd.f32 0.0, %v760
      %v762 = vpop.f32.mrb[0].mxu0
      %v763 = vpop.f32.mrb[0].mxu0
      %v764 = vadd.f32 0.0, %v763
      %v765 = vpop.f32.mrb[0].mxu0
      %766 = vmatprep.mubr.bf16.mxu0 0
      %767 = vmatmul.mubr.bf16.gmra.mrb[0].mxu0 %v692
      %v768 = vpop.f32.mrb[0].mxu0
      %v769 = vadd.f32 0.0, %v768
      %v770 = vpop.f32.mrb[0].mxu0
      %v771 = vpop.f32.mrb[0].mxu0
      %v772 = vadd.f32 0.0, %v771
      %v773 = vpop.f32.mrb[0].mxu0
      %774 = vdwg.mxu0
      %v775 = vadd.f32 %v583, %v729
      %v776 = vadd.f32 %v586, %v732
      %v777 = vadd.f32 %v591, %v737
      %v778 = vadd.f32 %v594, %v740
      %v779 = vadd.f32 %v599, %v745
      %v780 = vadd.f32 %v602, %v748
      %v781 = vadd.f32 %v607, %v753
      %v782 = vadd.f32 %v610, %v756
      %v783 = vadd.f32 %v615, %v761
      %v784 = vadd.f32 %v618, %v764
      %v785 = vadd.f32 %v623, %v769
      %v786 = vadd.f32 %v626, %v772
      %s787 = scalar_lea.vmem %s1, 96
      %v788 = vld [vmem:[%s787] sm:$0xf]
      %v789 = vld [vmem:[%s787 + $0x4] sm:$0xf]
      %v790 = vld [vmem:[%s787 + $0x8] sm:$0xf]
      %v791 = vld [vmem:[%s787 + $0xc] sm:$0xf]
      %v792 = vld [vmem:[%s787 + $0x10] sm:$0xf]
      %v793 = vld [vmem:[%s787 + $0x14] sm:$0xf]
      %v794 = vld [vmem:[%s787 + $0x18] sm:$0xf]
      %v795 = vld [vmem:[%s787 + $0x1c] sm:$0xf]
      %v798 = vunpack.c.l.b16 %v281
      %v799 = vunpack.c.l.b16 %v282
      %v800 = vpack.c.b16 %v798, %v327
      %v801 = vpack.c.b16 %v799, %v799
      %v802 = vrot.slane %v800, 1
      %v803 = vsel %vm638, %v648, %v802
      %v804 = vrot.slane %v801, 1
      %v805 = vsel %vm638, %v802, %v804
      %v814 = vunpack.c.l.b16 %v788
      %v815 = vunpack.c.l.b16 %v789
      %v816 = vunpack.c.l.b16 %v790
      %v817 = vunpack.c.l.b16 %v791
      %v818 = vunpack.c.l.b16 %v792
      %v819 = vunpack.c.l.b16 %v793
      %v820 = vunpack.c.l.b16 %v794
      %v821 = vunpack.c.l.b16 %v795
      %v822 = vpack.c.b16 %v815, %v814
      %v823 = vpack.c.b16 %v817, %v816
      %v824 = vpack.c.b16 %v819, %v818
      %v825 = vpack.c.b16 %v821, %v820
      %v831 = vsel %vm412, %v803, 0
      %v834 = vsel %vm412, %v805, 0
      %836 = vmatprep.subr.bf16.mxu0 0
      %837 = vmatpush1.bf16.msra.mxu0 %v822
      %838 = vmatprep.subr.bf16.mxu0 0
      %839 = vmatpush1.bf16.msra.mxu0 %v823
      %840 = vmatprep.subr.bf16.mxu0 0
      %841 = vmatpush1.bf16.msra.mxu0 %v824
      %842 = vmatprep.subr.bf16.mxu0 0
      %843 = vmatpush1.bf16.msra.mxu0 %v825
      %844 = vmatprep.subr.bf16.mxu0 0
      %845 = vmatpush1.bf16.msra.mxu0 0
      %846 = vmatprep.subr.bf16.mxu0 0
      %847 = vmatpush1.bf16.msra.mxu0 0
      %848 = vmatprep.subr.bf16.mxu0 0
      %849 = vmatpush1.bf16.msra.mxu0 0
      %850 = vmatprep.subr.bf16.mxu0 0
      %851 = vmatpush1.bf16.msra.mxu0 0
      %852 = vmatprep.subr.bf16.mxu0 0
      %853 = vmatpush1.bf16.msra.mxu0 0
      %854 = vmatprep.subr.bf16.mxu0 0
      %855 = vmatpush1.bf16.msra.mxu0 0
      %856 = vmatprep.subr.bf16.mxu0 0
      %857 = vmatpush1.bf16.msra.mxu0 0
      %858 = vmatprep.subr.bf16.mxu0 0
      %859 = vmatpush1.bf16.msra.mxu0 0
      %860 = vmatprep.subr.bf16.mxu0 0
      %861 = vmatpush1.bf16.msra.mxu0 0
      %862 = vmatprep.subr.bf16.mxu0 0
      %863 = vmatpush1.bf16.msra.mxu0 0
      %864 = vmatprep.subr.bf16.mxu0 0
      %865 = vmatpush1.bf16.msra.mxu0 0
      %866 = vmatprep.subr.bf16.mxu0 0
      %867 = vmatpush1.bf16.msra.mxu0 0
      %868 = vmatprep.mubr.bf16.mxu0 0
      %869 = vmatmul.mubr.bf16.gmra.mrb[0].mxu0 %v680
      %v870 = vpop.f32.mrb[0].mxu0
      %v871 = vadd.f32 0.0, %v870
      %v872 = vpop.f32.mrb[0].mxu0
      %v873 = vpop.f32.mrb[0].mxu0
      %v874 = vadd.f32 0.0, %v873
      %v875 = vpop.f32.mrb[0].mxu0
      %876 = vmatprep.mubr.bf16.mxu0 0
      %877 = vmatmul.mubr.bf16.gmra.mrb[0].mxu0 %v683
      %v878 = vpop.f32.mrb[0].mxu0
      %v879 = vadd.f32 0.0, %v878
      %v880 = vpop.f32.mrb[0].mxu0
      %v881 = vpop.f32.mrb[0].mxu0
      %v882 = vadd.f32 0.0, %v881
      %v883 = vpop.f32.mrb[0].mxu0
      %884 = vmatprep.mubr.bf16.mxu0 0
      %885 = vmatmul.mubr.bf16.gmra.mrb[0].mxu0 %v686
      %v886 = vpop.f32.mrb[0].mxu0
      %v887 = vadd.f32 0.0, %v886
      %v888 = vpop.f32.mrb[0].mxu0
      %v889 = vpop.f32.mrb[0].mxu0
      %v890 = vadd.f32 0.0, %v889
      %v891 = vpop.f32.mrb[0].mxu0
      %892 = vmatprep.mubr.bf16.mxu0 0
      %893 = vmatmul.mubr.bf16.gmra.mrb[0].mxu0 %v689
      %v894 = vpop.f32.mrb[0].mxu0
      %v895 = vadd.f32 0.0, %v894
      %v896 = vpop.f32.mrb[0].mxu0
      %v897 = vpop.f32.mrb[0].mxu0
      %v898 = vadd.f32 0.0, %v897
      %v899 = vpop.f32.mrb[0].mxu0
      %900 = vmatprep.mubr.bf16.mxu0 0
      %901 = vmatmul.mubr.bf16.gmra.mrb[0].mxu0 %v831
      %v902 = vpop.f32.mrb[0].mxu0
      %v903 = vadd.f32 0.0, %v902
      %v904 = vpop.f32.mrb[0].mxu0
      %v905 = vpop.f32.mrb[0].mxu0
      %v906 = vadd.f32 0.0, %v905
      %v907 = vpop.f32.mrb[0].mxu0
      %908 = vmatprep.mubr.bf16.mxu0 0
      %909 = vmatmul.mubr.bf16.gmra.mrb[0].mxu0 %v834
      %v910 = vpop.f32.mrb[0].mxu0
      %v911 = vadd.f32 0.0, %v910
      %v912 = vpop.f32.mrb[0].mxu0
      %v913 = vpop.f32.mrb[0].mxu0
      %v914 = vadd.f32 0.0, %v913
      %v915 = vpop.f32.mrb[0].mxu0
      %916 = vdwg.mxu0
      %v917 = vadd.f32 %v775, %v871
      %v918 = vadd.f32 %v776, %v874
      %v919 = vadd.f32 %v777, %v879
      %v920 = vadd.f32 %v778, %v882
      %v921 = vadd.f32 %v779, %v887
      %v922 = vadd.f32 %v780, %v890
      %v923 = vadd.f32 %v781, %v895
      %v924 = vadd.f32 %v782, %v898
      %v925 = vadd.f32 %v783, %v903
      %v926 = vadd.f32 %v784, %v906
      %v927 = vadd.f32 %v785, %v911
      %v928 = vadd.f32 %v786, %v914
      %s929 = scalar_lea.vmem %s1, 128
      %v930 = vld [vmem:[%s929] sm:$0xf]
      %v931 = vld [vmem:[%s929 + $0x4] sm:$0xf]
      %v932 = vld [vmem:[%s929 + $0x8] sm:$0xf]
      %v933 = vld [vmem:[%s929 + $0xc] sm:$0xf]
      %v934 = vld [vmem:[%s929 + $0x10] sm:$0xf]
      %v935 = vld [vmem:[%s929 + $0x14] sm:$0xf]
      %v936 = vld [vmem:[%s929 + $0x18] sm:$0xf]
      %v937 = vld [vmem:[%s929 + $0x1c] sm:$0xf]
      %vm938 = vsmask.f32 6400
      %v939 = vrot.slane %v348, 1
      %v940 = vrot.slane %v344, 2
      %v941 = vor.u32 %v939, %v940
      %v942 = vrot.slane %v356, 1
      %v943 = vrot.slane %v352, 2
      %v944 = vor.u32 %v942, %v943
      %v945 = vsel %vm938, %v941, %v944
      %v946 = vrot.slane %v364, 1
      %v947 = vrot.slane %v360, 2
      %v948 = vor.u32 %v946, %v947
      %v949 = vsel %vm938, %v944, %v948
      %v950 = vrot.slane %v372, 1
      %v951 = vrot.slane %v368, 2
      %v952 = vor.u32 %v950, %v951
      %v953 = vsel %vm938, %v948, %v952
      %v954 = vrot.slane %v380, 1
      %v955 = vrot.slane %v376, 2
      %v956 = vor.u32 %v954, %v955
      %v957 = vsel %vm938, %v952, %v956
      %v959 = vshrl.u32 %v800, 16
      %v961 = vrot.slane %v959, 1
      %v962 = vshll.u32 %v800, 16
      %v964 = vrot.slane %v962, 2
      %v965 = vor.u32 %v961, %v964
      %v966 = vsel %vm938, %v956, %v965
      %v968 = vshrl.u32 %v801, 16
      %v970 = vrot.slane %v968, 1
      %v971 = vshll.u32 %v801, 16
      %v973 = vrot.slane %v971, 2
      %v974 = vor.u32 %v970, %v973
      %v975 = vsel %vm938, %v965, %v974
      %v984 = vunpack.c.l.b16 %v930
      %v985 = vunpack.c.l.b16 %v931
      %v986 = vunpack.c.l.b16 %v932
      %v987 = vunpack.c.l.b16 %v933
      %v988 = vunpack.c.l.b16 %v934
      %v989 = vunpack.c.l.b16 %v935
      %v990 = vunpack.c.l.b16 %v936
      %v991 = vunpack.c.l.b16 %v937
      %v992 = vpack.c.b16 %v985, %v984
      %v993 = vpack.c.b16 %v987, %v986
      %v994 = vpack.c.b16 %v989, %v988
      %v995 = vpack.c.b16 %v991, %v990
      %v1001 = vsel %vm412, %v945, 0
      %v1004 = vsel %vm412, %v949, 0
      %v1007 = vsel %vm412, %v953, 0
      %v1010 = vsel %vm412, %v957, 0
      %v1013 = vsel %vm412, %v966, 0
      %v1016 = vsel %vm412, %v975, 0
      %1018 = vmatprep.subr.bf16.mxu0 0
      %1019 = vmatpush1.bf16.msra.mxu0 %v992
      %1020 = vmatprep.subr.bf16.mxu0 0
      %1021 = vmatpush1.bf16.msra.mxu0 %v993
      %1022 = vmatprep.subr.bf16.mxu0 0
      %1023 = vmatpush1.bf16.msra.mxu0 %v994
      %1024 = vmatprep.subr.bf16.mxu0 0
      %1025 = vmatpush1.bf16.msra.mxu0 %v995
      %1026 = vmatprep.subr.bf16.mxu0 0
      %1027 = vmatpush1.bf16.msra.mxu0 0
      %1028 = vmatprep.subr.bf16.mxu0 0
      %1029 = vmatpush1.bf16.msra.mxu0 0
      %1030 = vmatprep.subr.bf16.mxu0 0
      %1031 = vmatpush1.bf16.msra.mxu0 0
      %1032 = vmatprep.subr.bf16.mxu0 0
      %1033 = vmatpush1.bf16.msra.mxu0 0
      %1034 = vmatprep.subr.bf16.mxu0 0
      %1035 = vmatpush1.bf16.msra.mxu0 0
      %1036 = vmatprep.subr.bf16.mxu0 0
      %1037 = vmatpush1.bf16.msra.mxu0 0
      %1038 = vmatprep.subr.bf16.mxu0 0
      %1039 = vmatpush1.bf16.msra.mxu0 0
      %1040 = vmatprep.subr.bf16.mxu0 0
      %1041 = vmatpush1.bf16.msra.mxu0 0
      %1042 = vmatprep.subr.bf16.mxu0 0
      %1043 = vmatpush1.bf16.msra.mxu0 0
      %1044 = vmatprep.subr.bf16.mxu0 0
      %1045 = vmatpush1.bf16.msra.mxu0 0
      %1046 = vmatprep.subr.bf16.mxu0 0
      %1047 = vmatpush1.bf16.msra.mxu0 0
      %1048 = vmatprep.subr.bf16.mxu0 0
      %1049 = vmatpush1.bf16.msra.mxu0 0
      %1050 = vmatprep.mubr.bf16.mxu0 0
      %1051 = vmatmul.mubr.bf16.gmra.mrb[0].mxu0 %v1001
      %v1052 = vpop.f32.mrb[0].mxu0
      %v1053 = vadd.f32 0.0, %v1052
      %v1054 = vpop.f32.mrb[0].mxu0
      %v1055 = vpop.f32.mrb[0].mxu0
      %v1056 = vadd.f32 0.0, %v1055
      %v1057 = vpop.f32.mrb[0].mxu0
      %1058 = vmatprep.mubr.bf16.mxu0 0
      %1059 = vmatmul.mubr.bf16.gmra.mrb[0].mxu0 %v1004
      %v1060 = vpop.f32.mrb[0].mxu0
      %v1061 = vadd.f32 0.0, %v1060
      %v1062 = vpop.f32.mrb[0].mxu0
      %v1063 = vpop.f32.mrb[0].mxu0
      %v1064 = vadd.f32 0.0, %v1063
      %v1065 = vpop.f32.mrb[0].mxu0
      %1066 = vmatprep.mubr.bf16.mxu0 0
      %1067 = vmatmul.mubr.bf16.gmra.mrb[0].mxu0 %v1007
      %v1068 = vpop.f32.mrb[0].mxu0
      %v1069 = vadd.f32 0.0, %v1068
      %v1070 = vpop.f32.mrb[0].mxu0
      %v1071 = vpop.f32.mrb[0].mxu0
      %v1072 = vadd.f32 0.0, %v1071
      %v1073 = vpop.f32.mrb[0].mxu0
      %1074 = vmatprep.mubr.bf16.mxu0 0
      %1075 = vmatmul.mubr.bf16.gmra.mrb[0].mxu0 %v1010
      %v1076 = vpop.f32.mrb[0].mxu0
      %v1077 = vadd.f32 0.0, %v1076
      %v1078 = vpop.f32.mrb[0].mxu0
      %v1079 = vpop.f32.mrb[0].mxu0
      %v1080 = vadd.f32 0.0, %v1079
      %v1081 = vpop.f32.mrb[0].mxu0
      %1082 = vmatprep.mubr.bf16.mxu0 0
      %1083 = vmatmul.mubr.bf16.gmra.mrb[0].mxu0 %v1013
      %v1084 = vpop.f32.mrb[0].mxu0
      %v1085 = vadd.f32 0.0, %v1084
      %v1086 = vpop.f32.mrb[0].mxu0
      %v1087 = vpop.f32.mrb[0].mxu0
      %v1088 = vadd.f32 0.0, %v1087
      %v1089 = vpop.f32.mrb[0].mxu0
      %1090 = vmatprep.mubr.bf16.mxu0 0
      %1091 = vmatmul.mubr.bf16.gmra.mrb[0].mxu0 %v1016
      %v1092 = vpop.f32.mrb[0].mxu0
      %v1093 = vadd.f32 0.0, %v1092
      %v1094 = vpop.f32.mrb[0].mxu0
      %v1095 = vpop.f32.mrb[0].mxu0
      %v1096 = vadd.f32 0.0, %v1095
      %v1097 = vpop.f32.mrb[0].mxu0
      %1098 = vdwg.mxu0
      %v1099 = vadd.f32 %v917, %v1053
      %v1100 = vadd.f32 %v918, %v1056
      %v1101 = vadd.f32 %v919, %v1061
      %v1102 = vadd.f32 %v920, %v1064
      %v1103 = vadd.f32 %v921, %v1069
      %v1104 = vadd.f32 %v922, %v1072
      %v1105 = vadd.f32 %v923, %v1077
      %v1106 = vadd.f32 %v924, %v1080
      %v1107 = vadd.f32 %v925, %v1085
      %v1108 = vadd.f32 %v926, %v1088
      %v1109 = vadd.f32 %v927, %v1093
      %v1110 = vadd.f32 %v928, %v1096
      %s1111 = scalar_lea.vmem %s1, 160
      %v1112 = vld [vmem:[%s1111] sm:$0xf]
      %v1113 = vld [vmem:[%s1111 + $0x4] sm:$0xf]
      %v1114 = vld [vmem:[%s1111 + $0x8] sm:$0xf]
      %v1115 = vld [vmem:[%s1111 + $0xc] sm:$0xf]
      %v1116 = vld [vmem:[%s1111 + $0x10] sm:$0xf]
      %v1117 = vld [vmem:[%s1111 + $0x14] sm:$0xf]
      %v1118 = vld [vmem:[%s1111 + $0x18] sm:$0xf]
      %v1119 = vld [vmem:[%s1111 + $0x1c] sm:$0xf]
      %vm1120 = vcmask 1045504
      %v1121 = vrot.slane %v329, 2
      %v1122 = vrot.slane %v330, 2
      %v1123 = vsel %vm1120, %v1121, %v1122
      %v1124 = vrot.slane %v331, 2
      %v1125 = vsel %vm1120, %v1122, %v1124
      %v1126 = vrot.slane %v332, 2
      %v1127 = vsel %vm1120, %v1124, %v1126
      %v1128 = vrot.slane %v333, 2
      %v1129 = vsel %vm1120, %v1126, %v1128
      %v1130 = vrot.slane %v800, 2
      %v1131 = vsel %vm1120, %v1128, %v1130
      %v1132 = vrot.slane %v801, 2
      %v1133 = vsel %vm1120, %v1130, %v1132
      %v1142 = vunpack.c.l.b16 %v1112
      %v1143 = vunpack.c.l.b16 %v1113
      %v1144 = vunpack.c.l.b16 %v1114
      %v1145 = vunpack.c.l.b16 %v1115
      %v1146 = vunpack.c.l.b16 %v1116
      %v1147 = vunpack.c.l.b16 %v1117
      %v1148 = vunpack.c.l.b16 %v1118
      %v1149 = vunpack.c.l.b16 %v1119
      %v1150 = vpack.c.b16 %v1143, %v1142
      %v1151 = vpack.c.b16 %v1145, %v1144
      %v1152 = vpack.c.b16 %v1147, %v1146
      %v1153 = vpack.c.b16 %v1149, %v1148
      %v1159 = vsel %vm412, %v1123, 0
      %v1162 = vsel %vm412, %v1125, 0
      %v1165 = vsel %vm412, %v1127, 0
      %v1168 = vsel %vm412, %v1129, 0
      %v1171 = vsel %vm412, %v1131, 0
      %v1174 = vsel %vm412, %v1133, 0
      %1176 = vmatprep.subr.bf16.mxu0 0
      %1177 = vmatpush1.bf16.msra.mxu0 %v1150
      %1178 = vmatprep.subr.bf16.mxu0 0
      %1179 = vmatpush1.bf16.msra.mxu0 %v1151
      %1180 = vmatprep.subr.bf16.mxu0 0
      %1181 = vmatpush1.bf16.msra.mxu0 %v1152
      %1182 = vmatprep.subr.bf16.mxu0 0
      %1183 = vmatpush1.bf16.msra.mxu0 %v1153
      %1184 = vmatprep.subr.bf16.mxu0 0
      %1185 = vmatpush1.bf16.msra.mxu0 0
      %1186 = vmatprep.subr.bf16.mxu0 0
      %1187 = vmatpush1.bf16.msra.mxu0 0
      %1188 = vmatprep.subr.bf16.mxu0 0
      %1189 = vmatpush1.bf16.msra.mxu0 0
      %1190 = vmatprep.subr.bf16.mxu0 0
      %1191 = vmatpush1.bf16.msra.mxu0 0
      %1192 = vmatprep.subr.bf16.mxu0 0
      %1193 = vmatpush1.bf16.msra.mxu0 0
      %1194 = vmatprep.subr.bf16.mxu0 0
      %1195 = vmatpush1.bf16.msra.mxu0 0
      %1196 = vmatprep.subr.bf16.mxu0 0
      %1197 = vmatpush1.bf16.msra.mxu0 0
      %1198 = vmatprep.subr.bf16.mxu0 0
      %1199 = vmatpush1.bf16.msra.mxu0 0
      %1200 = vmatprep.subr.bf16.mxu0 0
      %1201 = vmatpush1.bf16.msra.mxu0 0
      %1202 = vmatprep.subr.bf16.mxu0 0
      %1203 = vmatpush1.bf16.msra.mxu0 0
      %1204 = vmatprep.subr.bf16.mxu0 0
      %1205 = vmatpush1.bf16.msra.mxu0 0
      %1206 = vmatprep.subr.bf16.mxu0 0
      %1207 = vmatpush1.bf16.msra.mxu0 0
      %1208 = vmatprep.mubr.bf16.mxu0 0
      %1209 = vmatmul.mubr.bf16.gmra.mrb[0].mxu0 %v1159
      %v1210 = vpop.f32.mrb[0].mxu0
      %v1211 = vadd.f32 0.0, %v1210
      %v1212 = vpop.f32.mrb[0].mxu0
      %v1213 = vpop.f32.mrb[0].mxu0
      %v1214 = vadd.f32 0.0, %v1213
      %v1215 = vpop.f32.mrb[0].mxu0
      %1216 = vmatprep.mubr.bf16.mxu0 0
      %1217 = vmatmul.mubr.bf16.gmra.mrb[0].mxu0 %v1162
      %v1218 = vpop.f32.mrb[0].mxu0
      %v1219 = vadd.f32 0.0, %v1218
      %v1220 = vpop.f32.mrb[0].mxu0
      %v1221 = vpop.f32.mrb[0].mxu0
      %v1222 = vadd.f32 0.0, %v1221
      %v1223 = vpop.f32.mrb[0].mxu0
      %1224 = vmatprep.mubr.bf16.mxu0 0
      %1225 = vmatmul.mubr.bf16.gmra.mrb[0].mxu0 %v1165
      %v1226 = vpop.f32.mrb[0].mxu0
      %v1227 = vadd.f32 0.0, %v1226
      %v1228 = vpop.f32.mrb[0].mxu0
      %v1229 = vpop.f32.mrb[0].mxu0
      %v1230 = vadd.f32 0.0, %v1229
      %v1231 = vpop.f32.mrb[0].mxu0
      %1232 = vmatprep.mubr.bf16.mxu0 0
      %1233 = vmatmul.mubr.bf16.gmra.mrb[0].mxu0 %v1168
      %v1234 = vpop.f32.mrb[0].mxu0
      %v1235 = vadd.f32 0.0, %v1234
      %v1236 = vpop.f32.mrb[0].mxu0
      %v1237 = vpop.f32.mrb[0].mxu0
      %v1238 = vadd.f32 0.0, %v1237
      %v1239 = vpop.f32.mrb[0].mxu0
      %1240 = vmatprep.mubr.bf16.mxu0 0
      %1241 = vmatmul.mubr.bf16.gmra.mrb[0].mxu0 %v1171
      %v1242 = vpop.f32.mrb[0].mxu0
      %v1243 = vadd.f32 0.0, %v1242
      %v1244 = vpop.f32.mrb[0].mxu0
      %v1245 = vpop.f32.mrb[0].mxu0
      %v1246 = vadd.f32 0.0, %v1245
      %v1247 = vpop.f32.mrb[0].mxu0
      %1248 = vmatprep.mubr.bf16.mxu0 0
      %1249 = vmatmul.mubr.bf16.gmra.mrb[0].mxu0 %v1174
      %v1250 = vpop.f32.mrb[0].mxu0
      %v1251 = vadd.f32 0.0, %v1250
      %v1252 = vpop.f32.mrb[0].mxu0
      %v1253 = vpop.f32.mrb[0].mxu0
      %v1254 = vadd.f32 0.0, %v1253
      %v1255 = vpop.f32.mrb[0].mxu0
      %1256 = vdwg.mxu0
      %v1257 = vadd.f32 %v1099, %v1211
      %v1258 = vadd.f32 %v1100, %v1214
      %v1259 = vadd.f32 %v1101, %v1219
      %v1260 = vadd.f32 %v1102, %v1222
      %v1261 = vadd.f32 %v1103, %v1227
      %v1262 = vadd.f32 %v1104, %v1230
      %v1263 = vadd.f32 %v1105, %v1235
      %v1264 = vadd.f32 %v1106, %v1238
      %v1265 = vadd.f32 %v1107, %v1243
      %v1266 = vadd.f32 %v1108, %v1246
      %v1267 = vadd.f32 %v1109, %v1251
      %v1268 = vadd.f32 %v1110, %v1254
      %s1269 = scalar_lea.vmem %s1, 192
      %v1270 = vld [vmem:[%s1269] sm:$0xf]
      %v1271 = vld [vmem:[%s1269 + $0x4] sm:$0xf]
      %v1272 = vld [vmem:[%s1269 + $0x8] sm:$0xf]
      %v1273 = vld [vmem:[%s1269 + $0xc] sm:$0xf]
      %v1274 = vld [vmem:[%s1269 + $0x10] sm:$0xf]
      %v1275 = vld [vmem:[%s1269 + $0x14] sm:$0xf]
      %v1276 = vld [vmem:[%s1269 + $0x18] sm:$0xf]
      %v1277 = vld [vmem:[%s1269 + $0x1c] sm:$0xf]
      %v1280 = vunpack.c.l.b16 %v283
      %v1281 = vunpack.c.l.b16 %v284
      %v1282 = vpack.c.b16 %v1280, %v799
      %v1283 = vpack.c.b16 %v1281, %v1281
      %v1284 = vrot.slane %v1282, 2
      %v1285 = vsel %vm1120, %v1130, %v1284
      %v1286 = vrot.slane %v1283, 2
      %v1287 = vsel %vm1120, %v1284, %v1286
      %v1296 = vunpack.c.l.b16 %v1270
      %v1297 = vunpack.c.l.b16 %v1271
      %v1298 = vunpack.c.l.b16 %v1272
      %v1299 = vunpack.c.l.b16 %v1273
      %v1300 = vunpack.c.l.b16 %v1274
      %v1301 = vunpack.c.l.b16 %v1275
      %v1302 = vunpack.c.l.b16 %v1276
      %v1303 = vunpack.c.l.b16 %v1277
      %v1304 = vpack.c.b16 %v1297, %v1296
      %v1305 = vpack.c.b16 %v1299, %v1298
      %v1306 = vpack.c.b16 %v1301, %v1300
      %v1307 = vpack.c.b16 %v1303, %v1302
      %v1313 = vsel %vm412, %v1285, 0
      %v1316 = vsel %vm412, %v1287, 0
      %1318 = vmatprep.subr.bf16.mxu0 0
      %1319 = vmatpush1.bf16.msra.mxu0 %v1304
      %1320 = vmatprep.subr.bf16.mxu0 0
      %1321 = vmatpush1.bf16.msra.mxu0 %v1305
      %1322 = vmatprep.subr.bf16.mxu0 0
      %1323 = vmatpush1.bf16.msra.mxu0 %v1306
      %1324 = vmatprep.subr.bf16.mxu0 0
      %1325 = vmatpush1.bf16.msra.mxu0 %v1307
      %1326 = vmatprep.subr.bf16.mxu0 0
      %1327 = vmatpush1.bf16.msra.mxu0 0
      %1328 = vmatprep.subr.bf16.mxu0 0
      %1329 = vmatpush1.bf16.msra.mxu0 0
      %1330 = vmatprep.subr.bf16.mxu0 0
      %1331 = vmatpush1.bf16.msra.mxu0 0
      %1332 = vmatprep.subr.bf16.mxu0 0
      %1333 = vmatpush1.bf16.msra.mxu0 0
      %1334 = vmatprep.subr.bf16.mxu0 0
      %1335 = vmatpush1.bf16.msra.mxu0 0
      %1336 = vmatprep.subr.bf16.mxu0 0
      %1337 = vmatpush1.bf16.msra.mxu0 0
      %1338 = vmatprep.subr.bf16.mxu0 0
      %1339 = vmatpush1.bf16.msra.mxu0 0
      %1340 = vmatprep.subr.bf16.mxu0 0
      %1341 = vmatpush1.bf16.msra.mxu0 0
      %1342 = vmatprep.subr.bf16.mxu0 0
      %1343 = vmatpush1.bf16.msra.mxu0 0
      %1344 = vmatprep.subr.bf16.mxu0 0
      %1345 = vmatpush1.bf16.msra.mxu0 0
      %1346 = vmatprep.subr.bf16.mxu0 0
      %1347 = vmatpush1.bf16.msra.mxu0 0
      %1348 = vmatprep.subr.bf16.mxu0 0
      %1349 = vmatpush1.bf16.msra.mxu0 0
      %1350 = vmatprep.mubr.bf16.mxu0 0
      %1351 = vmatmul.mubr.bf16.gmra.mrb[0].mxu0 %v1162
      %v1352 = vpop.f32.mrb[0].mxu0
      %v1353 = vadd.f32 0.0, %v1352
      %v1354 = vpop.f32.mrb[0].mxu0
      %v1355 = vpop.f32.mrb[0].mxu0
      %v1356 = vadd.f32 0.0, %v1355
      %v1357 = vpop.f32.mrb[0].mxu0
      %1358 = vmatprep.mubr.bf16.mxu0 0
      %1359 = vmatmul.mubr.bf16.gmra.mrb[0].mxu0 %v1165
      %v1360 = vpop.f32.mrb[0].mxu0
      %v1361 = vadd.f32 0.0, %v1360
      %v1362 = vpop.f32.mrb[0].mxu0
      %v1363 = vpop.f32.mrb[0].mxu0
      %v1364 = vadd.f32 0.0, %v1363
      %v1365 = vpop.f32.mrb[0].mxu0
      %1366 = vmatprep.mubr.bf16.mxu0 0
      %1367 = vmatmul.mubr.bf16.gmra.mrb[0].mxu0 %v1168
      %v1368 = vpop.f32.mrb[0].mxu0
      %v1369 = vadd.f32 0.0, %v1368
      %v1370 = vpop.f32.mrb[0].mxu0
      %v1371 = vpop.f32.mrb[0].mxu0
      %v1372 = vadd.f32 0.0, %v1371
      %v1373 = vpop.f32.mrb[0].mxu0
      %1374 = vmatprep.mubr.bf16.mxu0 0
      %1375 = vmatmul.mubr.bf16.gmra.mrb[0].mxu0 %v1171
      %v1376 = vpop.f32.mrb[0].mxu0
      %v1377 = vadd.f32 0.0, %v1376
      %v1378 = vpop.f32.mrb[0].mxu0
      %v1379 = vpop.f32.mrb[0].mxu0
      %v1380 = vadd.f32 0.0, %v1379
      %v1381 = vpop.f32.mrb[0].mxu0
      %1382 = vmatprep.mubr.bf16.mxu0 0
      %1383 = vmatmul.mubr.bf16.gmra.mrb[0].mxu0 %v1313
      %v1384 = vpop.f32.mrb[0].mxu0
      %v1385 = vadd.f32 0.0, %v1384
      %v1386 = vpop.f32.mrb[0].mxu0
      %v1387 = vpop.f32.mrb[0].mxu0
      %v1388 = vadd.f32 0.0, %v1387
      %v1389 = vpop.f32.mrb[0].mxu0
      %1390 = vmatprep.mubr.bf16.mxu0 0
      %1391 = vmatmul.mubr.bf16.gmra.mrb[0].mxu0 %v1316
      %v1392 = vpop.f32.mrb[0].mxu0
      %v1393 = vadd.f32 0.0, %v1392
      %v1394 = vpop.f32.mrb[0].mxu0
      %v1395 = vpop.f32.mrb[0].mxu0
      %v1396 = vadd.f32 0.0, %v1395
      %v1397 = vpop.f32.mrb[0].mxu0
      %1398 = vdwg.mxu0
      %v1399 = vadd.f32 %v1257, %v1353
      %v1400 = vadd.f32 %v1258, %v1356
      %v1401 = vadd.f32 %v1259, %v1361
      %v1402 = vadd.f32 %v1260, %v1364
      %v1403 = vadd.f32 %v1261, %v1369
      %v1404 = vadd.f32 %v1262, %v1372
      %v1405 = vadd.f32 %v1263, %v1377
      %v1406 = vadd.f32 %v1264, %v1380
      %v1407 = vadd.f32 %v1265, %v1385
      %v1408 = vadd.f32 %v1266, %v1388
      %v1409 = vadd.f32 %v1267, %v1393
      %v1410 = vadd.f32 %v1268, %v1396
      %s1411 = scalar_lea.vmem %s1, 224
      %v1412 = vld [vmem:[%s1411] sm:$0xf]
      %v1413 = vld [vmem:[%s1411 + $0x4] sm:$0xf]
      %v1414 = vld [vmem:[%s1411 + $0x8] sm:$0xf]
      %v1415 = vld [vmem:[%s1411 + $0xc] sm:$0xf]
      %v1416 = vld [vmem:[%s1411 + $0x10] sm:$0xf]
      %v1417 = vld [vmem:[%s1411 + $0x14] sm:$0xf]
      %v1418 = vld [vmem:[%s1411 + $0x18] sm:$0xf]
      %v1419 = vld [vmem:[%s1411 + $0x1c] sm:$0xf]
      %vm1420 = vsmask.f32 5376
      %v1421 = vrot.slane %v356, 2
      %v1422 = vrot.slane %v352, 3
      %v1423 = vor.u32 %v1421, %v1422
      %v1424 = vrot.slane %v364, 2
      %v1425 = vrot.slane %v360, 3
      %v1426 = vor.u32 %v1424, %v1425
      %v1427 = vsel %vm1420, %v1423, %v1426
      %v1428 = vrot.slane %v372, 2
      %v1429 = vrot.slane %v368, 3
      %v1430 = vor.u32 %v1428, %v1429
      %v1431 = vsel %vm1420, %v1426, %v1430
      %v1432 = vrot.slane %v380, 2
      %v1433 = vrot.slane %v376, 3
      %v1434 = vor.u32 %v1432, %v1433
      %v1435 = vsel %vm1420, %v1430, %v1434
      %v1436 = vrot.slane %v959, 2
      %v1437 = vrot.slane %v962, 3
      %v1438 = vor.u32 %v1436, %v1437
      %v1439 = vsel %vm1420, %v1434, %v1438
      %v1441 = vshrl.u32 %v1282, 16
      %v1443 = vrot.slane %v1441, 2
      %v1444 = vshll.u32 %v1282, 16
      %v1446 = vrot.slane %v1444, 3
      %v1447 = vor.u32 %v1443, %v1446
      %v1448 = vsel %vm1420, %v1438, %v1447
      %v1450 = vshrl.u32 %v1283, 16
      %v1452 = vrot.slane %v1450, 2
      %v1453 = vshll.u32 %v1283, 16
      %v1455 = vrot.slane %v1453, 3
      %v1456 = vor.u32 %v1452, %v1455
      %v1457 = vsel %vm1420, %v1447, %v1456
      %v1466 = vunpack.c.l.b16 %v1412
      %v1467 = vunpack.c.l.b16 %v1413
      %v1468 = vunpack.c.l.b16 %v1414
      %v1469 = vunpack.c.l.b16 %v1415
      %v1470 = vunpack.c.l.b16 %v1416
      %v1471 = vunpack.c.l.b16 %v1417
      %v1472 = vunpack.c.l.b16 %v1418
      %v1473 = vunpack.c.l.b16 %v1419
      %v1474 = vpack.c.b16 %v1467, %v1466
      %v1475 = vpack.c.b16 %v1469, %v1468
      %v1476 = vpack.c.b16 %v1471, %v1470
      %v1477 = vpack.c.b16 %v1473, %v1472
      %v1483 = vsel %vm412, %v1427, 0
      %v1486 = vsel %vm412, %v1431, 0
      %v1489 = vsel %vm412, %v1435, 0
      %v1492 = vsel %vm412, %v1439, 0
      %v1495 = vsel %vm412, %v1448, 0
      %v1498 = vsel %vm412, %v1457, 0
      %1500 = vmatprep.subr.bf16.mxu0 0
      %1501 = vmatpush1.bf16.msra.mxu0 %v1474
      %1502 = vmatprep.subr.bf16.mxu0 0
      %1503 = vmatpush1.bf16.msra.mxu0 %v1475
      %1504 = vmatprep.subr.bf16.mxu0 0
      %1505 = vmatpush1.bf16.msra.mxu0 %v1476
      %1506 = vmatprep.subr.bf16.mxu0 0
      %1507 = vmatpush1.bf16.msra.mxu0 %v1477
      %1508 = vmatprep.subr.bf16.mxu0 0
      %1509 = vmatpush1.bf16.msra.mxu0 0
      %1510 = vmatprep.subr.bf16.mxu0 0
      %1511 = vmatpush1.bf16.msra.mxu0 0
      %1512 = vmatprep.subr.bf16.mxu0 0
      %1513 = vmatpush1.bf16.msra.mxu0 0
      %1514 = vmatprep.subr.bf16.mxu0 0
      %1515 = vmatpush1.bf16.msra.mxu0 0
      %1516 = vmatprep.subr.bf16.mxu0 0
      %1517 = vmatpush1.bf16.msra.mxu0 0
      %1518 = vmatprep.subr.bf16.mxu0 0
      %1519 = vmatpush1.bf16.msra.mxu0 0
      %1520 = vmatprep.subr.bf16.mxu0 0
      %1521 = vmatpush1.bf16.msra.mxu0 0
      %1522 = vmatprep.subr.bf16.mxu0 0
      %1523 = vmatpush1.bf16.msra.mxu0 0
      %1524 = vmatprep.subr.bf16.mxu0 0
      %1525 = vmatpush1.bf16.msra.mxu0 0
      %1526 = vmatprep.subr.bf16.mxu0 0
      %1527 = vmatpush1.bf16.msra.mxu0 0
      %1528 = vmatprep.subr.bf16.mxu0 0
      %1529 = vmatpush1.bf16.msra.mxu0 0
      %1530 = vmatprep.subr.bf16.mxu0 0
      %1531 = vmatpush1.bf16.msra.mxu0 0
      %1532 = vmatprep.mubr.bf16.mxu0 0
      %1533 = vmatmul.mubr.bf16.gmra.mrb[0].mxu0 %v1483
      %v1534 = vpop.f32.mrb[0].mxu0
      %v1535 = vadd.f32 0.0, %v1534
      %v1536 = vpop.f32.mrb[0].mxu0
      %v1537 = vpop.f32.mrb[0].mxu0
      %v1538 = vadd.f32 0.0, %v1537
      %v1539 = vpop.f32.mrb[0].mxu0
      %1540 = vmatprep.mubr.bf16.mxu0 0
      %1541 = vmatmul.mubr.bf16.gmra.mrb[0].mxu0 %v1486
      %v1542 = vpop.f32.mrb[0].mxu0
      %v1543 = vadd.f32 0.0, %v1542
      %v1544 = vpop.f32.mrb[0].mxu0
      %v1545 = vpop.f32.mrb[0].mxu0
      %v1546 = vadd.f32 0.0, %v1545
      %v1547 = vpop.f32.mrb[0].mxu0
      %1548 = vmatprep.mubr.bf16.mxu0 0
      %1549 = vmatmul.mubr.bf16.gmra.mrb[0].mxu0 %v1489
      %v1550 = vpop.f32.mrb[0].mxu0
      %v1551 = vadd.f32 0.0, %v1550
      %v1552 = vpop.f32.mrb[0].mxu0
      %v1553 = vpop.f32.mrb[0].mxu0
      %v1554 = vadd.f32 0.0, %v1553
      %v1555 = vpop.f32.mrb[0].mxu0
      %1556 = vmatprep.mubr.bf16.mxu0 0
      %1557 = vmatmul.mubr.bf16.gmra.mrb[0].mxu0 %v1492
      %v1558 = vpop.f32.mrb[0].mxu0
      %v1559 = vadd.f32 0.0, %v1558
      %v1560 = vpop.f32.mrb[0].mxu0
      %v1561 = vpop.f32.mrb[0].mxu0
      %v1562 = vadd.f32 0.0, %v1561
      %v1563 = vpop.f32.mrb[0].mxu0
      %1564 = vmatprep.mubr.bf16.mxu0 0
      %1565 = vmatmul.mubr.bf16.gmra.mrb[0].mxu0 %v1495
      %v1566 = vpop.f32.mrb[0].mxu0
      %v1567 = vadd.f32 0.0, %v1566
      %v1568 = vpop.f32.mrb[0].mxu0
      %v1569 = vpop.f32.mrb[0].mxu0
      %v1570 = vadd.f32 0.0, %v1569
      %v1571 = vpop.f32.mrb[0].mxu0
      %1572 = vmatprep.mubr.bf16.mxu0 0
      %1573 = vmatmul.mubr.bf16.gmra.mrb[0].mxu0 %v1498
      %v1574 = vpop.f32.mrb[0].mxu0
      %v1575 = vadd.f32 0.0, %v1574
      %v1576 = vpop.f32.mrb[0].mxu0
      %v1577 = vpop.f32.mrb[0].mxu0
      %v1578 = vadd.f32 0.0, %v1577
      %v1579 = vpop.f32.mrb[0].mxu0
      %1580 = vdwg.mxu0
      %v1581 = vadd.f32 %v1399, %v1535
      %v1582 = vadd.f32 %v1400, %v1538
      %v1583 = vadd.f32 %v1401, %v1543
      %v1584 = vadd.f32 %v1402, %v1546
      %v1585 = vadd.f32 %v1403, %v1551
      %v1586 = vadd.f32 %v1404, %v1554
      %v1587 = vadd.f32 %v1405, %v1559
      %v1588 = vadd.f32 %v1406, %v1562
      %v1589 = vadd.f32 %v1407, %v1567
      %v1590 = vadd.f32 %v1408, %v1570
      %v1591 = vadd.f32 %v1409, %v1575
      %v1592 = vadd.f32 %v1410, %v1578
      %s1593 = scalar_lea.vmem %s1, 256
      %v1594 = vld [vmem:[%s1593] sm:$0xf]
      %v1595 = vld [vmem:[%s1593 + $0x4] sm:$0xf]
      %v1596 = vld [vmem:[%s1593 + $0x8] sm:$0xf]
      %v1597 = vld [vmem:[%s1593 + $0xc] sm:$0xf]
      %v1598 = vld [vmem:[%s1593 + $0x10] sm:$0xf]
      %v1599 = vld [vmem:[%s1593 + $0x14] sm:$0xf]
      %v1600 = vld [vmem:[%s1593 + $0x18] sm:$0xf]
      %v1601 = vld [vmem:[%s1593 + $0x1c] sm:$0xf]
      %vm1602 = vcmask 1044480
      %v1603 = vrot.slane %v330, 3
      %v1604 = vrot.slane %v331, 3
      %v1605 = vsel %vm1602, %v1603, %v1604
      %v1606 = vrot.slane %v332, 3
      %v1607 = vsel %vm1602, %v1604, %v1606
      %v1608 = vrot.slane %v333, 3
      %v1609 = vsel %vm1602, %v1606, %v1608
      %v1610 = vrot.slane %v800, 3
      %v1611 = vsel %vm1602, %v1608, %v1610
      %v1612 = vrot.slane %v1282, 3
      %v1613 = vsel %vm1602, %v1610, %v1612
      %v1614 = vrot.slane %v1283, 3
      %v1615 = vsel %vm1602, %v1612, %v1614
      %v1624 = vunpack.c.l.b16 %v1594
      %v1625 = vunpack.c.l.b16 %v1595
      %v1626 = vunpack.c.l.b16 %v1596
      %v1627 = vunpack.c.l.b16 %v1597
      %v1628 = vunpack.c.l.b16 %v1598
      %v1629 = vunpack.c.l.b16 %v1599
      %v1630 = vunpack.c.l.b16 %v1600
      %v1631 = vunpack.c.l.b16 %v1601
      %v1632 = vpack.c.b16 %v1625, %v1624
      %v1633 = vpack.c.b16 %v1627, %v1626
      %v1634 = vpack.c.b16 %v1629, %v1628
      %v1635 = vpack.c.b16 %v1631, %v1630
      %v1641 = vsel %vm412, %v1605, 0
      %v1644 = vsel %vm412, %v1607, 0
      %v1647 = vsel %vm412, %v1609, 0
      %v1650 = vsel %vm412, %v1611, 0
      %v1653 = vsel %vm412, %v1613, 0
      %v1656 = vsel %vm412, %v1615, 0
      %1658 = vmatprep.subr.bf16.mxu0 0
      %1659 = vmatpush1.bf16.msra.mxu0 %v1632
      %1660 = vmatprep.subr.bf16.mxu0 0
      %1661 = vmatpush1.bf16.msra.mxu0 %v1633
      %1662 = vmatprep.subr.bf16.mxu0 0
      %1663 = vmatpush1.bf16.msra.mxu0 %v1634
      %1664 = vmatprep.subr.bf16.mxu0 0
      %1665 = vmatpush1.bf16.msra.mxu0 %v1635
      %1666 = vmatprep.subr.bf16.mxu0 0
      %1667 = vmatpush1.bf16.msra.mxu0 0
      %1668 = vmatprep.subr.bf16.mxu0 0
      %1669 = vmatpush1.bf16.msra.mxu0 0
      %1670 = vmatprep.subr.bf16.mxu0 0
      %1671 = vmatpush1.bf16.msra.mxu0 0
      %1672 = vmatprep.subr.bf16.mxu0 0
      %1673 = vmatpush1.bf16.msra.mxu0 0
      %1674 = vmatprep.subr.bf16.mxu0 0
      %1675 = vmatpush1.bf16.msra.mxu0 0
      %1676 = vmatprep.subr.bf16.mxu0 0
      %1677 = vmatpush1.bf16.msra.mxu0 0
      %1678 = vmatprep.subr.bf16.mxu0 0
      %1679 = vmatpush1.bf16.msra.mxu0 0
      %1680 = vmatprep.subr.bf16.mxu0 0
      %1681 = vmatpush1.bf16.msra.mxu0 0
      %1682 = vmatprep.subr.bf16.mxu0 0
      %1683 = vmatpush1.bf16.msra.mxu0 0
      %1684 = vmatprep.subr.bf16.mxu0 0
      %1685 = vmatpush1.bf16.msra.mxu0 0
      %1686 = vmatprep.subr.bf16.mxu0 0
      %1687 = vmatpush1.bf16.msra.mxu0 0
      %1688 = vmatprep.subr.bf16.mxu0 0
      %1689 = vmatpush1.bf16.msra.mxu0 0
      %1690 = vmatprep.mubr.bf16.mxu0 0
      %1691 = vmatmul.mubr.bf16.gmra.mrb[0].mxu0 %v1641
      %v1692 = vpop.f32.mrb[0].mxu0
      %v1693 = vadd.f32 0.0, %v1692
      %v1694 = vpop.f32.mrb[0].mxu0
      %v1695 = vpop.f32.mrb[0].mxu0
      %v1696 = vadd.f32 0.0, %v1695
      %v1697 = vpop.f32.mrb[0].mxu0
      %1698 = vmatprep.mubr.bf16.mxu0 0
      %1699 = vmatmul.mubr.bf16.gmra.mrb[0].mxu0 %v1644
      %v1700 = vpop.f32.mrb[0].mxu0
      %v1701 = vadd.f32 0.0, %v1700
      %v1702 = vpop.f32.mrb[0].mxu0
      %v1703 = vpop.f32.mrb[0].mxu0
      %v1704 = vadd.f32 0.0, %v1703
      %v1705 = vpop.f32.mrb[0].mxu0
      %1706 = vmatprep.mubr.bf16.mxu0 0
      %1707 = vmatmul.mubr.bf16.gmra.mrb[0].mxu0 %v1647
      %v1708 = vpop.f32.mrb[0].mxu0
      %v1709 = vadd.f32 0.0, %v1708
      %v1710 = vpop.f32.mrb[0].mxu0
      %v1711 = vpop.f32.mrb[0].mxu0
      %v1712 = vadd.f32 0.0, %v1711
      %v1713 = vpop.f32.mrb[0].mxu0
      %1714 = vmatprep.mubr.bf16.mxu0 0
      %1715 = vmatmul.mubr.bf16.gmra.mrb[0].mxu0 %v1650
      %v1716 = vpop.f32.mrb[0].mxu0
      %v1717 = vadd.f32 0.0, %v1716
      %v1718 = vpop.f32.mrb[0].mxu0
      %v1719 = vpop.f32.mrb[0].mxu0
      %v1720 = vadd.f32 0.0, %v1719
      %v1721 = vpop.f32.mrb[0].mxu0
      %1722 = vmatprep.mubr.bf16.mxu0 0
      %1723 = vmatmul.mubr.bf16.gmra.mrb[0].mxu0 %v1653
      %v1724 = vpop.f32.mrb[0].mxu0
      %v1725 = vadd.f32 0.0, %v1724
      %v1726 = vpop.f32.mrb[0].mxu0
      %v1727 = vpop.f32.mrb[0].mxu0
      %v1728 = vadd.f32 0.0, %v1727
      %v1729 = vpop.f32.mrb[0].mxu0
      %1730 = vmatprep.mubr.bf16.mxu0 0
      %1731 = vmatmul.mubr.bf16.gmra.mrb[0].mxu0 %v1656
      %v1732 = vpop.f32.mrb[0].mxu0
      %v1733 = vadd.f32 0.0, %v1732
      %v1734 = vpop.f32.mrb[0].mxu0
      %v1735 = vpop.f32.mrb[0].mxu0
      %v1736 = vadd.f32 0.0, %v1735
      %v1737 = vpop.f32.mrb[0].mxu0
      %1738 = vdwg.mxu0
      %v1739 = vadd.f32 %v1581, %v1693
      %v1740 = vadd.f32 %v1582, %v1696
      %v1741 = vadd.f32 %v1583, %v1701
      %v1742 = vadd.f32 %v1584, %v1704
      %v1743 = vadd.f32 %v1585, %v1709
      %v1744 = vadd.f32 %v1586, %v1712
      %v1745 = vadd.f32 %v1587, %v1717
      %v1746 = vadd.f32 %v1588, %v1720
      %v1747 = vadd.f32 %v1589, %v1725
      %v1748 = vadd.f32 %v1590, %v1728
      %v1749 = vadd.f32 %v1591, %v1733
      %v1750 = vadd.f32 %v1592, %v1736
      %v1751 = vld [vmem:[%s2] sm:$0x1]
      %v1753 = vlaneseq
      %v1754 = vshrl.u32 %v1753, 7
      %v1755 = vsub.s32 0, %v1754
      %v1756 = vrot.slane %v1751, %v1755
      %v1758 = vmul.f32 %v1739, %v1756
      %v1759 = vmul.f32 %v1740, %v1756
      %v1760 = vmul.f32 %v1741, %v1756
      %v1761 = vmul.f32 %v1742, %v1756
      %v1762 = vmul.f32 %v1743, %v1756
      %v1763 = vmul.f32 %v1744, %v1756
      %v1764 = vmul.f32 %v1745, %v1756
      %v1765 = vmul.f32 %v1746, %v1756
      %v1766 = vmul.f32 %v1747, %v1756
      %v1767 = vmul.f32 %v1748, %v1756
      %v1768 = vmul.f32 %v1749, %v1756
      %v1769 = vmul.f32 %v1750, %v1756
      %v1770 = vld [vmem:[%s3] sm:$0x1]
      %v1772 = vlaneseq
      %v1773 = vshrl.u32 %v1772, 7
      %v1774 = vsub.s32 0, %v1773
      %v1775 = vrot.slane %v1770, %v1774
      %v1777 = vadd.f32 %v1758, %v1775
      %v1778 = vadd.f32 %v1759, %v1775
      %v1779 = vadd.f32 %v1760, %v1775
      %v1780 = vadd.f32 %v1761, %v1775
      %v1781 = vadd.f32 %v1762, %v1775
      %v1782 = vadd.f32 %v1763, %v1775
      %v1783 = vadd.f32 %v1764, %v1775
      %v1784 = vadd.f32 %v1765, %v1775
      %v1785 = vadd.f32 %v1766, %v1775
      %v1786 = vadd.f32 %v1767, %v1775
      %v1787 = vadd.f32 %v1768, %v1775
      %v1788 = vadd.f32 %v1769, %v1775
      %v1789 = vmax.f32 %v1777, 0.0
      %v1790 = vmax.f32 %v1778, 0.0
      %v1791 = vmax.f32 %v1779, 0.0
      %v1792 = vmax.f32 %v1780, 0.0
      %v1793 = vmax.f32 %v1781, 0.0
      %v1794 = vmax.f32 %v1782, 0.0
      %v1795 = vmax.f32 %v1783, 0.0
      %v1796 = vmax.f32 %v1784, 0.0
      %v1797 = vmax.f32 %v1785, 0.0
      %v1798 = vmax.f32 %v1786, 0.0
      %v1799 = vmax.f32 %v1787, 0.0
      %v1800 = vmax.f32 %v1788, 0.0
      %v1801 = vld [vmem:[%s251] sm:$0x1]
      %v1803 = vlaneseq
      %v1804 = vshrl.u32 %v1803, 7
      %v1805 = vsub.s32 0, %v1804
      %v1806 = vrot.slane %v1801, %v1805
      %v1808 = vmul.f32 %v1789, %v1806
      %v1809 = vmul.f32 %v1790, %v1806
      %v1810 = vmul.f32 %v1791, %v1806
      %v1811 = vmul.f32 %v1792, %v1806
      %v1812 = vmul.f32 %v1793, %v1806
      %v1813 = vmul.f32 %v1794, %v1806
      %v1814 = vmul.f32 %v1795, %v1806
      %v1815 = vmul.f32 %v1796, %v1806
      %v1816 = vmul.f32 %v1797, %v1806
      %v1817 = vmul.f32 %v1798, %v1806
      %v1818 = vmul.f32 %v1799, %v1806
      %v1819 = vmul.f32 %v1800, %v1806
      %v1820 = vpack.c.bf16 %v1809, %v1808
      %v1821 = vpack.c.bf16 %v1811, %v1810
      %v1822 = vpack.c.bf16 %v1813, %v1812
      %v1823 = vpack.c.bf16 %v1815, %v1814
      %v1824 = vpack.c.bf16 %v1817, %v1816
      %v1825 = vpack.c.bf16 %v1819, %v1818
      %v1832 = vunpack.c.l.b16 %v1820
      %v1833 = vunpack.c.h.b16 %v1820
      %v1834 = vunpack.c.l.b16 %v1821
      %v1835 = vunpack.c.h.b16 %v1821
      %v1836 = vunpack.c.l.b16 %v1822
      %v1837 = vunpack.c.h.b16 %v1822
      %v1838 = vunpack.c.l.b16 %v1823
      %v1839 = vunpack.c.h.b16 %v1823
      %v1840 = vunpack.c.l.b16 %v1824
      %v1841 = vunpack.c.h.b16 %v1824
      %v1842 = vunpack.c.l.b16 %v1825
      %v1843 = vunpack.c.h.b16 %v1825
      %v1844 = vpack.c.b16 %v1832, %v1832
      %v1845 = vpack.c.b16 %v1833, %v1833
      %v1846 = vpack.c.b16 %v1834, %v1834
      %v1847 = vpack.c.b16 %v1835, %v1835
      %v1848 = vpack.c.b16 %v1836, %v1836
      %v1849 = vpack.c.b16 %v1837, %v1837
      %v1850 = vpack.c.b16 %v1838, %v1838
      %v1851 = vpack.c.b16 %v1839, %v1839
      %v1852 = vpack.c.b16 %v1840, %v1840
      %v1853 = vpack.c.b16 %v1841, %v1841
      %v1854 = vpack.c.b16 %v1842, %v1842
      %v1855 = vpack.c.b16 %v1843, %v1843
      %vm1868 = vcmask 519168
      %1869 = vst.msk [vmem:[%s260] sm:$0xf] %vm1868, %v1844
      %1870 = vst.msk [vmem:[%s260 + $0x4] sm:$0xf] %vm1868, %v1845
      %1871 = vst.msk [vmem:[%s260 + $0x8] sm:$0xf] %vm1868, %v1846
      %1872 = vst.msk [vmem:[%s260 + $0xc] sm:$0xf] %vm1868, %v1847
      %1873 = vst.msk [vmem:[%s260 + $0x10] sm:$0xf] %vm1868, %v1848
      %1874 = vst.msk [vmem:[%s260 + $0x14] sm:$0xf] %vm1868, %v1849
      %1875 = vst.msk [vmem:[%s260 + $0x18] sm:$0xf] %vm1868, %v1850
      %1876 = vst.msk [vmem:[%s260 + $0x1c] sm:$0xf] %vm1868, %v1851
      %1877 = vst.msk [vmem:[%s260 + $0x20] sm:$0xf] %vm1868, %v1852
      %1878 = vst.msk [vmem:[%s260 + $0x24] sm:$0xf] %vm1868, %v1853
      %1879 = vst.msk [vmem:[%s260 + $0x28] sm:$0xf] %vm1868, %v1854
      %1880 = vst.msk [vmem:[%s260 + $0x2c] sm:$0xf] %vm1868, %v1855
      %s1881 = smul.u32 12, %s21
      %p1882 = scmp.lt.s32.totalorder %s20, 1
      %s1883 = scalar_select %p1882, %s20, 1
      %p1884 = scmp.lt.s32.totalorder %s1881, 35
      %s1885 = scalar_select %p1884, %s1881, 35
      %s1886 = smul.addr %s1883, 36
      %s1887 = sadd.s32 %s1885, %s1886
      %s1888 = smul.addr %s1887, 4
      %s1889 = scalar_lea.vmem %s5, %s1888
      // Predicated region
      $region41: #{mlfn_block_forward.6} parent=39 // pred_check
        %p1890 = pneg %p163
      $region42: #{mlfn_block_forward.6} parent=39 // pred_check_branch
        %1892 = sbr.rel (%p1890) target = $region44
      $region43: #{mlfn_block_forward.6} parent=39 // pred_region
        %s1893 = smul.u32 12, %s21
      $region44: #{mlfn_block_forward.6} parent=39 // pred_fallthru
        _
    $region40: #{mlfn_block_forward.6} parent=5 // pred_fallthru
      _
    %p1894 = scmp.le.s32.totalorder 2, %s11
    // Predicated region
    $region45: #{mlfn_block_forward.6} parent=5 // pred_check
      %p1895 = pneg %p1894
    $region46: #{mlfn_block_forward.6} parent=5 // pred_check_branch
      %1897 = sbr.rel (%p1895) target = $region48
    $region47: #{mlfn_block_forward.6} parent=5 // pred_region
      %s1898 = ssub.s32 %s11, 2
      // Predicated region
      $region49: #{mlfn_block_forward.6} parent=47 // pred_check
        %p1899 = pneg %p169
      $region50: #{mlfn_block_forward.6} parent=47 // pred_check_branch
        %1901 = sbr.rel (%p1899) target = $region52
      $region51: #{mlfn_block_forward.6} parent=47 // pred_region
        %s1902 = smul.u32 12, %s23
        %p1903 = scmp.lt.s32.totalorder %s22, 1
        %s1904 = scalar_select %p1903, %s22, 1
        %p1905 = scmp.lt.s32.totalorder %s1902, 35
        %s1906 = scalar_select %p1905, %s1902, 35
        %s1907 = smul.addr %s1904, 36
        %s1908 = sadd.s32 %s1906, %s1907
        %s1909 = smul.addr %s1908, 4
        %s1910 = scalar_lea.vmem %s5, %s1909
      $region52: #{mlfn_block_forward.6} parent=47 // pred_fallthru
        _
    $region48: #{mlfn_block_forward.6} parent=5 // pred_fallthru
      _
  $region6: #{mlfn_block_forward.6} parent=0 // loop_footer
    %s15 = sadd.s32 1, %s11
  $region7: #{mlfn_block_forward.6} parent=0 // loop_footer_branch
    %10 = sbr.rel target = $region3
  $region8: #{mlfn_block_forward.6} parent=0 // loop_exit
    _

// kernel: mlfn_block_forward.7
$region0: #{mlfn_block_forward.7}
  #allocation0 [shape = 'u32[]', space=smem, size = 0x4, offset = 0x4, fixed_abs, tag = 'smem constant byte address 0x4 - core index']
  #allocation1 [shape = 'u32[144,128]{1,0:T(1,128)}', space=vmem, size = 0x12000, scoped, tag = 'internal scratch']
  %s0 = inlined_call_operand.vmem [shape: bf16[512,64], index: 0, kind: input, shape index: {}]
  %s1 = inlined_call_operand.vmem [shape: f32[512,64], index: 1, kind: input, shape index: {}]
  %s2 = inlined_call_operand.vmem [shape: bf16[64,128], index: 2, kind: input, shape index: {}]
  %s3 = inlined_call_operand.vmem [shape: f32[1,128], index: 3, kind: input, shape index: {}]
  %s4 = inlined_call_operand.vmem [shape: f32[1,128], index: 4, kind: input, shape index: {}]
  %s5 = inlined_call_operand.vmem [shape: bf16[64,128], index: 5, kind: input, shape index: {}]
  %s6 = inlined_call_operand.vmem [shape: f32[1,128], index: 6, kind: input, shape index: {}]
  %s7 = inlined_call_operand.vmem [shape: f32[1,128], index: 7, kind: input, shape index: {}]
  %s8 = inlined_call_operand.hbm [shape: f32[512,128], index: 8, kind: output, shape index: {}]
  %s9 = sld [smem:[#allocation0]]
  $region65: #{mlfn_block_forward.7} parent=0
    _
  %s11 = ssub.s32 1, %s9
  %s12 = scalar_select 0, %s11, %s9
  $region1: #{mlfn_block_forward.7} parent=0
    #allocation2 [shape = 'u8[131072]{0}', space=vmem, size = 0x20000, scoped, tag = 'output window, operand 0']
    #allocation3 [shape = 's32[2]{0}', space=sflag, size = 0x8, scoped, tag = 'scoped memory for mlfn_block_forward.7']
    %13 = vsyncpa [#allocation3], 0
    %s14 = scalar_lea.sflag [#allocation3], 1
    %15 = vsyncpa %s14, 0
    loop: start=0, step=1, limit=6
    $region2: #{mlfn_block_forward.7} parent=1 // loop_pre_header
      _
    $region3: #{mlfn_block_forward.7} parent=1 // loop_header
      %s17 = sphi 0, %s21
      %p18 = scmp.ge.s32.totalorder %s17, 6
      %s27 = sphi 0, %s29
      %s30 = sphi 0, %s27
      %s31 = sphi 0, %s30
      %s47 = sphi 0, %s31
      %s53 = sphi 0, %s55
      %s56 = sphi 0, %s53
      %s57 = sphi 0, %s56
      %s73 = sphi 0, %s57
      %s77 = sphi 0, %s77
      %s79 = sphi 0, %s77
      %s80 = sphi 0, %s79
      %s94 = sphi 0, %s80
      %s98 = sphi 0, %s98
      %s100 = sphi 0, %s98
      %s101 = sphi 0, %s100
      %s115 = sphi 0, %s101
      %s119 = sphi 0, %s119
      %s121 = sphi 0, %s119
      %s122 = sphi 0, %s121
      %s136 = sphi 0, %s122
      %s140 = sphi 0, %s140
      %s142 = sphi 0, %s140
      %s143 = sphi 0, %s142
      %s157 = sphi 0, %s143
      %s161 = sphi 0, %s161
      %s163 = sphi 0, %s161
      %s164 = sphi 0, %s163
      %s178 = sphi 0, %s164
      %s182 = sphi 0, %s182
      %s184 = sphi 0, %s182
      %s185 = sphi 0, %s184
      %s199 = sphi 0, %s185
      %s205 = sphi 0, %s207
      %s208 = sphi 0, %s205
      %s209 = sphi 0, %s208
      %s225 = sphi 0, %s209
    $region4: #{mlfn_block_forward.7} parent=1 // loop_header_branch
      %20 = sbr.rel (%p18) target = $region8
    $region5: #{mlfn_block_forward.7} parent=1 // loop_body
      %s22 = ssub.s32 %s17, 1
      %s23 = ssub.s32 %s17, 2
      %s24 = sadd.s32 %s17, 1
      %s25 = ssub.s32 %s17, %s24
      %p26 = scmp.eq.s32.totalorder %s25, 0
      %s28 = sadd.s32 %s27, 1
      %s29 = scalar_select %p26, %s27, %s28
      %p32 = pneg %p26
      %p33 = scmp.eq.s32.totalorder %s17, 3
      %p34 = por %p32, %p33
      %p35 = scmp.ne.s32.totalorder %s27, %s30
      %p36 = scmp.eq.s32.totalorder %s17, 0
      %p37 = por %p35, %p36
      %p38 = scmp.ne.s32.totalorder %s27, %s30
      %p39 = scmp.eq.s32.totalorder %s22, 3
      %p40 = por %p38, %p39
      %p41 = scmp.ne.s32.totalorder %s30, %s31
      %p42 = scmp.eq.s32.totalorder %s22, 0
      %p43 = por %p41, %p42
      %p44 = scmp.ne.s32.totalorder %s30, %s31
      %p45 = scmp.eq.s32.totalorder %s23, 3
      %p46 = por %p44, %p45
      %p48 = scmp.ne.s32.totalorder %s31, %s47
      %p49 = scmp.eq.s32.totalorder %s23, 0
      %p50 = por %p48, %p49
      %s51 = ssub.s32 %s17, %s24
      %p52 = scmp.eq.s32.totalorder %s51, 0
      %s54 = sadd.s32 %s53, 1
      %s55 = scalar_select %p52, %s53, %s54
      %p58 = pneg %p52
      %p59 = scmp.eq.s32.totalorder %s17, 3
      %p60 = por %p58, %p59
      %p61 = scmp.ne.s32.totalorder %s53, %s56
      %p62 = scmp.eq.s32.totalorder %s17, 0
      %p63 = por %p61, %p62
      %p64 = scmp.ne.s32.totalorder %s53, %s56
      %p65 = scmp.eq.s32.totalorder %s22, 3
      %p66 = por %p64, %p65
      %p67 = scmp.ne.s32.totalorder %s56, %s57
      %p68 = scmp.eq.s32.totalorder %s22, 0
      %p69 = por %p67, %p68
      %p70 = scmp.ne.s32.totalorder %s56, %s57
      %p71 = scmp.eq.s32.totalorder %s23, 3
      %p72 = por %p70, %p71
      %p74 = scmp.ne.s32.totalorder %s57, %s73
      %p75 = scmp.eq.s32.totalorder %s23, 0
      %p76 = por %p74, %p75
      %s78 = sadd.s32 %s77, 1
      %p81 = scmp.eq.s32.totalorder %s17, 3
      %p82 = scmp.ne.s32.totalorder %s77, %s79
      %p83 = scmp.eq.s32.totalorder %s17, 0
      %p84 = por %p82, %p83
      %p85 = scmp.ne.s32.totalorder %s77, %s79
      %p86 = scmp.eq.s32.totalorder %s22, 3
      %p87 = por %p85, %p86
      %p88 = scmp.ne.s32.totalorder %s79, %s80
      %p89 = scmp.eq.s32.totalorder %s22, 0
      %p90 = por %p88, %p89
      %p91 = scmp.ne.s32.totalorder %s79, %s80
      %p92 = scmp.eq.s32.totalorder %s23, 3
      %p93 = por %p91, %p92
      %p95 = scmp.ne.s32.totalorder %s80, %s94
      %p96 = scmp.eq.s32.totalorder %s23, 0
      %p97 = por %p95, %p96
      %s99 = sadd.s32 %s98, 1
      %p102 = scmp.eq.s32.totalorder %s17, 3
      %p103 = scmp.ne.s32.totalorder %s98, %s100
      %p104 = scmp.eq.s32.totalorder %s17, 0
      %p105 = por %p103, %p104
      %p106 = scmp.ne.s32.totalorder %s98, %s100
      %p107 = scmp.eq.s32.totalorder %s22, 3
      %p108 = por %p106, %p107
      %p109 = scmp.ne.s32.totalorder %s100, %s101
      %p110 = scmp.eq.s32.totalorder %s22, 0
      %p111 = por %p109, %p110
      %p112 = scmp.ne.s32.totalorder %s100, %s101
      %p113 = scmp.eq.s32.totalorder %s23, 3
      %p114 = por %p112, %p113
      %p116 = scmp.ne.s32.totalorder %s101, %s115
      %p117 = scmp.eq.s32.totalorder %s23, 0
      %p118 = por %p116, %p117
      %s120 = sadd.s32 %s119, 1
      %p123 = scmp.eq.s32.totalorder %s17, 3
      %p124 = scmp.ne.s32.totalorder %s119, %s121
      %p125 = scmp.eq.s32.totalorder %s17, 0
      %p126 = por %p124, %p125
      %p127 = scmp.ne.s32.totalorder %s119, %s121
      %p128 = scmp.eq.s32.totalorder %s22, 3
      %p129 = por %p127, %p128
      %p130 = scmp.ne.s32.totalorder %s121, %s122
      %p131 = scmp.eq.s32.totalorder %s22, 0
      %p132 = por %p130, %p131
      %p133 = scmp.ne.s32.totalorder %s121, %s122
      %p134 = scmp.eq.s32.totalorder %s23, 3
      %p135 = por %p133, %p134
      %p137 = scmp.ne.s32.totalorder %s122, %s136
      %p138 = scmp.eq.s32.totalorder %s23, 0
      %p139 = por %p137, %p138
      %s141 = sadd.s32 %s140, 1
      %p144 = scmp.eq.s32.totalorder %s17, 3
      %p145 = scmp.ne.s32.totalorder %s140, %s142
      %p146 = scmp.eq.s32.totalorder %s17, 0
      %p147 = por %p145, %p146
      %p148 = scmp.ne.s32.totalorder %s140, %s142
      %p149 = scmp.eq.s32.totalorder %s22, 3
      %p150 = por %p148, %p149
      %p151 = scmp.ne.s32.totalorder %s142, %s143
      %p152 = scmp.eq.s32.totalorder %s22, 0
      %p153 = por %p151, %p152
      %p154 = scmp.ne.s32.totalorder %s142, %s143
      %p155 = scmp.eq.s32.totalorder %s23, 3
      %p156 = por %p154, %p155
      %p158 = scmp.ne.s32.totalorder %s143, %s157
      %p159 = scmp.eq.s32.totalorder %s23, 0
      %p160 = por %p158, %p159
      %s162 = sadd.s32 %s161, 1
      %p165 = scmp.eq.s32.totalorder %s17, 3
      %p166 = scmp.ne.s32.totalorder %s161, %s163
      %p167 = scmp.eq.s32.totalorder %s17, 0
      %p168 = por %p166, %p167
      %p169 = scmp.ne.s32.totalorder %s161, %s163
      %p170 = scmp.eq.s32.totalorder %s22, 3
      %p171 = por %p169, %p170
      %p172 = scmp.ne.s32.totalorder %s163, %s164
      %p173 = scmp.eq.s32.totalorder %s22, 0
      %p174 = por %p172, %p173
      %p175 = scmp.ne.s32.totalorder %s163, %s164
      %p176 = scmp.eq.s32.totalorder %s23, 3
      %p177 = por %p175, %p176
      %p179 = scmp.ne.s32.totalorder %s164, %s178
      %p180 = scmp.eq.s32.totalorder %s23, 0
      %p181 = por %p179, %p180
      %s183 = sadd.s32 %s182, 1
      %p186 = scmp.eq.s32.totalorder %s17, 3
      %p187 = scmp.ne.s32.totalorder %s182, %s184
      %p188 = scmp.eq.s32.totalorder %s17, 0
      %p189 = por %p187, %p188
      %p190 = scmp.ne.s32.totalorder %s182, %s184
      %p191 = scmp.eq.s32.totalorder %s22, 3
      %p192 = por %p190, %p191
      %p193 = scmp.ne.s32.totalorder %s184, %s185
      %p194 = scmp.eq.s32.totalorder %s22, 0
      %p195 = por %p193, %p194
      %p196 = scmp.ne.s32.totalorder %s184, %s185
      %p197 = scmp.eq.s32.totalorder %s23, 3
      %p198 = por %p196, %p197
      %p200 = scmp.ne.s32.totalorder %s185, %s199
      %p201 = scmp.eq.s32.totalorder %s23, 0
      %p202 = por %p200, %p201
      %s203 = ssub.s32 %s17, %s24
      %p204 = scmp.eq.s32.totalorder %s203, 0
      %s206 = sadd.s32 %s205, 1
      %s207 = scalar_select %p204, %s205, %s206
      %p210 = pneg %p204
      %p211 = scmp.eq.s32.totalorder %s17, 3
      %p212 = por %p210, %p211
      %p213 = scmp.ne.s32.totalorder %s205, %s208
      %p214 = scmp.eq.s32.totalorder %s17, 0
      %p215 = por %p213, %p214
      %p216 = scmp.ne.s32.totalorder %s205, %s208
      %p217 = scmp.eq.s32.totalorder %s22, 3
      %p218 = por %p216, %p217
      %p219 = scmp.ne.s32.totalorder %s208, %s209
      %p220 = scmp.eq.s32.totalorder %s22, 0
      %p221 = por %p219, %p220
      %p222 = scmp.ne.s32.totalorder %s208, %s209
      %p223 = scmp.eq.s32.totalorder %s23, 3
      %p224 = por %p222, %p223
      %p226 = scmp.ne.s32.totalorder %s209, %s225
      %p227 = scmp.eq.s32.totalorder %s23, 0
      %p228 = por %p226, %p227
      %p229 = scmp.le.s32.totalorder 1, %s17
      %p230 = scmp.lt.s32.totalorder %s17, 5
      %p231 = pnand %p229, %p230
      %p232 = pneg %p231
      // Predicated region
      $region9: #{mlfn_block_forward.7} parent=5 // pred_check
        _
      $region10: #{mlfn_block_forward.7} parent=5 // pred_check_branch
        %234 = sbr.rel (%p231) target = $region12
      $region11: #{mlfn_block_forward.7} parent=5 // pred_region
        %s235 = ssub.s32 %s17, 1
        // Predicated region
        $region13: #{mlfn_block_forward.7} parent=11 // pred_check
          %p236 = pneg %p90
        $region14: #{mlfn_block_forward.7} parent=11 // pred_check_branch
          %238 = sbr.rel (%p236) target = $region16
        $region15: #{mlfn_block_forward.7} parent=11 // pred_region
          _
        $region16: #{mlfn_block_forward.7} parent=11 // pred_fallthru
          _
        // Predicated region
        $region17: #{mlfn_block_forward.7} parent=11 // pred_check
          %p239 = pneg %p111
        $region18: #{mlfn_block_forward.7} parent=11 // pred_check_branch
          %241 = sbr.rel (%p239) target = $region20
        $region19: #{mlfn_block_forward.7} parent=11 // pred_region
          _
        $region20: #{mlfn_block_forward.7} parent=11 // pred_fallthru
          _
        // Predicated region
        $region21: #{mlfn_block_forward.7} parent=11 // pred_check
          %p242 = pneg %p132
        $region22: #{mlfn_block_forward.7} parent=11 // pred_check_branch
          %244 = sbr.rel (%p242) target = $region24
        $region23: #{mlfn_block_forward.7} parent=11 // pred_region
          _
        $region24: #{mlfn_block_forward.7} parent=11 // pred_fallthru
          _
        // Predicated region
        $region25: #{mlfn_block_forward.7} parent=11 // pred_check
          %p245 = pneg %p153
        $region26: #{mlfn_block_forward.7} parent=11 // pred_check_branch
          %247 = sbr.rel (%p245) target = $region28
        $region27: #{mlfn_block_forward.7} parent=11 // pred_region
          _
        $region28: #{mlfn_block_forward.7} parent=11 // pred_fallthru
          _
        // Predicated region
        $region29: #{mlfn_block_forward.7} parent=11 // pred_check
          %p248 = pneg %p174
        $region30: #{mlfn_block_forward.7} parent=11 // pred_check_branch
          %250 = sbr.rel (%p248) target = $region32
        $region31: #{mlfn_block_forward.7} parent=11 // pred_region
          _
        $region32: #{mlfn_block_forward.7} parent=11 // pred_fallthru
          _
        // Predicated region
        $region33: #{mlfn_block_forward.7} parent=11 // pred_check
          %p251 = pneg %p195
        $region34: #{mlfn_block_forward.7} parent=11 // pred_check_branch
          %253 = sbr.rel (%p251) target = $region36
        $region35: #{mlfn_block_forward.7} parent=11 // pred_region
          _
        $region36: #{mlfn_block_forward.7} parent=11 // pred_fallthru
          _
      $region12: #{mlfn_block_forward.7} parent=5 // pred_fallthru
        _
      %p254 = scmp.lt.s32.totalorder %s17, 4
      // Predicated region
      $region37: #{mlfn_block_forward.7} parent=5 // pred_check
        %p255 = pneg %p254
      $region38: #{mlfn_block_forward.7} parent=5 // pred_check_branch
        %257 = sbr.rel (%p255) target = $region40
      $region39: #{mlfn_block_forward.7} parent=5 // pred_region
        // Predicated region
        $region41: #{mlfn_block_forward.7} parent=39 // pred_check
          %p258 = pneg %p37
        $region42: #{mlfn_block_forward.7} parent=39 // pred_check_branch
          %260 = sbr.rel (%p258) target = $region44
        $region43: #{mlfn_block_forward.7} parent=39 // pred_region
          %s261 = smul.u32 16, %s17
          %p262 = scmp.lt.s32.totalorder %s261, 63
          %s263 = scalar_select %p262, %s261, 63
          %s264 = smul.addr %s263, 4
          %s265 = scalar_lea.vmem %s0, %s264
          %s266 = smul.u32 16, %s17
        $region44: #{mlfn_block_forward.7} parent=39 // pred_fallthru
          _
        // Predicated region
        $region45: #{mlfn_block_forward.7} parent=39 // pred_check
          %p267 = pneg %p63
        $region46: #{mlfn_block_forward.7} parent=39 // pred_check_branch
          %269 = sbr.rel (%p267) target = $region48
        $region47: #{mlfn_block_forward.7} parent=39 // pred_region
          %s270 = smul.u32 16, %s17
          %p271 = scmp.lt.s32.totalorder %s270, 63
          %s272 = scalar_select %p271, %s270, 63
          %s273 = smul.addr %s272, 8
          %s274 = scalar_lea.vmem %s1, %s273
          %s275 = smul.u32 16, %s17
        $region48: #{mlfn_block_forward.7} parent=39 // pred_fallthru
          _
      $region40: #{mlfn_block_forward.7} parent=5 // pred_fallthru
        _
      %p276 = scmp.le.s32.totalorder 1, %s17
      %p277 = scmp.lt.s32.totalorder %s17, 5
      %p278 = pnand %p276, %p277
      %p279 = pneg %p278
      // Predicated region
      $region49: #{mlfn_block_forward.7} parent=5 // pred_check
        _
      $region50: #{mlfn_block_forward.7} parent=5 // pred_check_branch
        %281 = sbr.rel (%p278) target = $region52
      $region51: #{mlfn_block_forward.7} parent=5 // pred_region
        %s282 = ssub.s32 %s17, 1
        %s283 = smul.u32 16, %s22
        %p284 = scmp.lt.s32.totalorder %s283, 63
        %s285 = scalar_select %p284, %s283, 63
        %s286 = smul.addr %s285, 4
        %s287 = scalar_lea.vmem %s0, %s286
        %p288 = pneg %p43
        %p289 = pneg %p40
        %s290 = smul.u32 16, %s22
        %p291 = scmp.lt.s32.totalorder %s290, 63
        %s292 = scalar_select %p291, %s290, 63
        %s293 = smul.addr %s292, 8
        %s294 = scalar_lea.vmem %s1, %s293
        %p295 = pneg %p69
        %p296 = pneg %p66
        %p297 = pneg %p90
        %p298 = pneg %p87
        %p299 = pneg %p111
        %p300 = pneg %p108
        %p301 = pneg %p132
        %p302 = pneg %p129
        %p303 = pneg %p153
        %p304 = pneg %p150
        %p305 = pneg %p174
        %p306 = pneg %p171
        %p307 = pneg %p195
        %p308 = pneg %p192
        %p309 = pneg %p221
        %p310 = pneg %p218
        %s311 = sand.u32 %s208, 1
        %s312 = scalar_lea.sflag [#allocation3], %s311
        %s313 = sand.u32 %s208, 1
        %s314 = smul.addr %s313, 128
        %s315 = scalar_lea.vmem [#allocation2], %s314
        %s316 = smul.u32 16, %s22
        %p317 = scmp.lt.s32.totalorder %s316, 63
        %s318 = scalar_select %p317, %s316, 63
        %s319 = smul.addr %s318, 4
        %s320 = scalar_lea.vmem %s0, %s319
        %s321 = smul.u32 16, %s22
        %s322 = smul.u32 16, %s22
        %p323 = scmp.lt.s32.totalorder %s322, 63
        %s324 = scalar_select %p323, %s322, 63
        %s325 = smul.addr %s324, 8
        %s326 = scalar_lea.vmem %s1, %s325
        %s327 = smul.u32 16, %s22
        %s328 = smul.u32 16, %s22
        %v330 = vld [vmem:[%s320] sm:$0xf]
        %v331 = vld [vmem:[%s320 + $0x4] sm:$0xf]
        %v332 = vld [vmem:[%s320 + $0x8] sm:$0xf]
        %v333 = vld [vmem:[%s320 + $0xc] sm:$0xf]
        %v334 = vld [vmem:[%s320 + $0x10] sm:$0xf]
        %v335 = vld [vmem:[%s320 + $0x14] sm:$0xf]
        %v336 = vld [vmem:[%s320 + $0x18] sm:$0xf]
        %v337 = vld [vmem:[%s320 + $0x1c] sm:$0xf]
        %v338 = vld [vmem:[%s320 + $0x20] sm:$0xf]
        %v339 = vld [vmem:[%s320 + $0x24] sm:$0xf]
        %v340 = vld [vmem:[%s320 + $0x28] sm:$0xf]
        %v341 = vld [vmem:[%s320 + $0x2c] sm:$0xf]
        %v342 = vld [vmem:[%s320 + $0x30] sm:$0xf]
        %v343 = vld [vmem:[%s320 + $0x34] sm:$0xf]
        %v344 = vld [vmem:[%s320 + $0x38] sm:$0xf]
        %v345 = vld [vmem:[%s320 + $0x3c] sm:$0xf]
        %v346 = vld [vmem:[%s2] sm:$0xf]
        %v347 = vld [vmem:[%s2 + $0x4] sm:$0xf]
        %v348 = vld [vmem:[%s2 + $0x8] sm:$0xf]
        %v349 = vld [vmem:[%s2 + $0xc] sm:$0xf]
        %v350 = vld [vmem:[%s2 + $0x10] sm:$0xf]
        %v351 = vld [vmem:[%s2 + $0x14] sm:$0xf]
        %v352 = vld [vmem:[%s2 + $0x18] sm:$0xf]
        %v353 = vld [vmem:[%s2 + $0x1c] sm:$0xf]
        %v370 = vunpack.c.l.b16 %v330
        %v371 = vunpack.c.l.b16 %v331
        %v372 = vunpack.c.l.b16 %v332
        %v373 = vunpack.c.l.b16 %v333
        %v374 = vunpack.c.l.b16 %v334
        %v375 = vunpack.c.l.b16 %v335
        %v376 = vunpack.c.l.b16 %v336
        %v377 = vunpack.c.l.b16 %v337
        %v378 = vunpack.c.l.b16 %v338
        %v379 = vunpack.c.l.b16 %v339
        %v380 = vunpack.c.l.b16 %v340
        %v381 = vunpack.c.l.b16 %v341
        %v382 = vunpack.c.l.b16 %v342
        %v383 = vunpack.c.l.b16 %v343
        %v384 = vunpack.c.l.b16 %v344
        %v385 = vunpack.c.l.b16 %v345
        %v386 = vpack.c.b16 %v371, %v370
        %v387 = vpack.c.b16 %v373, %v372
        %v388 = vpack.c.b16 %v375, %v374
        %v389 = vpack.c.b16 %v377, %v376
        %v390 = vpack.c.b16 %v379, %v378
        %v391 = vpack.c.b16 %v381, %v380
        %v392 = vpack.c.b16 %v383, %v382
        %v393 = vpack.c.b16 %v385, %v384
        %v402 = vunpack.c.l.b16 %v346
        %v403 = vunpack.c.l.b16 %v347
        %v404 = vunpack.c.l.b16 %v348
        %v405 = vunpack.c.l.b16 %v349
        %v406 = vunpack.c.l.b16 %v350
        %v407 = vunpack.c.l.b16 %v351
        %v408 = vunpack.c.l.b16 %v352
        %v409 = vunpack.c.l.b16 %v353
        %v410 = vpack.c.b16 %v403, %v402
        %v411 = vpack.c.b16 %v405, %v404
        %v412 = vpack.c.b16 %v407, %v406
        %v413 = vpack.c.b16 %v409, %v408
        %vm418 = vcmask 523264
        %v420 = vsel %vm418, %v386, 0
        %v423 = vsel %vm418, %v387, 0
        %v426 = vsel %vm418, %v388, 0
        %v429 = vsel %vm418, %v389, 0
        %v432 = vsel %vm418, %v390, 0
        %v435 = vsel %vm418, %v391, 0
        %v438 = vsel %vm418, %v392, 0
        %v441 = vsel %vm418, %v393, 0
        %443 = vmatprep.subr.bf16.mxu0 0
        %444 = vmatpush1.bf16.msra.mxu0 %v410
        %445 = vmatprep.subr.bf16.mxu0 0
        %446 = vmatpush1.bf16.msra.mxu0 %v411
        %447 = vmatprep.subr.bf16.mxu0 0
        %448 = vmatpush1.bf16.msra.mxu0 %v412
        %449 = vmatprep.subr.bf16.mxu0 0
        %450 = vmatpush1.bf16.msra.mxu0 %v413
        %451 = vmatprep.subr.bf16.mxu0 0
        %452 = vmatpush1.bf16.msra.mxu0 0
        %453 = vmatprep.subr.bf16.mxu0 0
        %454 = vmatpush1.bf16.msra.mxu0 0
        %455 = vmatprep.subr.bf16.mxu0 0
        %456 = vmatpush1.bf16.msra.mxu0 0
        %457 = vmatprep.subr.bf16.mxu0 0
        %458 = vmatpush1.bf16.msra.mxu0 0
        %459 = vmatprep.subr.bf16.mxu0 0
        %460 = vmatpush1.bf16.msra.mxu0 0
        %461 = vmatprep.subr.bf16.mxu0 0
        %462 = vmatpush1.bf16.msra.mxu0 0
        %463 = vmatprep.subr.bf16.mxu0 0
        %464 = vmatpush1.bf16.msra.mxu0 0
        %465 = vmatprep.subr.bf16.mxu0 0
        %466 = vmatpush1.bf16.msra.mxu0 0
        %467 = vmatprep.subr.bf16.mxu0 0
        %468 = vmatpush1.bf16.msra.mxu0 0
        %469 = vmatprep.subr.bf16.mxu0 0
        %470 = vmatpush1.bf16.msra.mxu0 0
        %471 = vmatprep.subr.bf16.mxu0 0
        %472 = vmatpush1.bf16.msra.mxu0 0
        %473 = vmatprep.subr.bf16.mxu0 0
        %474 = vmatpush1.bf16.msra.mxu0 0
        %475 = vmatprep.mubr.bf16.mxu0 0
        %476 = vmatmul.mubr.bf16.gmra.mrb[0].mxu0 %v420
        %v477 = vpop.f32.mrb[0].mxu0
        %v478 = vadd.f32 0.0, %v477
        %v479 = vpop.f32.mrb[0].mxu0
        %v480 = vpop.f32.mrb[0].mxu0
        %v481 = vadd.f32 0.0, %v480
        %v482 = vpop.f32.mrb[0].mxu0
        %483 = vmatprep.mubr.bf16.mxu0 0
        %484 = vmatmul.mubr.bf16.gmra.mrb[0].mxu0 %v423
        %v485 = vpop.f32.mrb[0].mxu0
        %v486 = vadd.f32 0.0, %v485
        %v487 = vpop.f32.mrb[0].mxu0
        %v488 = vpop.f32.mrb[0].mxu0
        %v489 = vadd.f32 0.0, %v488
        %v490 = vpop.f32.mrb[0].mxu0
        %491 = vmatprep.mubr.bf16.mxu0 0
        %492 = vmatmul.mubr.bf16.gmra.mrb[0].mxu0 %v426
        %v493 = vpop.f32.mrb[0].mxu0
        %v494 = vadd.f32 0.0, %v493
        %v495 = vpop.f32.mrb[0].mxu0
        %v496 = vpop.f32.mrb[0].mxu0
        %v497 = vadd.f32 0.0, %v496
        %v498 = vpop.f32.mrb[0].mxu0
        %499 = vmatprep.mubr.bf16.mxu0 0
        %500 = vmatmul.mubr.bf16.gmra.mrb[0].mxu0 %v429
        %v501 = vpop.f32.mrb[0].mxu0
        %v502 = vadd.f32 0.0, %v501
        %v503 = vpop.f32.mrb[0].mxu0
        %v504 = vpop.f32.mrb[0].mxu0
        %v505 = vadd.f32 0.0, %v504
        %v506 = vpop.f32.mrb[0].mxu0
        %507 = vmatprep.mubr.bf16.mxu0 0
        %508 = vmatmul.mubr.bf16.gmra.mrb[0].mxu0 %v432
        %v509 = vpop.f32.mrb[0].mxu0
        %v510 = vadd.f32 0.0, %v509
        %v511 = vpop.f32.mrb[0].mxu0
        %v512 = vpop.f32.mrb[0].mxu0
        %v513 = vadd.f32 0.0, %v512
        %v514 = vpop.f32.mrb[0].mxu0
        %515 = vmatprep.mubr.bf16.mxu0 0
        %516 = vmatmul.mubr.bf16.gmra.mrb[0].mxu0 %v435
        %v517 = vpop.f32.mrb[0].mxu0
        %v518 = vadd.f32 0.0, %v517
        %v519 = vpop.f32.mrb[0].mxu0
        %v520 = vpop.f32.mrb[0].mxu0
        %v521 = vadd.f32 0.0, %v520
        %v522 = vpop.f32.mrb[0].mxu0
        %523 = vmatprep.mubr.bf16.mxu0 0
        %524 = vmatmul.mubr.bf16.gmra.mrb[0].mxu0 %v438
        %v525 = vpop.f32.mrb[0].mxu0
        %v526 = vadd.f32 0.0, %v525
        %v527 = vpop.f32.mrb[0].mxu0
        %v528 = vpop.f32.mrb[0].mxu0
        %v529 = vadd.f32 0.0, %v528
        %v530 = vpop.f32.mrb[0].mxu0
        %531 = vmatprep.mubr.bf16.mxu0 0
        %532 = vmatmul.mubr.bf16.gmra.mrb[0].mxu0 %v441
        %v533 = vpop.f32.mrb[0].mxu0
        %v534 = vadd.f32 0.0, %v533
        %v535 = vpop.f32.mrb[0].mxu0
        %v536 = vpop.f32.mrb[0].mxu0
        %v537 = vadd.f32 0.0, %v536
        %v538 = vpop.f32.mrb[0].mxu0
        %539 = vdwg.mxu0
        %v540 = vld [vmem:[%s3] sm:$0x1]
        %v542 = vlaneseq
        %v543 = vshrl.u32 %v542, 7
        %v544 = vsub.s32 0, %v543
        %v545 = vrot.slane %v540, %v544
        %v547 = vmul.f32 %v478, %v545
        %v548 = vmul.f32 %v481, %v545
        %v549 = vmul.f32 %v486, %v545
        %v550 = vmul.f32 %v489, %v545
        %v551 = vmul.f32 %v494, %v545
        %v552 = vmul.f32 %v497, %v545
        %v553 = vmul.f32 %v502, %v545
        %v554 = vmul.f32 %v505, %v545
        %v555 = vmul.f32 %v510, %v545
        %v556 = vmul.f32 %v513, %v545
        %v557 = vmul.f32 %v518, %v545
        %v558 = vmul.f32 %v521, %v545
        %v559 = vmul.f32 %v526, %v545
        %v560 = vmul.f32 %v529, %v545
        %v561 = vmul.f32 %v534, %v545
        %v562 = vmul.f32 %v537, %v545
        %v563 = vld [vmem:[%s4] sm:$0x1]
        %v565 = vlaneseq
        %v566 = vshrl.u32 %v565, 7
        %v567 = vsub.s32 0, %v566
        %v568 = vrot.slane %v563, %v567
        %v570 = vadd.f32 %v547, %v568
        %v571 = vadd.f32 %v548, %v568
        %v572 = vadd.f32 %v549, %v568
        %v573 = vadd.f32 %v550, %v568
        %v574 = vadd.f32 %v551, %v568
        %v575 = vadd.f32 %v552, %v568
        %v576 = vadd.f32 %v553, %v568
        %v577 = vadd.f32 %v554, %v568
        %v578 = vadd.f32 %v555, %v568
        %v579 = vadd.f32 %v556, %v568
        %v580 = vadd.f32 %v557, %v568
        %v581 = vadd.f32 %v558, %v568
        %v582 = vadd.f32 %v559, %v568
        %v583 = vadd.f32 %v560, %v568
        %v584 = vadd.f32 %v561, %v568
        %v585 = vadd.f32 %v562, %v568
        %v586 = vmax.f32 %v570, 0.0
        %v587 = vmax.f32 %v571, 0.0
        %v588 = vmax.f32 %v572, 0.0
        %v589 = vmax.f32 %v573, 0.0
        %v590 = vmax.f32 %v574, 0.0
        %v591 = vmax.f32 %v575, 0.0
        %v592 = vmax.f32 %v576, 0.0
        %v593 = vmax.f32 %v577, 0.0
        %v594 = vmax.f32 %v578, 0.0
        %v595 = vmax.f32 %v579, 0.0
        %v596 = vmax.f32 %v580, 0.0
        %v597 = vmax.f32 %v581, 0.0
        %v598 = vmax.f32 %v582, 0.0
        %v599 = vmax.f32 %v583, 0.0
        %v600 = vmax.f32 %v584, 0.0
        %v601 = vmax.f32 %v585, 0.0
        %v602 = vld [vmem:[%s326] sm:$0xff]
        %v603 = vld [vmem:[%s326 + $0x8] sm:$0xff]
        %v604 = vld [vmem:[%s326 + $0x10] sm:$0xff]
        %v605 = vld [vmem:[%s326 + $0x18] sm:$0xff]
        %v606 = vld [vmem:[%s326 + $0x20] sm:$0xff]
        %v607 = vld [vmem:[%s326 + $0x28] sm:$0xff]
        %v608 = vld [vmem:[%s326 + $0x30] sm:$0xff]
        %v609 = vld [vmem:[%s326 + $0x38] sm:$0xff]
        %v610 = vld [vmem:[%s326 + $0x40] sm:$0xff]
        %v611 = vld [vmem:[%s326 + $0x48] sm:$0xff]
        %v612 = vld [vmem:[%s326 + $0x50] sm:$0xff]
        %v613 = vld [vmem:[%s326 + $0x58] sm:$0xff]
        %v614 = vld [vmem:[%s326 + $0x60] sm:$0xff]
        %v615 = vld [vmem:[%s326 + $0x68] sm:$0xff]
        %v616 = vld [vmem:[%s326 + $0x70] sm:$0xff]
        %v617 = vld [vmem:[%s326 + $0x78] sm:$0xff]
        %v618 = vpack.c.bf16 %v603, %v602
        %v619 = vpack.c.bf16 %v605, %v604
        %v620 = vpack.c.bf16 %v607, %v606
        %v621 = vpack.c.bf16 %v609, %v608
        %v622 = vpack.c.bf16 %v611, %v610
        %v623 = vpack.c.bf16 %v613, %v612
        %v624 = vpack.c.bf16 %v615, %v614
        %v625 = vpack.c.bf16 %v617, %v616
        %v626 = vld [vmem:[%s5] sm:$0xf]
        %v627 = vld [vmem:[%s5 + $0x4] sm:$0xf]
        %v628 = vld [vmem:[%s5 + $0x8] sm:$0xf]
        %v629 = vld [vmem:[%s5 + $0xc] sm:$0xf]
        %v630 = vld [vmem:[%s5 + $0x10] sm:$0xf]
        %v631 = vld [vmem:[%s5 + $0x14] sm:$0xf]
        %v632 = vld [vmem:[%s5 + $0x18] sm:$0xf]
        %v633 = vld [vmem:[%s5 + $0x1c] sm:$0xf]
        %v642 = vunpack.c.l.b16 %v626
        %v643 = vunpack.c.l.b16 %v627
        %v644 = vunpack.c.l.b16 %v628
        %v645 = vunpack.c.l.b16 %v629
        %v646 = vunpack.c.l.b16 %v630
        %v647 = vunpack.c.l.b16 %v631
        %v648 = vunpack.c.l.b16 %v632
        %v649 = vunpack.c.l.b16 %v633
        %v650 = vpack.c.b16 %v643, %v642
        %v651 = vpack.c.b16 %v645, %v644
        %v652 = vpack.c.b16 %v647, %v646
        %v653 = vpack.c.b16 %v649, %v648
        %v659 = vsel %vm418, %v618, 0
        %v662 = vsel %vm418, %v619, 0
        %v665 = vsel %vm418, %v620, 0
        %v668 = vsel %vm418, %v621, 0
        %v671 = vsel %vm418, %v622, 0
        %v674 = vsel %vm418, %v623, 0
        %v677 = vsel %vm418, %v624, 0
        %v680 = vsel %vm418, %v625, 0
        %682 = vmatprep.subr.bf16.mxu0 0
        %683 = vmatpush1.bf16.msra.mxu0 %v650
        %684 = vmatprep.subr.bf16.mxu0 0
        %685 = vmatpush1.bf16.msra.mxu0 %v651
        %686 = vmatprep.subr.bf16.mxu0 0
        %687 = vmatpush1.bf16.msra.mxu0 %v652
        %688 = vmatprep.subr.bf16.mxu0 0
        %689 = vmatpush1.bf16.msra.mxu0 %v653
        %690 = vmatprep.subr.bf16.mxu0 0
        %691 = vmatpush1.bf16.msra.mxu0 0
        %692 = vmatprep.subr.bf16.mxu0 0
        %693 = vmatpush1.bf16.msra.mxu0 0
        %694 = vmatprep.subr.bf16.mxu0 0
        %695 = vmatpush1.bf16.msra.mxu0 0
        %696 = vmatprep.subr.bf16.mxu0 0
        %697 = vmatpush1.bf16.msra.mxu0 0
        %698 = vmatprep.subr.bf16.mxu0 0
        %699 = vmatpush1.bf16.msra.mxu0 0
        %700 = vmatprep.subr.bf16.mxu0 0
        %701 = vmatpush1.bf16.msra.mxu0 0
        %702 = vmatprep.subr.bf16.mxu0 0
        %703 = vmatpush1.bf16.msra.mxu0 0
        %704 = vmatprep.subr.bf16.mxu0 0
        %705 = vmatpush1.bf16.msra.mxu0 0
        %706 = vmatprep.subr.bf16.mxu0 0
        %707 = vmatpush1.bf16.msra.mxu0 0
        %708 = vmatprep.subr.bf16.mxu0 0
        %709 = vmatpush1.bf16.msra.mxu0 0
        %710 = vmatprep.subr.bf16.mxu0 0
        %711 = vmatpush1.bf16.msra.mxu0 0
        %712 = vmatprep.subr.bf16.mxu0 0
        %713 = vmatpush1.bf16.msra.mxu0 0
        %714 = vmatprep.mubr.bf16.mxu0 0
        %715 = vmatmul.mubr.bf16.gmra.mrb[0].mxu0 %v659
        %v716 = vpop.f32.mrb[0].mxu0
        %v717 = vadd.f32 0.0, %v716
        %v718 = vpop.f32.mrb[0].mxu0
        %v719 = vpop.f32.mrb[0].mxu0
        %v720 = vadd.f32 0.0, %v719
        %v721 = vpop.f32.mrb[0].mxu0
        %722 = vmatprep.mubr.bf16.mxu0 0
        %723 = vmatmul.mubr.bf16.gmra.mrb[0].mxu0 %v662
        %v724 = vpop.f32.mrb[0].mxu0
        %v725 = vadd.f32 0.0, %v724
        %v726 = vpop.f32.mrb[0].mxu0
        %v727 = vpop.f32.mrb[0].mxu0
        %v728 = vadd.f32 0.0, %v727
        %v729 = vpop.f32.mrb[0].mxu0
        %730 = vmatprep.mubr.bf16.mxu0 0
        %731 = vmatmul.mubr.bf16.gmra.mrb[0].mxu0 %v665
        %v732 = vpop.f32.mrb[0].mxu0
        %v733 = vadd.f32 0.0, %v732
        %v734 = vpop.f32.mrb[0].mxu0
        %v735 = vpop.f32.mrb[0].mxu0
        %v736 = vadd.f32 0.0, %v735
        %v737 = vpop.f32.mrb[0].mxu0
        %738 = vmatprep.mubr.bf16.mxu0 0
        %739 = vmatmul.mubr.bf16.gmra.mrb[0].mxu0 %v668
        %v740 = vpop.f32.mrb[0].mxu0
        %v741 = vadd.f32 0.0, %v740
        %v742 = vpop.f32.mrb[0].mxu0
        %v743 = vpop.f32.mrb[0].mxu0
        %v744 = vadd.f32 0.0, %v743
        %v745 = vpop.f32.mrb[0].mxu0
        %746 = vmatprep.mubr.bf16.mxu0 0
        %747 = vmatmul.mubr.bf16.gmra.mrb[0].mxu0 %v671
        %v748 = vpop.f32.mrb[0].mxu0
        %v749 = vadd.f32 0.0, %v748
        %v750 = vpop.f32.mrb[0].mxu0
        %v751 = vpop.f32.mrb[0].mxu0
        %v752 = vadd.f32 0.0, %v751
        %v753 = vpop.f32.mrb[0].mxu0
        %754 = vmatprep.mubr.bf16.mxu0 0
        %755 = vmatmul.mubr.bf16.gmra.mrb[0].mxu0 %v674
        %v756 = vpop.f32.mrb[0].mxu0
        %v757 = vadd.f32 0.0, %v756
        %v758 = vpop.f32.mrb[0].mxu0
        %v759 = vpop.f32.mrb[0].mxu0
        %v760 = vadd.f32 0.0, %v759
        %v761 = vpop.f32.mrb[0].mxu0
        %762 = vmatprep.mubr.bf16.mxu0 0
        %763 = vmatmul.mubr.bf16.gmra.mrb[0].mxu0 %v677
        %v764 = vpop.f32.mrb[0].mxu0
        %v765 = vadd.f32 0.0, %v764
        %v766 = vpop.f32.mrb[0].mxu0
        %v767 = vpop.f32.mrb[0].mxu0
        %v768 = vadd.f32 0.0, %v767
        %v769 = vpop.f32.mrb[0].mxu0
        %770 = vmatprep.mubr.bf16.mxu0 0
        %771 = vmatmul.mubr.bf16.gmra.mrb[0].mxu0 %v680
        %v772 = vpop.f32.mrb[0].mxu0
        %v773 = vadd.f32 0.0, %v772
        %v774 = vpop.f32.mrb[0].mxu0
        %v775 = vpop.f32.mrb[0].mxu0
        %v776 = vadd.f32 0.0, %v775
        %v777 = vpop.f32.mrb[0].mxu0
        %778 = vdwg.mxu0
        %v779 = vld [vmem:[%s6] sm:$0x1]
        %v781 = vlaneseq
        %v782 = vshrl.u32 %v781, 7
        %v783 = vsub.s32 0, %v782
        %v784 = vrot.slane %v779, %v783
        %v786 = vmul.f32 %v717, %v784
        %v787 = vmul.f32 %v720, %v784
        %v788 = vmul.f32 %v725, %v784
        %v789 = vmul.f32 %v728, %v784
        %v790 = vmul.f32 %v733, %v784
        %v791 = vmul.f32 %v736, %v784
        %v792 = vmul.f32 %v741, %v784
        %v793 = vmul.f32 %v744, %v784
        %v794 = vmul.f32 %v749, %v784
        %v795 = vmul.f32 %v752, %v784
        %v796 = vmul.f32 %v757, %v784
        %v797 = vmul.f32 %v760, %v784
        %v798 = vmul.f32 %v765, %v784
        %v799 = vmul.f32 %v768, %v784
        %v800 = vmul.f32 %v773, %v784
        %v801 = vmul.f32 %v776, %v784
        %v802 = vld [vmem:[%s7] sm:$0x1]
        %v804 = vlaneseq
        %v805 = vshrl.u32 %v804, 7
        %v806 = vsub.s32 0, %v805
        %v807 = vrot.slane %v802, %v806
        %v809 = vadd.f32 %v786, %v807
        %v810 = vadd.f32 %v787, %v807
        %v811 = vadd.f32 %v788, %v807
        %v812 = vadd.f32 %v789, %v807
        %v813 = vadd.f32 %v790, %v807
        %v814 = vadd.f32 %v791, %v807
        %v815 = vadd.f32 %v792, %v807
        %v816 = vadd.f32 %v793, %v807
        %v817 = vadd.f32 %v794, %v807
        %v818 = vadd.f32 %v795, %v807
        %v819 = vadd.f32 %v796, %v807
        %v820 = vadd.f32 %v797, %v807
        %v821 = vadd.f32 %v798, %v807
        %v822 = vadd.f32 %v799, %v807
        %v823 = vadd.f32 %v800, %v807
        %v824 = vadd.f32 %v801, %v807
        %v825 = vadd.f32 %v809, %v586
        %v826 = vadd.f32 %v810, %v587
        %v827 = vadd.f32 %v811, %v588
        %v828 = vadd.f32 %v812, %v589
        %v829 = vadd.f32 %v813, %v590
        %v830 = vadd.f32 %v814, %v591
        %v831 = vadd.f32 %v815, %v592
        %v832 = vadd.f32 %v816, %v593
        %v833 = vadd.f32 %v817, %v594
        %v834 = vadd.f32 %v818, %v595
        %v835 = vadd.f32 %v819, %v596
        %v836 = vadd.f32 %v820, %v597
        %v837 = vadd.f32 %v821, %v598
        %v838 = vadd.f32 %v822, %v599
        %v839 = vadd.f32 %v823, %v600
        %v840 = vadd.f32 %v824, %v601
        %v841 = vmax.f32 %v825, 0.0
        %v842 = vmax.f32 %v826, 0.0
        %v843 = vmax.f32 %v827, 0.0
        %v844 = vmax.f32 %v828, 0.0
        %v845 = vmax.f32 %v829, 0.0
        %v846 = vmax.f32 %v830, 0.0
        %v847 = vmax.f32 %v831, 0.0
        %v848 = vmax.f32 %v832, 0.0
        %v849 = vmax.f32 %v833, 0.0
        %v850 = vmax.f32 %v834, 0.0
        %v851 = vmax.f32 %v835, 0.0
        %v852 = vmax.f32 %v836, 0.0
        %v853 = vmax.f32 %v837, 0.0
        %v854 = vmax.f32 %v838, 0.0
        %v855 = vmax.f32 %v839, 0.0
        %v856 = vmax.f32 %v840, 0.0
        %857 = vst [vmem:[%s315] sm:$0xff] %v841
        %858 = vst [vmem:[%s315 + $0x8] sm:$0xff] %v842
        %859 = vst [vmem:[%s315 + $0x10] sm:$0xff] %v843
        %860 = vst [vmem:[%s315 + $0x18] sm:$0xff] %v844
        %861 = vst [vmem:[%s315 + $0x20] sm:$0xff] %v845
        %862 = vst [vmem:[%s315 + $0x28] sm:$0xff] %v846
        %863 = vst [vmem:[%s315 + $0x30] sm:$0xff] %v847
        %864 = vst [vmem:[%s315 + $0x38] sm:$0xff] %v848
        %865 = vst [vmem:[%s315 + $0x40] sm:$0xff] %v849
        %866 = vst [vmem:[%s315 + $0x48] sm:$0xff] %v850
        %867 = vst [vmem:[%s315 + $0x50] sm:$0xff] %v851
        %868 = vst [vmem:[%s315 + $0x58] sm:$0xff] %v852
        %869 = vst [vmem:[%s315 + $0x60] sm:$0xff] %v853
        %870 = vst [vmem:[%s315 + $0x68] sm:$0xff] %v854
        %871 = vst [vmem:[%s315 + $0x70] sm:$0xff] %v855
        %872 = vst [vmem:[%s315 + $0x78] sm:$0xff] %v856
        %s873 = sand.u32 %s208, 1
        %s874 = scalar_lea.sflag [#allocation3], %s873
        %s875 = sand.u32 %s208, 1
        %s876 = smul.addr %s875, 128
        %s877 = scalar_lea.vmem [#allocation2], %s876
        // Predicated region
        $region53: #{mlfn_block_forward.7} parent=51 // pred_check
          %p878 = pneg %p218
        $region54: #{mlfn_block_forward.7} parent=51 // pred_check_branch
          %880 = sbr.rel (%p878) target = $region56
        $region55: #{mlfn_block_forward.7} parent=51 // pred_region
          %s881 = smul.u32 16, %s22
          %s883 = ssub.s32 2048, 2048
          %884 = vsyncadd %s874, %s883
          %s885 = smul.addr %s881, 128
          %s886 = scalar_lea.hbm %s8, %s885
          %s887 = sshll.u32 %s877, 4
          %s888 = int_to_ptr.vmem [resolvable:$true] %s887
          %893 = dma.vmem_to_hbm [thread:$0]  %s888, 2048, %s886, %s874, 128, 128, 8
        $region56: #{mlfn_block_forward.7} parent=51 // pred_fallthru
          _
      $region52: #{mlfn_block_forward.7} parent=5 // pred_fallthru
        _
      %p894 = scmp.le.s32.totalorder 2, %s17
      // Predicated region
      $region57: #{mlfn_block_forward.7} parent=5 // pred_check
        %p895 = pneg %p894
      $region58: #{mlfn_block_forward.7} parent=5 // pred_check_branch
        %897 = sbr.rel (%p895) target = $region60
      $region59: #{mlfn_block_forward.7} parent=5 // pred_region
        %s898 = ssub.s32 %s17, 2
        // Predicated region
        $region61: #{mlfn_block_forward.7} parent=59 // pred_check
          %p899 = pneg %p224
        $region62: #{mlfn_block_forward.7} parent=59 // pred_check_branch
          %901 = sbr.rel (%p899) target = $region64
        $region63: #{mlfn_block_forward.7} parent=59 // pred_region
          %s902 = sand.u32 %s209, 1
          %s903 = scalar_lea.sflag [#allocation3], %s902
          %s904 = sand.u32 %s209, 1
          %s905 = smul.addr %s904, 128
          %s906 = scalar_lea.vmem [#allocation2], %s905
          %907 = dma.done %s903, 2048
        $region64: #{mlfn_block_forward.7} parent=59 // pred_fallthru
          _
      $region60: #{mlfn_block_forward.7} parent=5 // pred_fallthru
        _
    $region6: #{mlfn_block_forward.7} parent=1 // loop_footer
      %s21 = sadd.s32 1, %s17
    $region7: #{mlfn_block_forward.7} parent=1 // loop_footer_branch
      %16 = sbr.rel target = $region3
    $region8: #{mlfn_block_forward.7} parent=1 // loop_exit
      _
    %908 = vsyncpa [#allocation3], 1
    %s909 = scalar_lea.sflag [#allocation3], 1
    %910 = vsyncpa %s909, 1

</llo_original>
